<compile_context>
chip_gen: v7x
topology: tpu7x:2x2x1
jax: 0.10.0
libtpu: 0.0.40
codegen_flags: <defaults>
</compile_context>

<pallas_src>
import functools

import jax
import jax.numpy as jnp
from jax.experimental import pallas as pl
from jax.experimental.pallas import tpu as pltpu


def _silu(x):
    return x * jax.nn.sigmoid(x)


# --------------------------- staging / conv helpers --------------------------

def _write_cols(cols_ref, rows_val, r0, n, W, C):
    """Write `rows_val` (n, W, C) into cols_ref[r0:r0+n] as 3 stacked kx taps.

    cols_ref has last dim 3*C; channel block dx holds the input shifted by
    dx-1 columns with zero SAME padding:
        cols[r, x, dx*C:(dx+1)*C] = in[r, x + dx - 1]   (zero outside [0, W)).
    Built once per window in bf16 and reused by all 3 ky taps of the conv.
    """
    v = rows_val.astype(cols_ref.dtype)
    zc = jnp.zeros((n, 1, C), cols_ref.dtype)
    # dx = 0 -> source column x-1 (left zero pad)
    cols_ref[r0:r0 + n, 0:1, 0:C] = zc
    cols_ref[r0:r0 + n, 1:W, 0:C] = v[:, 0:W - 1, :]
    # dx = 1 -> source column x
    cols_ref[r0:r0 + n, :, C:2 * C] = v
    # dx = 2 -> source column x+1 (right zero pad)
    cols_ref[r0:r0 + n, 0:W - 1, 2 * C:3 * C] = v[:, 1:W, :]
    cols_ref[r0:r0 + n, W - 1:W, 2 * C:3 * C] = zc


def _conv3x3_from_cols(cols_ref, w_ref, b_ref, n_rows, W, c_in, c_out):
    """3x3 SAME conv from a pre-staged bf16 column window.

    cols_ref[i] holds the dx-stacked taps of padded input row (base + i);
    output row j accumulates cols[j + dy] @ w[dy] for dy in 0..2.
    Returns (n_rows, W, c_out) float32.
    """
    acc = jnp.broadcast_to(b_ref[...].astype(jnp.float32),
                           (n_rows * W, c_out))
    for dy in range(3):
        lhs = cols_ref[dy:dy + n_rows].reshape(n_rows * W, 3 * c_in)
        acc = acc + jnp.dot(lhs, w_ref[dy],
                            preferred_element_type=jnp.float32)
    return acc.reshape(n_rows, W, c_out)


# --------------------------- stage 1 kernel ----------------------------------
# h = conv_1(silu(conv_1(x)))   +  per-tile per-channel GN partial sums.

def _stage1_kernel(x_top_ref, x_body_ref, x_bot_ref, w1_ref, b1_ref,
                   h_ref, stats_ref, cols1_ref, cols2_ref,
                   *, TH, W, C, NT):
    t = pl.program_id(1)

    # Stage the zero-padded x window (rows t*TH-2 .. t*TH+TH+1) as kx taps.
    _write_cols(cols1_ref, x_top_ref[0], 0, 2, W, C)
    _write_cols(cols1_ref, x_body_ref[0], 2, TH, W, C)
    _write_cols(cols1_ref, x_bot_ref[0], TH + 2, 2, W, C)

    # Halo rows outside the image are zero (SAME padding of x).  Only the
    # first / last row-tile pays for this; interior tiles skip it entirely.
    @pl.when(t == 0)
    def _():
        cols1_ref[0:2] = jnp.zeros((2, W, 3 * C), cols1_ref.dtype)

    @pl.when(t == NT - 1)
    def _():
        cols1_ref[TH + 2:TH + 4] = jnp.zeros((2, W, 3 * C), cols1_ref.dtype)

    # First conv_1 + silu over rows t*TH-1 .. t*TH+TH.
    h1 = _conv3x3_from_cols(cols1_ref, w1_ref, b1_ref, TH + 2, W, C, C)
    _write_cols(cols2_ref, _silu(h1), 0, TH + 2, W, C)

    # silu(conv_1(x)) at rows -1 / H is zero padding for the second conv.
    @pl.when(t == 0)
    def _():
        cols2_ref[0:1] = jnp.zeros((1, W, 3 * C), cols2_ref.dtype)

    @pl.when(t == NT - 1)
    def _():
        cols2_ref[TH + 1:TH + 2] = jnp.zeros((1, W, 3 * C), cols2_ref.dtype)

    # Second application of conv_1 (the reference applies conv_1 twice).
    h = _conv3x3_from_cols(cols2_ref, w1_ref, b1_ref, TH, W, C, C)
    hb = h.astype(h_ref.dtype)
    h_ref[0] = hb

    # Per-tile, per-channel partial sums for groupnorm_2; computed from the
    # bf16-rounded h so the statistics match what stage 2 actually normalizes.
    hf = hb.astype(jnp.float32).reshape(TH * W, C)
    stats_ref[0, 0] = jnp.concatenate(
        [jnp.sum(hf, axis=0, keepdims=True),
         jnp.sum(hf * hf, axis=0, keepdims=True)], axis=0)


# --------------------------- stage 2 kernel ----------------------------------
# out = conv_2(silu(gn_2(h))) + x  with gn_2 folded to per-channel scale/shift.

def _stage2_kernel(h_top_ref, h_body_ref, h_bot_ref, x_ref, scale_ref,
                   shift_ref, w2_ref, b2_ref, o_ref, cols_ref,
                   *, TH, W, C, NT):
    t = pl.program_id(1)
    f32 = jnp.float32
    scale = scale_ref[0].astype(f32)                    # (1, C)
    shift = shift_ref[0].astype(f32)                    # (1, C)

    def gn_silu(seg):                                    # (n, W, C) -> (n, W, C)
        return _silu(seg.astype(f32) * scale + shift)

    # GN + silu is applied per segment and written straight into the bf16
    # column window (no concatenated full-slab temporaries).
    _write_cols(cols_ref, gn_silu(h_top_ref[0]), 0, 1, W, C)
    _write_cols(cols_ref, gn_silu(h_body_ref[0]), 1, TH, W, C)
    _write_cols(cols_ref, gn_silu(h_bot_ref[0]), TH + 1, 1, W, C)

    # silu(gn_2(h)) at rows -1 / H is zero padding for conv_2.
    @pl.when(t == 0)
    def _():
        cols_ref[0:1] = jnp.zeros((1, W, 3 * C), cols_ref.dtype)

    @pl.when(t == NT - 1)
    def _():
        cols_ref[TH + 1:TH + 2] = jnp.zeros((1, W, 3 * C), cols_ref.dtype)

    y = _conv3x3_from_cols(cols_ref, w2_ref, b2_ref, TH, W, C, C)
    o_ref[0] = (y + x_ref[0].astype(f32)).astype(o_ref.dtype)   # residual in f32


# ------------------------------ wrapper ---------------------------------------

def _vmem_capacity_bytes():
    try:
        cap = getattr(pltpu.get_tpu_info(), "vmem_capacity_bytes", None)
        if cap:
            return int(cap)
    except Exception:
        pass
    return 64 << 20          # conservative default (v7x per-TensorCore VMEM)


def _pick_row_tile(H, W, C, B, budget_bytes):
    """Largest even divisor of H whose per-tile footprint fits the budget.

    Prefers a tile for which B * (H // TH) is even so the two TensorCores of a
    v7x part split the parallel grid evenly.
    """
    weight_bytes = 2 * 2 * 9 * C * C * 2        # double-buffered bf16 3x3 weights
    per_row = 36 * W * C                        # bf16 cols + I/O blocks + f32 temps
    avail = max(budget_bytes - weight_bytes, 2 * per_row)
    cap = max(2, min(H, avail // per_row))
    best, best_even = 2, None
    for d in range(2, H + 1, 2):
        if H % d == 0 and d <= cap:
            best = d
            if (B * (H // d)) % 2 == 0:
                best_even = d
    return best_even if best_even is not None else best


def _vmem_limit_bytes(TH, W, C):
    cap = _vmem_capacity_bytes()
    cols = 2 * (TH + 4) * W * 3 * C * 2          # bf16 column scratch
    blocks = 8 * (TH + 4) * W * C * 2            # double-buffered bf16 I/O blocks
    temps = 4 * (TH + 2) * W * C * 4             # f32 intermediates
    weights = 2 * 2 * 9 * C * C * 2              # double-buffered bf16 weights
    est = cols + blocks + temps + weights
    return int(min(cap - (8 << 20), max(32 << 20, 2 * est)))


def vae_residual_block_nhwc(x_nhwc, params, *, num_groups=32, eps=1e-5,
                            row_tile=None):
    """NHWC entry point (B, H, W, C) -> (B, H, W, C) bf16."""
    B, H, W, C = x_nhwc.shape
    assert C % num_groups == 0, "GroupNorm(32, C) requires C % 32 == 0"
    assert H % 2 == 0, "row-tiled kernel expects an even number of rows"

    budget = max(16 << 20,
                 min(48 << 20, _vmem_capacity_bytes() // 2 - (4 << 20)))
    TH = _pick_row_tile(H, W, C, B, budget) if row_tile is None else int(row_tile)
    assert TH >= 2 and TH % 2 == 0 and H % TH == 0, (H, TH)
    NT = H // TH

    # bf16 activations in HBM (x is read by both stages, out written once).
    x = x_nhwc.astype(jnp.bfloat16)

    # HWIO 3x3 weights -> (3, 3*C, C) bf16: the 3 kx taps stacked along the
    # contraction dim so each ky is a single wide-K MXU matmul.
    w1 = params["w1"].reshape(3, 3 * C, C).astype(jnp.bfloat16)
    w2 = params["w2"].reshape(3, 3 * C, C).astype(jnp.bfloat16)
    b1 = params["b1"].reshape(1, C).astype(jnp.float32)
    b2 = params["b2"].reshape(1, C).astype(jnp.float32)

    cparams = pltpu.CompilerParams(
        dimension_semantics=("parallel", "parallel"),
        vmem_limit_bytes=_vmem_limit_bytes(TH, W, C))

    row_body = pl.BlockSpec((1, TH, W, C), lambda b, t: (b, t, 0, 0))
    # TODO(synk): single-buffer w/b (pipeline_mode=pl.Buffered(1)) to reclaim
    # ~9*C*C*2 bytes on v7x's 64 MiB VMEM once validated on hardware.
    w_spec = pl.BlockSpec((3, 3 * C, C), lambda b, t: (0, 0, 0))
    b_spec = pl.BlockSpec((1, C), lambda b, t: (0, 0))

    # ---------------- stage 1: h = conv_1(silu(conv_1(x))) + GN partials -----
    stage1 = functools.partial(_stage1_kernel, TH=TH, W=W, C=C, NT=NT)
    h, stats = pl.pallas_call(
        stage1,
        out_shape=(jax.ShapeDtypeStruct((B, H, W, C), jnp.bfloat16),
                   jax.ShapeDtypeStruct((B, NT, 2, C), jnp.float32)),
        grid_spec=pltpu.PrefetchScalarGridSpec(
            num_scalar_prefetch=0,
            grid=(B, NT),
            in_specs=[
                # 2-row top halo (rows t*TH-2 .. t*TH-1), clamped; zeroed at t=0.
                pl.BlockSpec((1, 2, W, C),
                             lambda b, t: (b, jnp.maximum(t * (TH // 2) - 1, 0),
                                           0, 0)),
                row_body,                                            # body rows
                # 2-row bottom halo, clamped; zeroed at t=NT-1.
                pl.BlockSpec((1, 2, W, C),
                             lambda b, t: (b, jnp.minimum((t + 1) * (TH // 2),
                                                          H // 2 - 1), 0, 0)),
                w_spec, b_spec,
            ],
            out_specs=[
                row_body,                                            # h (bf16)
                pl.BlockSpec((1, 1, 2, C), lambda b, t: (b, t, 0, 0)),  # stats
            ],
            scratch_shapes=[pltpu.VMEM((TH + 4, W, 3 * C), jnp.bfloat16),
                            pltpu.VMEM((TH + 2, W, 3 * C), jnp.bfloat16)],
        ),
        compiler_params=cparams,
    )(x, x, x, w1, b1)

    # ----- fold group statistics + affine into per-channel scale/shift (tiny).
    g = C // num_groups
    hw = float(H * W)
    sum_c = stats[:, :, 0, :].sum(axis=1)                       # (B, C)
    sq_c = stats[:, :, 1, :].sum(axis=1)                        # (B, C)
    mean_g = sum_c.reshape(B, num_groups, g).sum(-1) / (hw * g)
    msq_g = sq_c.reshape(B, num_groups, g).sum(-1) / (hw * g)
    rstd_g = jax.lax.rsqrt(msq_g - mean_g * mean_g + eps)
    mean_c = jnp.repeat(mean_g, g, axis=1)                      # (B, C)
    rstd_c = jnp.repeat(rstd_g, g, axis=1)                      # (B, C)
    gamma = params["gn2_gamma"].reshape(1, C).astype(jnp.float32)
    beta = params["gn2_beta"].reshape(1, C).astype(jnp.float32)
    scale = (gamma * rstd_c).reshape(B, 1, C)
    shift = (beta - mean_c * gamma * rstd_c).reshape(B, 1, C)

    # ---------------- stage 2: conv_2(silu(gn_2(h))) + x ---------------------
    # TODO(synk): for small-spatial layers where H*W*C*2 bytes of h fits VMEM,
    # fuse both stages into one kernel (drops h's HBM round trip).
    stage2 = functools.partial(_stage2_kernel, TH=TH, W=W, C=C, NT=NT)
    out = pl.pallas_call(
        stage2,
        out_shape=jax.ShapeDtypeStruct((B, H, W, C), jnp.bfloat16),
        grid_spec=pltpu.PrefetchScalarGridSpec(
            num_scalar_prefetch=0,
            grid=(B, NT),
            in_specs=[
                # 1-row top / bottom halos of h, clamped; zeroed on edge tiles.
                pl.BlockSpec((1, 1, W, C),
                             lambda b, t: (b, jnp.maximum(t * TH - 1, 0), 0, 0)),
                row_body,                                            # h body
                pl.BlockSpec((1, 1, W, C),
                             lambda b, t: (b, jnp.minimum(t * TH + TH, H - 1),
                                           0, 0)),
                row_body,                                            # residual x
                pl.BlockSpec((1, 1, C), lambda b, t: (b, 0, 0)),     # gn scale
                pl.BlockSpec((1, 1, C), lambda b, t: (b, 0, 0)),     # gn shift
                w_spec, b_spec,
            ],
            out_specs=row_body,
            scratch_shapes=[pltpu.VMEM((TH + 2, W, 3 * C), jnp.bfloat16)],
        ),
        compiler_params=cparams,
    )(h, h, h, x, scale, shift, w2, b2)

    return out


def vae_residual_block(x_nchw, params, *, num_groups=32, eps=1e-5,
                       row_tile=None):
    """NCHW convenience wrapper (matches the PyTorch module's layout).

    The NCHW<->NHWC transposes are an extra HBM round trip done in XLA; keep
    the surrounding decoder in NHWC and call vae_residual_block_nhwc directly
    to avoid them.
    """
    x = jnp.transpose(x_nchw, (0, 2, 3, 1))
    y = vae_residual_block_nhwc(x, params, num_groups=num_groups, eps=eps,
                                row_tile=row_tile)
    return jnp.transpose(y, (0, 3, 1, 2)).astype(x_nchw.dtype)


# ---------------- pure-JAX reference (for correctness check) -----------------

def _conv3x3_ref(x_nhwc, w_hwio, b):
    y = jax.lax.conv_general_dilated(
        x_nhwc, w_hwio, window_strides=(1, 1), padding="SAME",
        dimension_numbers=("NHWC", "HWIO", "NHWC"))
    return y + b[None, None, None, :]


def _groupnorm_ref(x_nhwc, gamma, beta, num_groups, eps):
    B, H, W, C = x_nhwc.shape
    g = C // num_groups
    xg = x_nhwc.reshape(B, H, W, num_groups, g)
    mean = jnp.mean(xg, axis=(1, 2, 4), keepdims=True)
    var = jnp.mean(jnp.square(xg - mean), axis=(1, 2, 4), keepdims=True)
    xn = ((xg - mean) * jax.lax.rsqrt(var + eps)).reshape(B, H, W, C)
    return xn * gamma[None, None, None, :] + beta[None, None, None, :]


def vae_residual_block_ref(x_nchw, params, *, num_groups=32, eps=1e-5):
    x = jnp.transpose(x_nchw, (0, 2, 3, 1)).astype(jnp.float32)
    h = _conv3x3_ref(x, params["w1"], params["b1"])
    h = jax.nn.silu(h)
    h = _conv3x3_ref(h, params["w1"], params["b1"])
    s = jax.nn.silu(_groupnorm_ref(h, params["gn2_gamma"], params["gn2_beta"],
                                   num_groups, eps))
    y = _conv3x3_ref(s, params["w2"], params["b2"]) + x
    return jnp.transpose(y, (0, 3, 1, 2))


if __name__ == "__main__":
    key = jax.random.PRNGKey(0)
    # in_channels == out_channels == 32 (GroupNorm(32, C) needs C % 32 == 0 and
    # the reference forward requires in_ch == out_ch -> Identity residual).
    B, C, H, W = 2, 32, 16, 16
    ks = jax.random.split(key, 6)
    x = jax.random.normal(ks[0], (B, C, H, W), jnp.float32)
    params = {
        "w1": 0.1 * jax.random.normal(ks[1], (3, 3, C, C), jnp.float32),  # HWIO
        "b1": 0.1 * jax.random.normal(ks[2], (C,), jnp.float32),
        "w2": 0.1 * jax.random.normal(ks[3], (3, 3, C, C), jnp.float32),  # HWIO
        "b2": 0.1 * jax.random.normal(ks[4], (C,), jnp.float32),
        "gn2_gamma": 1.0 + 0.1 * jax.random.normal(ks[5], (C,), jnp.float32),
        "gn2_beta": jnp.zeros((C,), jnp.float32),
    }

    ref = jax.block_until_ready(vae_residual_block_ref(x, params))
    scale = float(jnp.max(jnp.abs(ref)))

    # Exercise both the multi-tile (halo + edge-zeroing) path and the
    # auto-tiled single-tile path.
    for rt in (8, None):
        out = jax.block_until_ready(vae_residual_block(x, params, row_tile=rt))
        assert out.shape == (B, C, H, W), out.shape
        err = float(jnp.max(jnp.abs(out.astype(jnp.float32) - ref)))
        # bf16 activations/weights end-to-end -> tolerance relative to scale.
        assert err <= 5e-2 * max(1.0, scale), \
            f"row_tile={rt}: max abs err {err} (ref scale {scale})"

    print("KERNEL_OK")
</pallas_src>

<mosaic_0001>
module attributes {stable_mosaic.version = 11 : i64} {
  func.func @_stage1_kernel(%arg0: i32, %arg1: i32, %arg2: memref<1x2x16x32xbf16, #tpu.memory_space<vmem>>, %arg3: memref<1x8x16x32xbf16, #tpu.memory_space<vmem>>, %arg4: memref<1x2x16x32xbf16, #tpu.memory_space<vmem>>, %arg5: memref<3x96x32xbf16, #tpu.memory_space<vmem>>, %arg6: memref<1x32xf32, #tpu.memory_space<vmem>>, %arg7: memref<1x8x16x32xbf16, #tpu.memory_space<vmem>>, %arg8: memref<1x1x2x32xf32, #tpu.memory_space<vmem>>, %arg9: memref<12x16x96xbf16, #tpu.memory_space<vmem>>, %arg10: memref<10x16x96xbf16, #tpu.memory_space<vmem>>) attributes {dimension_semantics = [#tpu.dimension_semantics<parallel>, #tpu.dimension_semantics<parallel>], iteration_bounds = array<i64: 2, 2>, scalar_prefetch = 0 : i64, scratch_operands = 2 : i64, tpu.core_type = #tpu.core_type<tc>, window_params = [{transform_indices = @transform_0, window_bounds = array<i64: 1, 2, 16, 32>}, {transform_indices = @transform_1, window_bounds = array<i64: 1, 8, 16, 32>}, {transform_indices = @transform_2, window_bounds = array<i64: 1, 2, 16, 32>}, {pipeline_mode = #tpu.pipeline_mode<synchronous>, transform_indices = @transform_3, window_bounds = array<i64: 3, 96, 32>}, {pipeline_mode = #tpu.pipeline_mode<synchronous>, transform_indices = @transform_4, window_bounds = array<i64: 1, 32>}, {transform_indices = @transform_5, window_bounds = array<i64: 1, 8, 16, 32>}, {transform_indices = @transform_6, window_bounds = array<i64: 1, 1, 2, 32>}]} {
    %c0 = arith.constant 0 : index
    %c0_0 = arith.constant 0 : index
    %c0_1 = arith.constant 0 : index
    %c0_2 = arith.constant 0 : index
    %0 = vector.load %arg2[%c0, %c0_0, %c0_1, %c0_2] : memref<1x2x16x32xbf16, #tpu.memory_space<vmem>>, vector<1x2x16x32xbf16>
    %1 = vector.shape_cast %0 : vector<1x2x16x32xbf16> to vector<2x16x32xbf16>
    %cst = arith.constant 0.000000e+00 : bf16
    %2 = vector.broadcast %cst : bf16 to vector<2x1x32xbf16>
    %c0_3 = arith.constant 0 : index
    %c0_4 = arith.constant 0 : index
    %c0_5 = arith.constant 0 : index
    %3 = vector.load %arg9[%c0_3, %c0_4, %c0_5] : memref<12x16x96xbf16, #tpu.memory_space<vmem>>, vector<2x1x32xbf16>
    tpu.vector_store %arg9[%c0_3, %c0_4, %c0_5], %2 {strides = array<i32>} : memref<12x16x96xbf16, #tpu.memory_space<vmem>>, vector<2x1x32xbf16>,
    %4 = vector.extract_strided_slice %1 {offsets = [0, 0, 0], sizes = [2, 15, 32], strides = [1, 1, 1]} : vector<2x16x32xbf16> to vector<2x15x32xbf16>
    %c0_6 = arith.constant 0 : index
    %c1 = arith.constant 1 : index
    %c0_7 = arith.constant 0 : index
    %5 = vector.load %arg9[%c0_6, %c1, %c0_7] : memref<12x16x96xbf16, #tpu.memory_space<vmem>>, vector<2x15x32xbf16>
    tpu.vector_store %arg9[%c0_6, %c1, %c0_7], %4 {strides = array<i32>} : memref<12x16x96xbf16, #tpu.memory_space<vmem>>, vector<2x15x32xbf16>,
    %c0_8 = arith.constant 0 : index
    %c0_9 = arith.constant 0 : index
    %c32 = arith.constant 32 : index
    %6 = vector.load %arg9[%c0_8, %c0_9, %c32] : memref<12x16x96xbf16, #tpu.memory_space<vmem>>, vector<2x16x32xbf16>
    tpu.vector_store %arg9[%c0_8, %c0_9, %c32], %1 {strides = array<i32>} : memref<12x16x96xbf16, #tpu.memory_space<vmem>>, vector<2x16x32xbf16>,
    %7 = vector.extract_strided_slice %1 {offsets = [0, 1, 0], sizes = [2, 15, 32], strides = [1, 1, 1]} : vector<2x16x32xbf16> to vector<2x15x32xbf16>
    %c0_10 = arith.constant 0 : index
    %c0_11 = arith.constant 0 : index
    %c64 = arith.constant 64 : index
    %8 = vector.load %arg9[%c0_10, %c0_11, %c64] : memref<12x16x96xbf16, #tpu.memory_space<vmem>>, vector<2x15x32xbf16>
    tpu.vector_store %arg9[%c0_10, %c0_11, %c64], %7 {strides = array<i32>} : memref<12x16x96xbf16, #tpu.memory_space<vmem>>, vector<2x15x32xbf16>,
    %c0_12 = arith.constant 0 : index
    %c15 = arith.constant 15 : index
    %c64_13 = arith.constant 64 : index
    %9 = vector.load %arg9[%c0_12, %c15, %c64_13] : memref<12x16x96xbf16, #tpu.memory_space<vmem>>, vector<2x1x32xbf16>
    tpu.vector_store %arg9[%c0_12, %c15, %c64_13], %2 {strides = array<i32>} : memref<12x16x96xbf16, #tpu.memory_space<vmem>>, vector<2x1x32xbf16>,
    %c0_14 = arith.constant 0 : index
    %c0_15 = arith.constant 0 : index
    %c0_16 = arith.constant 0 : index
    %c0_17 = arith.constant 0 : index
    %10 = vector.load %arg3[%c0_14, %c0_15, %c0_16, %c0_17] : memref<1x8x16x32xbf16, #tpu.memory_space<vmem>>, vector<1x8x16x32xbf16>
    %11 = vector.shape_cast %10 : vector<1x8x16x32xbf16> to vector<8x16x32xbf16>
    %cst_18 = arith.constant 0.000000e+00 : bf16
    %12 = vector.broadcast %cst_18 : bf16 to vector<8x1x32xbf16>
    %c2 = arith.constant 2 : index
    %c0_19 = arith.constant 0 : index
    %c0_20 = arith.constant 0 : index
    %13 = vector.load %arg9[%c2, %c0_19, %c0_20] : memref<12x16x96xbf16, #tpu.memory_space<vmem>>, vector<8x1x32xbf16>
    tpu.vector_store %arg9[%c2, %c0_19, %c0_20], %12 {strides = array<i32>} : memref<12x16x96xbf16, #tpu.memory_space<vmem>>, vector<8x1x32xbf16>,
    %14 = vector.extract_strided_slice %11 {offsets = [0, 0, 0], sizes = [8, 15, 32], strides = [1, 1, 1]} : vector<8x16x32xbf16> to vector<8x15x32xbf16>
    %c2_21 = arith.constant 2 : index
    %c1_22 = arith.constant 1 : index
    %c0_23 = arith.constant 0 : index
    %15 = vector.load %arg9[%c2_21, %c1_22, %c0_23] : memref<12x16x96xbf16, #tpu.memory_space<vmem>>, vector<8x15x32xbf16>
    tpu.vector_store %arg9[%c2_21, %c1_22, %c0_23], %14 {strides = array<i32>} : memref<12x16x96xbf16, #tpu.memory_space<vmem>>, vector<8x15x32xbf16>,
    %c2_24 = arith.constant 2 : index
    %c0_25 = arith.constant 0 : index
    %c32_26 = arith.constant 32 : index
    %16 = vector.load %arg9[%c2_24, %c0_25, %c32_26] : memref<12x16x96xbf16, #tpu.memory_space<vmem>>, vector<8x16x32xbf16>
    tpu.vector_store %arg9[%c2_24, %c0_25, %c32_26], %11 {strides = array<i32>} : memref<12x16x96xbf16, #tpu.memory_space<vmem>>, vector<8x16x32xbf16>,
    %17 = vector.extract_strided_slice %11 {offsets = [0, 1, 0], sizes = [8, 15, 32], strides = [1, 1, 1]} : vector<8x16x32xbf16> to vector<8x15x32xbf16>
    %c2_27 = arith.constant 2 : index
    %c0_28 = arith.constant 0 : index
    %c64_29 = arith.constant 64 : index
    %18 = vector.load %arg9[%c2_27, %c0_28, %c64_29] : memref<12x16x96xbf16, #tpu.memory_space<vmem>>, vector<8x15x32xbf16>
    tpu.vector_store %arg9[%c2_27, %c0_28, %c64_29], %17 {strides = array<i32>} : memref<12x16x96xbf16, #tpu.memory_space<vmem>>, vector<8x15x32xbf16>,
    %c2_30 = arith.constant 2 : index
    %c15_31 = arith.constant 15 : index
    %c64_32 = arith.constant 64 : index
    %19 = vector.load %arg9[%c2_30, %c15_31, %c64_32] : memref<12x16x96xbf16, #tpu.memory_space<vmem>>, vector<8x1x32xbf16>
    tpu.vector_store %arg9[%c2_30, %c15_31, %c64_32], %12 {strides = array<i32>} : memref<12x16x96xbf16, #tpu.memory_space<vmem>>, vector<8x1x32xbf16>,
    %c0_33 = arith.constant 0 : index
    %c0_34 = arith.constant 0 : index
    %c0_35 = arith.constant 0 : index
    %c0_36 = arith.constant 0 : index
    %20 = vector.load %arg4[%c0_33, %c0_34, %c0_35, %c0_36] : memref<1x2x16x32xbf16, #tpu.memory_space<vmem>>, vector<1x2x16x32xbf16>
    %21 = vector.shape_cast %20 : vector<1x2x16x32xbf16> to vector<2x16x32xbf16>
    %cst_37 = arith.constant 0.000000e+00 : bf16
    %22 = vector.broadcast %cst_37 : bf16 to vector<2x1x32xbf16>
    %c10 = arith.constant 10 : index
    %c0_38 = arith.constant 0 : index
    %c0_39 = arith.constant 0 : index
    %23 = vector.load %arg9[%c10, %c0_38, %c0_39] : memref<12x16x96xbf16, #tpu.memory_space<vmem>>, vector<2x1x32xbf16>
    tpu.vector_store %arg9[%c10, %c0_38, %c0_39], %22 {strides = array<i32>} : memref<12x16x96xbf16, #tpu.memory_space<vmem>>, vector<2x1x32xbf16>,
    %24 = vector.extract_strided_slice %21 {offsets = [0, 0, 0], sizes = [2, 15, 32], strides = [1, 1, 1]} : vector<2x16x32xbf16> to vector<2x15x32xbf16>
    %c10_40 = arith.constant 10 : index
    %c1_41 = arith.constant 1 : index
    %c0_42 = arith.constant 0 : index
    %25 = vector.load %arg9[%c10_40, %c1_41, %c0_42] : memref<12x16x96xbf16, #tpu.memory_space<vmem>>, vector<2x15x32xbf16>
    tpu.vector_store %arg9[%c10_40, %c1_41, %c0_42], %24 {strides = array<i32>} : memref<12x16x96xbf16, #tpu.memory_space<vmem>>, vector<2x15x32xbf16>,
    %c10_43 = arith.constant 10 : index
    %c0_44 = arith.constant 0 : index
    %c32_45 = arith.constant 32 : index
    %26 = vector.load %arg9[%c10_43, %c0_44, %c32_45] : memref<12x16x96xbf16, #tpu.memory_space<vmem>>, vector<2x16x32xbf16>
    tpu.vector_store %arg9[%c10_43, %c0_44, %c32_45], %21 {strides = array<i32>} : memref<12x16x96xbf16, #tpu.memory_space<vmem>>, vector<2x16x32xbf16>,
    %27 = vector.extract_strided_slice %21 {offsets = [0, 1, 0], sizes = [2, 15, 32], strides = [1, 1, 1]} : vector<2x16x32xbf16> to vector<2x15x32xbf16>
    %c10_46 = arith.constant 10 : index
    %c0_47 = arith.constant 0 : index
    %c64_48 = arith.constant 64 : index
    %28 = vector.load %arg9[%c10_46, %c0_47, %c64_48] : memref<12x16x96xbf16, #tpu.memory_space<vmem>>, vector<2x15x32xbf16>
    tpu.vector_store %arg9[%c10_46, %c0_47, %c64_48], %27 {strides = array<i32>} : memref<12x16x96xbf16, #tpu.memory_space<vmem>>, vector<2x15x32xbf16>,
    %c10_49 = arith.constant 10 : index
    %c15_50 = arith.constant 15 : index
    %c64_51 = arith.constant 64 : index
    %29 = vector.load %arg9[%c10_49, %c15_50, %c64_51] : memref<12x16x96xbf16, #tpu.memory_space<vmem>>, vector<2x1x32xbf16>
    tpu.vector_store %arg9[%c10_49, %c15_50, %c64_51], %22 {strides = array<i32>} : memref<12x16x96xbf16, #tpu.memory_space<vmem>>, vector<2x1x32xbf16>,
    %c0_i32 = arith.constant 0 : i32
    %30 = arith.cmpi eq, %arg1, %c0_i32 : i32
    %31 = arith.extui %30 : i1 to i32
    %c0_i32_52 = arith.constant 0 : i32
    %32 = arith.cmpi ne, %31, %c0_i32_52 : i32
    scf.if %32 {
      %cst_131 = arith.constant 0.000000e+00 : bf16
      %116 = vector.broadcast %cst_131 : bf16 to vector<2x16x96xbf16>
      %c0_132 = arith.constant 0 : index
      %c0_133 = arith.constant 0 : index
      %c0_134 = arith.constant 0 : index
      %117 = vector.load %arg9[%c0_132, %c0_133, %c0_134] : memref<12x16x96xbf16, #tpu.memory_space<vmem>>, vector<2x16x96xbf16>
      tpu.vector_store %arg9[%c0_132, %c0_133, %c0_134], %116 {strides = array<i32>} : memref<12x16x96xbf16, #tpu.memory_space<vmem>>, vector<2x16x96xbf16>,
    } else {
    }
    %c1_i32 = arith.constant 1 : i32
    %33 = arith.cmpi eq, %arg1, %c1_i32 : i32
    %34 = arith.extui %33 : i1 to i32
    %c0_i32_53 = arith.constant 0 : i32
    %35 = arith.cmpi ne, %34, %c0_i32_53 : i32
    scf.if %35 {
      %cst_131 = arith.constant 0.000000e+00 : bf16
      %116 = vector.broadcast %cst_131 : bf16 to vector<2x16x96xbf16>
      %c10_132 = arith.constant 10 : index
      %c0_133 = arith.constant 0 : index
      %c0_134 = arith.constant 0 : index
      %117 = vector.load %arg9[%c10_132, %c0_133, %c0_134] : memref<12x16x96xbf16, #tpu.memory_space<vmem>>, vector<2x16x96xbf16>
      tpu.vector_store %arg9[%c10_132, %c0_133, %c0_134], %116 {strides = array<i32>} : memref<12x16x96xbf16, #tpu.memory_space<vmem>>, vector<2x16x96xbf16>,
    } else {
    }
    %c0_54 = arith.constant 0 : index
    %c0_55 = arith.constant 0 : index
    %36 = vector.load %arg6[%c0_54, %c0_55] : memref<1x32xf32, #tpu.memory_space<vmem>>, vector<1x32xf32>
    %37 = vector.shape_cast %36 : vector<1x32xf32> to vector<1x32xf32>
    %38 = vector.broadcast %37 : vector<1x32xf32> to vector<160x32xf32>
    %c0_56 = arith.constant 0 : index
    %c0_57 = arith.constant 0 : index
    %c0_58 = arith.constant 0 : index
    %39 = vector.load %arg9[%c0_56, %c0_57, %c0_58] : memref<12x16x96xbf16, #tpu.memory_space<vmem>>, vector<10x16x96xbf16>
    %40 = vector.shape_cast %39 : vector<10x16x96xbf16> to vector<160x96xbf16>
    %c0_59 = arith.constant 0 : index
    %c0_60 = arith.constant 0 : index
    %c0_61 = arith.constant 0 : index
    %41 = vector.load %arg5[%c0_59, %c0_60, %c0_61] : memref<3x96x32xbf16, #tpu.memory_space<vmem>>, vector<1x96x32xbf16>
    %42 = vector.shape_cast %41 : vector<1x96x32xbf16> to vector<96x32xbf16>
    %cst_62 = arith.constant dense<0.000000e+00> : vector<160x32xf32>
    %43 = tpu.matmul %40, %42, %cst_62 {dimension_numbers = #tpu.dot_dimension_numbers<[1], [0], [0], [1], [0, 0, 1, 1], [], []>} : vector<160x96xbf16>, vector<96x32xbf16>, vector<160x32xf32> -> vector<160x32xf32>
    %44 = arith.addf %38, %43 : vector<160x32xf32>
    %c1_63 = arith.constant 1 : index
    %c0_64 = arith.constant 0 : index
    %c0_65 = arith.constant 0 : index
    %45 = vector.load %arg9[%c1_63, %c0_64, %c0_65] : memref<12x16x96xbf16, #tpu.memory_space<vmem>>, vector<10x16x96xbf16>
    %46 = vector.shape_cast %45 : vector<10x16x96xbf16> to vector<160x96xbf16>
    %c1_66 = arith.constant 1 : index
    %c0_67 = arith.constant 0 : index
    %c0_68 = arith.constant 0 : index
    %47 = vector.load %arg5[%c1_66, %c0_67, %c0_68] : memref<3x96x32xbf16, #tpu.memory_space<vmem>>, vector<1x96x32xbf16>
    %48 = vector.shape_cast %47 : vector<1x96x32xbf16> to vector<96x32xbf16>
    %cst_69 = arith.constant dense<0.000000e+00> : vector<160x32xf32>
    %49 = tpu.matmul %46, %48, %cst_69 {dimension_numbers = #tpu.dot_dimension_numbers<[1], [0], [0], [1], [0, 0, 1, 1], [], []>} : vector<160x96xbf16>, vector<96x32xbf16>, vector<160x32xf32> -> vector<160x32xf32>
    %50 = arith.addf %44, %49 : vector<160x32xf32>
    %c2_70 = arith.constant 2 : index
    %c0_71 = arith.constant 0 : index
    %c0_72 = arith.constant 0 : index
    %51 = vector.load %arg9[%c2_70, %c0_71, %c0_72] : memref<12x16x96xbf16, #tpu.memory_space<vmem>>, vector<10x16x96xbf16>
    %52 = vector.shape_cast %51 : vector<10x16x96xbf16> to vector<160x96xbf16>
    %c2_73 = arith.constant 2 : index
    %c0_74 = arith.constant 0 : index
    %c0_75 = arith.constant 0 : index
    %53 = vector.load %arg5[%c2_73, %c0_74, %c0_75] : memref<3x96x32xbf16, #tpu.memory_space<vmem>>, vector<1x96x32xbf16>
    %54 = vector.shape_cast %53 : vector<1x96x32xbf16> to vector<96x32xbf16>
    %cst_76 = arith.constant dense<0.000000e+00> : vector<160x32xf32>
    %55 = tpu.matmul %52, %54, %cst_76 {dimension_numbers = #tpu.dot_dimension_numbers<[1], [0], [0], [1], [0, 0, 1, 1], [], []>} : vector<160x96xbf16>, vector<96x32xbf16>, vector<160x32xf32> -> vector<160x32xf32>
    %56 = arith.addf %50, %55 : vector<160x32xf32>
    %57 = vector.shape_cast %56 : vector<160x32xf32> to vector<10x16x32xf32>
    %58 = arith.negf %57 : vector<10x16x32xf32>
    %59 = math.exp %58 : vector<10x16x32xf32>
    %cst_77 = arith.constant 1.000000e+00 : f32
    %60 = vector.broadcast %cst_77 : f32 to vector<10x16x32xf32>
    %61 = arith.addf %60, %59 : vector<10x16x32xf32>
    %62 = arith.divf %60, %61 : vector<10x16x32xf32>
    %63 = arith.mulf %57, %62 : vector<10x16x32xf32>
    %64 = arith.truncf %63 : vector<10x16x32xf32> to vector<10x16x32xbf16>
    %cst_78 = arith.constant 0.000000e+00 : bf16
    %65 = vector.broadcast %cst_78 : bf16 to vector<10x1x32xbf16>
    %c0_79 = arith.constant 0 : index
    %c0_80 = arith.constant 0 : index
    %c0_81 = arith.constant 0 : index
    %66 = vector.load %arg10[%c0_79, %c0_80, %c0_81] : memref<10x16x96xbf16, #tpu.memory_space<vmem>>, vector<10x1x32xbf16>
    tpu.vector_store %arg10[%c0_79, %c0_80, %c0_81], %65 {strides = array<i32>} : memref<10x16x96xbf16, #tpu.memory_space<vmem>>, vector<10x1x32xbf16>,
    %67 = vector.extract_strided_slice %64 {offsets = [0, 0, 0], sizes = [10, 15, 32], strides = [1, 1, 1]} : vector<10x16x32xbf16> to vector<10x15x32xbf16>
    %c0_82 = arith.constant 0 : index
    %c1_83 = arith.constant 1 : index
    %c0_84 = arith.constant 0 : index
    %68 = vector.load %arg10[%c0_82, %c1_83, %c0_84] : memref<10x16x96xbf16, #tpu.memory_space<vmem>>, vector<10x15x32xbf16>
    tpu.vector_store %arg10[%c0_82, %c1_83, %c0_84], %67 {strides = array<i32>} : memref<10x16x96xbf16, #tpu.memory_space<vmem>>, vector<10x15x32xbf16>,
    %c0_85 = arith.constant 0 : index
    %c0_86 = arith.constant 0 : index
    %c32_87 = arith.constant 32 : index
    %69 = vector.load %arg10[%c0_85, %c0_86, %c32_87] : memref<10x16x96xbf16, #tpu.memory_space<vmem>>, vector<10x16x32xbf16>
    tpu.vector_store %arg10[%c0_85, %c0_86, %c32_87], %64 {strides = array<i32>} : memref<10x16x96xbf16, #tpu.memory_space<vmem>>, vector<10x16x32xbf16>,
    %70 = vector.extract_strided_slice %64 {offsets = [0, 1, 0], sizes = [10, 15, 32], strides = [1, 1, 1]} : vector<10x16x32xbf16> to vector<10x15x32xbf16>
    %c0_88 = arith.constant 0 : index
    %c0_89 = arith.constant 0 : index
    %c64_90 = arith.constant 64 : index
    %71 = vector.load %arg10[%c0_88, %c0_89, %c64_90] : memref<10x16x96xbf16, #tpu.memory_space<vmem>>, vector<10x15x32xbf16>
    tpu.vector_store %arg10[%c0_88, %c0_89, %c64_90], %70 {strides = array<i32>} : memref<10x16x96xbf16, #tpu.memory_space<vmem>>, vector<10x15x32xbf16>,
    %c0_91 = arith.constant 0 : index
    %c15_92 = arith.constant 15 : index
    %c64_93 = arith.constant 64 : index
    %72 = vector.load %arg10[%c0_91, %c15_92, %c64_93] : memref<10x16x96xbf16, #tpu.memory_space<vmem>>, vector<10x1x32xbf16>
    tpu.vector_store %arg10[%c0_91, %c15_92, %c64_93], %65 {strides = array<i32>} : memref<10x16x96xbf16, #tpu.memory_space<vmem>>, vector<10x1x32xbf16>,
    %c0_i32_94 = arith.constant 0 : i32
    %73 = arith.cmpi eq, %arg1, %c0_i32_94 : i32
    %74 = arith.extui %73 : i1 to i32
    %c0_i32_95 = arith.constant 0 : i32
    %75 = arith.cmpi ne, %74, %c0_i32_95 : i32
    scf.if %75 {
      %cst_131 = arith.constant 0.000000e+00 : bf16
      %116 = vector.broadcast %cst_131 : bf16 to vector<1x16x96xbf16>
      %c0_132 = arith.constant 0 : index
      %c0_133 = arith.constant 0 : index
      %c0_134 = arith.constant 0 : index
      %117 = vector.load %arg10[%c0_132, %c0_133, %c0_134] : memref<10x16x96xbf16, #tpu.memory_space<vmem>>, vector<1x16x96xbf16>
      tpu.vector_store %arg10[%c0_132, %c0_133, %c0_134], %116 {strides = array<i32>} : memref<10x16x96xbf16, #tpu.memory_space<vmem>>, vector<1x16x96xbf16>,
    } else {
    }
    %c1_i32_96 = arith.constant 1 : i32
    %76 = arith.cmpi eq, %arg1, %c1_i32_96 : i32
    %77 = arith.extui %76 : i1 to i32
    %c0_i32_97 = arith.constant 0 : i32
    %78 = arith.cmpi ne, %77, %c0_i32_97 : i32
    scf.if %78 {
      %cst_131 = arith.constant 0.000000e+00 : bf16
      %116 = vector.broadcast %cst_131 : bf16 to vector<1x16x96xbf16>
      %c9 = arith.constant 9 : index
      %c0_132 = arith.constant 0 : index
      %c0_133 = arith.constant 0 : index
      %117 = vector.load %arg10[%c9, %c0_132, %c0_133] : memref<10x16x96xbf16, #tpu.memory_space<vmem>>, vector<1x16x96xbf16>
      tpu.vector_store %arg10[%c9, %c0_132, %c0_133], %116 {strides = array<i32>} : memref<10x16x96xbf16, #tpu.memory_space<vmem>>, vector<1x16x96xbf16>,
    } else {
    }
    %c0_98 = arith.constant 0 : index
    %c0_99 = arith.constant 0 : index
    %79 = vector.load %arg6[%c0_98, %c0_99] : memref<1x32xf32, #tpu.memory_space<vmem>>, vector<1x32xf32>
    %80 = vector.shape_cast %79 : vector<1x32xf32> to vector<1x32xf32>
    %81 = vector.broadcast %80 : vector<1x32xf32> to vector<128x32xf32>
    %c0_100 = arith.constant 0 : index
    %c0_101 = arith.constant 0 : index
    %c0_102 = arith.constant 0 : index
    %82 = vector.load %arg10[%c0_100, %c0_101, %c0_102] : memref<10x16x96xbf16, #tpu.memory_space<vmem>>, vector<8x16x96xbf16>
    %83 = vector.shape_cast %82 : vector<8x16x96xbf16> to vector<128x96xbf16>
    %c0_103 = arith.constant 0 : index
    %c0_104 = arith.constant 0 : index
    %c0_105 = arith.constant 0 : index
    %84 = vector.load %arg5[%c0_103, %c0_104, %c0_105] : memref<3x96x32xbf16, #tpu.memory_space<vmem>>, vector<1x96x32xbf16>
    %85 = vector.shape_cast %84 : vector<1x96x32xbf16> to vector<96x32xbf16>
    %cst_106 = arith.constant dense<0.000000e+00> : vector<128x32xf32>
    %86 = tpu.matmul %83, %85, %cst_106 {dimension_numbers = #tpu.dot_dimension_numbers<[1], [0], [0], [1], [0, 0, 1, 1], [], []>} : vector<128x96xbf16>, vector<96x32xbf16>, vector<128x32xf32> -> vector<128x32xf32>
    %87 = arith.addf %81, %86 : vector<128x32xf32>
    %c1_107 = arith.constant 1 : index
    %c0_108 = arith.constant 0 : index
    %c0_109 = arith.constant 0 : index
    %88 = vector.load %arg10[%c1_107, %c0_108, %c0_109] : memref<10x16x96xbf16, #tpu.memory_space<vmem>>, vector<8x16x96xbf16>
    %89 = vector.shape_cast %88 : vector<8x16x96xbf16> to vector<128x96xbf16>
    %c1_110 = arith.constant 1 : index
    %c0_111 = arith.constant 0 : index
    %c0_112 = arith.constant 0 : index
    %90 = vector.load %arg5[%c1_110, %c0_111, %c0_112] : memref<3x96x32xbf16, #tpu.memory_space<vmem>>, vector<1x96x32xbf16>
    %91 = vector.shape_cast %90 : vector<1x96x32xbf16> to vector<96x32xbf16>
    %cst_113 = arith.constant dense<0.000000e+00> : vector<128x32xf32>
    %92 = tpu.matmul %89, %91, %cst_113 {dimension_numbers = #tpu.dot_dimension_numbers<[1], [0], [0], [1], [0, 0, 1, 1], [], []>} : vector<128x96xbf16>, vector<96x32xbf16>, vector<128x32xf32> -> vector<128x32xf32>
    %93 = arith.addf %87, %92 : vector<128x32xf32>
    %c2_114 = arith.constant 2 : index
    %c0_115 = arith.constant 0 : index
    %c0_116 = arith.constant 0 : index
    %94 = vector.load %arg10[%c2_114, %c0_115, %c0_116] : memref<10x16x96xbf16, #tpu.memory_space<vmem>>, vector<8x16x96xbf16>
    %95 = vector.shape_cast %94 : vector<8x16x96xbf16> to vector<128x96xbf16>
    %c2_117 = arith.constant 2 : index
    %c0_118 = arith.constant 0 : index
    %c0_119 = arith.constant 0 : index
    %96 = vector.load %arg5[%c2_117, %c0_118, %c0_119] : memref<3x96x32xbf16, #tpu.memory_space<vmem>>, vector<1x96x32xbf16>
    %97 = vector.shape_cast %96 : vector<1x96x32xbf16> to vector<96x32xbf16>
    %cst_120 = arith.constant dense<0.000000e+00> : vector<128x32xf32>
    %98 = tpu.matmul %95, %97, %cst_120 {dimension_numbers = #tpu.dot_dimension_numbers<[1], [0], [0], [1], [0, 0, 1, 1], [], []>} : vector<128x96xbf16>, vector<96x32xbf16>, vector<128x32xf32> -> vector<128x32xf32>
    %99 = arith.addf %93, %98 : vector<128x32xf32>
    %100 = vector.shape_cast %99 : vector<128x32xf32> to vector<8x16x32xf32>
    %101 = arith.truncf %100 : vector<8x16x32xf32> to vector<8x16x32xbf16>
    %c0_121 = arith.constant 0 : index
    %c0_122 = arith.constant 0 : index
    %c0_123 = arith.constant 0 : index
    %c0_124 = arith.constant 0 : index
    %102 = vector.load %arg7[%c0_121, %c0_122, %c0_123, %c0_124] : memref<1x8x16x32xbf16, #tpu.memory_space<vmem>>, vector<1x8x16x32xbf16>
    %103 = vector.shape_cast %102 : vector<1x8x16x32xbf16> to vector<8x16x32xbf16>
    %104 = vector.shape_cast %101 : vector<8x16x32xbf16> to vector<1x8x16x32xbf16>
    tpu.vector_store %arg7[%c0_121, %c0_122, %c0_123, %c0_124], %104 {strides = array<i32>} : memref<1x8x16x32xbf16, #tpu.memory_space<vmem>>, vector<1x8x16x32xbf16>,
    %105 = arith.extf %101 : vector<8x16x32xbf16> to vector<8x16x32xf32>
    %106 = vector.shape_cast %105 : vector<8x16x32xf32> to vector<128x32xf32>
    %cst_125 = arith.constant dense<0.000000e+00> : vector<32xf32>
    %107 = vector.multi_reduction <add>, %106, %cst_125 [0] : vector<128x32xf32> to vector<32xf32>
    %108 = vector.shape_cast %107 : vector<32xf32> to vector<1x32xf32>
    %109 = arith.mulf %106, %106 : vector<128x32xf32>
    %cst_126 = arith.constant dense<0.000000e+00> : vector<32xf32>
    %110 = vector.multi_reduction <add>, %109, %cst_126 [0] : vector<128x32xf32> to vector<32xf32>
    %111 = vector.shape_cast %110 : vector<32xf32> to vector<1x32xf32>
    %112 = tpu.concatenate %108, %111 in 0 : vector<1x32xf32>, vector<1x32xf32> -> vector<2x32xf32>
    %c0_127 = arith.constant 0 : index
    %c0_128 = arith.constant 0 : index
    %c0_129 = arith.constant 0 : index
    %c0_130 = arith.constant 0 : index
    %113 = vector.load %arg8[%c0_127, %c0_128, %c0_129, %c0_130] : memref<1x1x2x32xf32, #tpu.memory_space<vmem>>, vector<1x1x2x32xf32>
    %114 = vector.shape_cast %113 : vector<1x1x2x32xf32> to vector<2x32xf32>
    %115 = vector.shape_cast %112 : vector<2x32xf32> to vector<1x1x2x32xf32>
    tpu.vector_store %arg8[%c0_127, %c0_128, %c0_129, %c0_130], %115 {strides = array<i32>} : memref<1x1x2x32xf32, #tpu.memory_space<vmem>>, vector<1x1x2x32xf32>,
    return
  }
  func.func @transform_0(%arg0: i32, %arg1: i32) -> (i32, i32, i32, i32) {
    %c4_i32 = arith.constant 4 : i32
    %0 = arith.muli %arg1, %c4_i32 : i32
    %c1_i32 = arith.constant 1 : i32
    %1 = arith.subi %0, %c1_i32 : i32
    %c0_i32 = arith.constant 0 : i32
    %2 = arith.maxsi %1, %c0_i32 : i32
    %c0_i32_0 = arith.constant 0 : i32
    %c0_i32_1 = arith.constant 0 : i32
    %c0_i32_2 = arith.constant 0 : i32
    return %arg0, %2, %c0_i32_0, %c0_i32_1 : i32, i32, i32, i32
  }
  func.func @transform_1(%arg0: i32, %arg1: i32) -> (i32, i32, i32, i32) {
    %c0_i32 = arith.constant 0 : i32
    %c0_i32_0 = arith.constant 0 : i32
    %c0_i32_1 = arith.constant 0 : i32
    return %arg0, %arg1, %c0_i32, %c0_i32_0 : i32, i32, i32, i32
  }
  func.func @transform_2(%arg0: i32, %arg1: i32) -> (i32, i32, i32, i32) {
    %c1_i32 = arith.constant 1 : i32
    %0 = arith.addi %arg1, %c1_i32 : i32
    %c4_i32 = arith.constant 4 : i32
    %1 = arith.muli %0, %c4_i32 : i32
    %c7_i32 = arith.constant 7 : i32
    %2 = arith.minsi %1, %c7_i32 : i32
    %c0_i32 = arith.constant 0 : i32
    %c0_i32_0 = arith.constant 0 : i32
    %c0_i32_1 = arith.constant 0 : i32
    return %arg0, %2, %c0_i32, %c0_i32_0 : i32, i32, i32, i32
  }
  func.func @transform_3(%arg0: i32, %arg1: i32) -> (i32, i32, i32) {
    %c0_i32 = arith.constant 0 : i32
    %c0_i32_0 = arith.constant 0 : i32
    %c0_i32_1 = arith.constant 0 : i32
    %c0_i32_2 = arith.constant 0 : i32
    return %c0_i32, %c0_i32_0, %c0_i32_1 : i32, i32, i32
  }
  func.func @transform_4(%arg0: i32, %arg1: i32) -> (i32, i32) {
    %c0_i32 = arith.constant 0 : i32
    %c0_i32_0 = arith.constant 0 : i32
    %c0_i32_1 = arith.constant 0 : i32
    return %c0_i32, %c0_i32_0 : i32, i32
  }
  func.func @transform_5(%arg0: i32, %arg1: i32) -> (i32, i32, i32, i32) {
    %c0_i32 = arith.constant 0 : i32
    %c0_i32_0 = arith.constant 0 : i32
    %c0_i32_1 = arith.constant 0 : i32
    return %arg0, %arg1, %c0_i32, %c0_i32_0 : i32, i32, i32, i32
  }
  func.func @transform_6(%arg0: i32, %arg1: i32) -> (i32, i32, i32, i32) {
    %c0_i32 = arith.constant 0 : i32
    %c0_i32_0 = arith.constant 0 : i32
    %c0_i32_1 = arith.constant 0 : i32
    return %arg0, %arg1, %c0_i32, %c0_i32_0 : i32, i32, i32, i32
  }
}

</mosaic_0001>

<llo_original>
// kernel: tpu_custom_call.1
$region0: #{tpu_custom_call.1}
  #allocation0 [shape = 'u32[]', space=smem, size = 0x4, offset = 0x4, fixed_abs, tag = 'smem constant byte address 0x4 - core index']
  #allocation1 [shape = 'u32[144,128]{1,0:T(1,128)}', space=vmem, size = 0x12000, scoped, tag = 'internal scratch']
  #allocation2 [shape = 'bf16[12,16,96]{2,1,0:T(16,128)(2,1)}', space=vmem, size = 0xc000, scoped, tag = 'scratch operand']
  #allocation3 [shape = 'bf16[10,16,96]{2,1,0:T(16,128)(2,1)}', space=vmem, size = 0xa000, scoped, tag = 'scratch operand']
  %s0 = inlined_call_operand.hbm [shape: bf16[2,16,16,32], index: 0, kind: input, shape index: {}]
  %s1 = inlined_call_operand.hbm [shape: bf16[2,16,16,32], index: 1, kind: input, shape index: {}]
  %s2 = inlined_call_operand.hbm [shape: bf16[2,16,16,32], index: 2, kind: input, shape index: {}]
  %s3 = inlined_call_operand.vmem [shape: bf16[3,96,32], index: 3, kind: input, shape index: {}]
  %s4 = inlined_call_operand.vmem [shape: f32[1,32], index: 4, kind: input, shape index: {}]
  %s5 = inlined_call_operand.hbm [shape: bf16[2,16,16,32], index: 5, kind: output, shape index: {0}]
  %s6 = inlined_call_operand.hbm [shape: f32[2,2,2,32], index: 6, kind: output, shape index: {1}]
  %7 = xla_tuple %s5, %s6
  %s8 = sld [smem:[#allocation0]]
  $region89: #{tpu_custom_call.1} parent=0
    _
  %s10 = ssub.s32 1, %s8
  %s11 = scalar_select 0, %s10, %s8
  $region1: #{tpu_custom_call.1} parent=0
    #allocation4 [shape = 'u8[16384]{0}', space=vmem, size = 0x4000, scoped, tag = 'input window, operand 0']
    #allocation5 [shape = 's32[2]{0}', space=sflag, size = 0x8, scoped, tag = 'scoped memory for tpu_custom_call.1']
    #allocation6 [shape = 's32[2]{0}', space=sflag, size = 0x8, scoped, tag = 'scoped memory for tpu_custom_call.1']
    #allocation7 [shape = 'u8[65536]{0}', space=vmem, size = 0x10000, scoped, tag = 'input window, operand 1']
    #allocation8 [shape = 's32[2]{0}', space=sflag, size = 0x8, scoped, tag = 'scoped memory for tpu_custom_call.1']
    #allocation9 [shape = 'u8[16384]{0}', space=vmem, size = 0x4000, scoped, tag = 'input window, operand 2']
    #allocation10 [shape = 'u8[65536]{0}', space=vmem, size = 0x10000, scoped, tag = 'output window, operand 0']
    #allocation11 [shape = 'u8[2048]{0}', space=vmem, size = 0x800, scoped, tag = 'output window, operand 1']
    #allocation12 [shape = 's32[2]{0}', space=sflag, size = 0x8, scoped, tag = 'scoped memory for tpu_custom_call.1']
    %12 = vsyncpa [#allocation5], 0
    %s13 = scalar_lea.sflag [#allocation5], 1
    %14 = vsyncpa %s13, 0
    %15 = vsyncpa [#allocation8], 0
    %s16 = scalar_lea.sflag [#allocation8], 1
    %17 = vsyncpa %s16, 0
    %18 = vsyncpa [#allocation6], 0
    %s19 = scalar_lea.sflag [#allocation6], 1
    %20 = vsyncpa %s19, 0
    %21 = vsyncpa [#allocation12], 0
    %s22 = scalar_lea.sflag [#allocation12], 1
    %23 = vsyncpa %s22, 0
    loop: start=0, step=1, limit=6
    $region2: #{tpu_custom_call.1} parent=1 // loop_pre_header
      _
    $region3: #{tpu_custom_call.1} parent=1 // loop_header
      %s25 = sphi 0, %s29
      %p26 = scmp.ge.s32.totalorder %s25, 6
      %s32 = sphi 0, %s44
      %s33 = sphi 0, %s40
      %s34 = sphi 0, %s32
      %s35 = sphi 0, %s33
      %s36 = sphi 0, %s34
      %s37 = sphi 0, %s35
      %s57 = sphi 0, %s59
      %s60 = sphi 0, %s57
      %s61 = sphi 0, %s60
      %s77 = sphi 0, %s61
      %s85 = sphi 0, %s87
      %s88 = sphi 0, %s85
      %s89 = sphi 0, %s88
      %s105 = sphi 0, %s89
      %s121 = sphi 0, %s123
      %s124 = sphi 0, %s121
      %s125 = sphi 0, %s124
      %s141 = sphi 0, %s125
      %s145 = sphi 0, %s145
      %s147 = sphi 0, %s145
      %s148 = sphi 0, %s147
      %s162 = sphi 0, %s148
      %s166 = sphi 0, %s166
      %s168 = sphi 0, %s166
      %s169 = sphi 0, %s168
      %s183 = sphi 0, %s169
      %s191 = sphi 0, %s193
      %s194 = sphi 0, %s191
      %s195 = sphi 0, %s194
      %s211 = sphi 0, %s195
      %s219 = sphi 0, %s221
      %s222 = sphi 0, %s219
      %s223 = sphi 0, %s222
      %s239 = sphi 0, %s223
    $region4: #{tpu_custom_call.1} parent=1 // loop_header_branch
      %28 = sbr.rel (%p26) target = $region8
    $region5: #{tpu_custom_call.1} parent=1 // loop_body
      %s30 = ssub.s32 %s25, 1
      %s31 = ssub.s32 %s25, 2
      %s38 = sadd.s32 1, %s33
      %p39 = scmp.ge.s32.totalorder %s38, 2
      %s40 = scalar_select %p39, 0, %s38
      %s41 = sadd.s32 1, %s32
      %s42 = scalar_select %p39, %s41, %s32
      %p43 = scmp.ge.s32.totalorder %s42, 2
      %s44 = scalar_select %p43, 0, %s42
      %s45 = smul.u32 %s33, 4
      %s46 = ssub.s32 %s45, 1
      %p47 = scmp.gt.s32.totalorder %s46, 0
      %s48 = scalar_select %p47, %s46, 0
      %s49 = smul.u32 %s40, 4
      %s50 = ssub.s32 %s49, 1
      %p51 = scmp.gt.s32.totalorder %s50, 0
      %s52 = scalar_select %p51, %s50, 0
      %s53 = ssub.s32 %s32, %s44
      %s54 = ssub.s32 %s48, %s52
      %s55 = sor.u32 %s53, %s54
      %p56 = scmp.eq.s32.totalorder %s55, 0
      %s58 = sadd.s32 %s57, 1
      %s59 = scalar_select %p56, %s57, %s58
      %p62 = pneg %p56
      %p63 = scmp.eq.s32.totalorder %s25, 3
      %p64 = por %p62, %p63
      %p65 = scmp.ne.s32.totalorder %s57, %s60
      %p66 = scmp.eq.s32.totalorder %s25, 0
      %p67 = por %p65, %p66
      %p68 = scmp.ne.s32.totalorder %s57, %s60
      %p69 = scmp.eq.s32.totalorder %s30, 3
      %p70 = por %p68, %p69
      %p71 = scmp.ne.s32.totalorder %s60, %s61
      %p72 = scmp.eq.s32.totalorder %s30, 0
      %p73 = por %p71, %p72
      %p74 = scmp.ne.s32.totalorder %s60, %s61
      %p75 = scmp.eq.s32.totalorder %s31, 3
      %p76 = por %p74, %p75
      %p78 = scmp.ne.s32.totalorder %s61, %s77
      %p79 = scmp.eq.s32.totalorder %s31, 0
      %p80 = por %p78, %p79
      %s81 = ssub.s32 %s32, %s44
      %s82 = ssub.s32 %s33, %s40
      %s83 = sor.u32 %s81, %s82
      %p84 = scmp.eq.s32.totalorder %s83, 0
      %s86 = sadd.s32 %s85, 1
      %s87 = scalar_select %p84, %s85, %s86
      %p90 = pneg %p84
      %p91 = scmp.eq.s32.totalorder %s25, 3
      %p92 = por %p90, %p91
      %p93 = scmp.ne.s32.totalorder %s85, %s88
      %p94 = scmp.eq.s32.totalorder %s25, 0
      %p95 = por %p93, %p94
      %p96 = scmp.ne.s32.totalorder %s85, %s88
      %p97 = scmp.eq.s32.totalorder %s30, 3
      %p98 = por %p96, %p97
      %p99 = scmp.ne.s32.totalorder %s88, %s89
      %p100 = scmp.eq.s32.totalorder %s30, 0
      %p101 = por %p99, %p100
      %p102 = scmp.ne.s32.totalorder %s88, %s89
      %p103 = scmp.eq.s32.totalorder %s31, 3
      %p104 = por %p102, %p103
      %p106 = scmp.ne.s32.totalorder %s89, %s105
      %p107 = scmp.eq.s32.totalorder %s31, 0
      %p108 = por %p106, %p107
      %s109 = sadd.s32 %s33, 1
      %s110 = smul.u32 %s109, 4
      %p111 = scmp.lt.s32.totalorder %s110, 7
      %s112 = scalar_select %p111, %s110, 7
      %s113 = sadd.s32 %s40, 1
      %s114 = smul.u32 %s113, 4
      %p115 = scmp.lt.s32.totalorder %s114, 7
      %s116 = scalar_select %p115, %s114, 7
      %s117 = ssub.s32 %s32, %s44
      %s118 = ssub.s32 %s112, %s116
      %s119 = sor.u32 %s117, %s118
      %p120 = scmp.eq.s32.totalorder %s119, 0
      %s122 = sadd.s32 %s121, 1
      %s123 = scalar_select %p120, %s121, %s122
      %p126 = pneg %p120
      %p127 = scmp.eq.s32.totalorder %s25, 3
      %p128 = por %p126, %p127
      %p129 = scmp.ne.s32.totalorder %s121, %s124
      %p130 = scmp.eq.s32.totalorder %s25, 0
      %p131 = por %p129, %p130
      %p132 = scmp.ne.s32.totalorder %s121, %s124
      %p133 = scmp.eq.s32.totalorder %s30, 3
      %p134 = por %p132, %p133
      %p135 = scmp.ne.s32.totalorder %s124, %s125
      %p136 = scmp.eq.s32.totalorder %s30, 0
      %p137 = por %p135, %p136
      %p138 = scmp.ne.s32.totalorder %s124, %s125
      %p139 = scmp.eq.s32.totalorder %s31, 3
      %p140 = por %p138, %p139
      %p142 = scmp.ne.s32.totalorder %s125, %s141
      %p143 = scmp.eq.s32.totalorder %s31, 0
      %p144 = por %p142, %p143
      %s146 = sadd.s32 %s145, 1
      %p149 = scmp.eq.s32.totalorder %s25, 3
      %p150 = scmp.ne.s32.totalorder %s145, %s147
      %p151 = scmp.eq.s32.totalorder %s25, 0
      %p152 = por %p150, %p151
      %p153 = scmp.ne.s32.totalorder %s145, %s147
      %p154 = scmp.eq.s32.totalorder %s30, 3
      %p155 = por %p153, %p154
      %p156 = scmp.ne.s32.totalorder %s147, %s148
      %p157 = scmp.eq.s32.totalorder %s30, 0
      %p158 = por %p156, %p157
      %p159 = scmp.ne.s32.totalorder %s147, %s148
      %p160 = scmp.eq.s32.totalorder %s31, 3
      %p161 = por %p159, %p160
      %p163 = scmp.ne.s32.totalorder %s148, %s162
      %p164 = scmp.eq.s32.totalorder %s31, 0
      %p165 = por %p163, %p164
      %s167 = sadd.s32 %s166, 1
      %p170 = scmp.eq.s32.totalorder %s25, 3
      %p171 = scmp.ne.s32.totalorder %s166, %s168
      %p172 = scmp.eq.s32.totalorder %s25, 0
      %p173 = por %p171, %p172
      %p174 = scmp.ne.s32.totalorder %s166, %s168
      %p175 = scmp.eq.s32.totalorder %s30, 3
      %p176 = por %p174, %p175
      %p177 = scmp.ne.s32.totalorder %s168, %s169
      %p178 = scmp.eq.s32.totalorder %s30, 0
      %p179 = por %p177, %p178
      %p180 = scmp.ne.s32.totalorder %s168, %s169
      %p181 = scmp.eq.s32.totalorder %s31, 3
      %p182 = por %p180, %p181
      %p184 = scmp.ne.s32.totalorder %s169, %s183
      %p185 = scmp.eq.s32.totalorder %s31, 0
      %p186 = por %p184, %p185
      %s187 = ssub.s32 %s32, %s44
      %s188 = ssub.s32 %s33, %s40
      %s189 = sor.u32 %s187, %s188
      %p190 = scmp.eq.s32.totalorder %s189, 0
      %s192 = sadd.s32 %s191, 1
      %s193 = scalar_select %p190, %s191, %s192
      %p196 = pneg %p190
      %p197 = scmp.eq.s32.totalorder %s25, 3
      %p198 = por %p196, %p197
      %p199 = scmp.ne.s32.totalorder %s191, %s194
      %p200 = scmp.eq.s32.totalorder %s25, 0
      %p201 = por %p199, %p200
      %p202 = scmp.ne.s32.totalorder %s191, %s194
      %p203 = scmp.eq.s32.totalorder %s30, 3
      %p204 = por %p202, %p203
      %p205 = scmp.ne.s32.totalorder %s194, %s195
      %p206 = scmp.eq.s32.totalorder %s30, 0
      %p207 = por %p205, %p206
      %p208 = scmp.ne.s32.totalorder %s194, %s195
      %p209 = scmp.eq.s32.totalorder %s31, 3
      %p210 = por %p208, %p209
      %p212 = scmp.ne.s32.totalorder %s195, %s211
      %p213 = scmp.eq.s32.totalorder %s31, 0
      %p214 = por %p212, %p213
      %s215 = ssub.s32 %s32, %s44
      %s216 = ssub.s32 %s33, %s40
      %s217 = sor.u32 %s215, %s216
      %p218 = scmp.eq.s32.totalorder %s217, 0
      %s220 = sadd.s32 %s219, 1
      %s221 = scalar_select %p218, %s219, %s220
      %p224 = pneg %p218
      %p225 = scmp.eq.s32.totalorder %s25, 3
      %p226 = por %p224, %p225
      %p227 = scmp.ne.s32.totalorder %s219, %s222
      %p228 = scmp.eq.s32.totalorder %s25, 0
      %p229 = por %p227, %p228
      %p230 = scmp.ne.s32.totalorder %s219, %s222
      %p231 = scmp.eq.s32.totalorder %s30, 3
      %p232 = por %p230, %p231
      %p233 = scmp.ne.s32.totalorder %s222, %s223
      %p234 = scmp.eq.s32.totalorder %s30, 0
      %p235 = por %p233, %p234
      %p236 = scmp.ne.s32.totalorder %s222, %s223
      %p237 = scmp.eq.s32.totalorder %s31, 3
      %p238 = por %p236, %p237
      %p240 = scmp.ne.s32.totalorder %s223, %s239
      %p241 = scmp.eq.s32.totalorder %s31, 0
      %p242 = por %p240, %p241
      %p243 = scmp.le.s32.totalorder 1, %s25
      %p244 = scmp.lt.s32.totalorder %s25, 5
      %p245 = pnand %p243, %p244
      %p246 = pneg %p245
      // Predicated region
      $region9: #{tpu_custom_call.1} parent=5 // pred_check
        _
      $region10: #{tpu_custom_call.1} parent=5 // pred_check_branch
        %248 = sbr.rel (%p245) target = $region12
      $region11: #{tpu_custom_call.1} parent=5 // pred_region
        %s249 = ssub.s32 %s25, 1
        // Predicated region
        $region13: #{tpu_custom_call.1} parent=11 // pred_check
          %p250 = pneg %p158
        $region14: #{tpu_custom_call.1} parent=11 // pred_check_branch
          %252 = sbr.rel (%p250) target = $region16
        $region15: #{tpu_custom_call.1} parent=11 // pred_region
          _
        $region16: #{tpu_custom_call.1} parent=11 // pred_fallthru
          _
        // Predicated region
        $region17: #{tpu_custom_call.1} parent=11 // pred_check
          %p253 = pneg %p179
        $region18: #{tpu_custom_call.1} parent=11 // pred_check_branch
          %255 = sbr.rel (%p253) target = $region20
        $region19: #{tpu_custom_call.1} parent=11 // pred_region
          _
        $region20: #{tpu_custom_call.1} parent=11 // pred_fallthru
          _
      $region12: #{tpu_custom_call.1} parent=5 // pred_fallthru
        _
      %p256 = scmp.lt.s32.totalorder %s25, 4
      // Predicated region
      $region21: #{tpu_custom_call.1} parent=5 // pred_check
        %p257 = pneg %p256
      $region22: #{tpu_custom_call.1} parent=5 // pred_check_branch
        %259 = sbr.rel (%p257) target = $region24
      $region23: #{tpu_custom_call.1} parent=5 // pred_region
        // Predicated region
        $region25: #{tpu_custom_call.1} parent=23 // pred_check
          %p260 = pneg %p67
        $region26: #{tpu_custom_call.1} parent=23 // pred_check_branch
          %262 = sbr.rel (%p260) target = $region28
        $region27: #{tpu_custom_call.1} parent=23 // pred_region
          %s263 = sand.u32 %s57, 1
          %s264 = scalar_lea.sflag [#allocation5], %s263
          %s265 = sand.u32 %s57, 1
          %s266 = smul.addr %s265, 16
          %s267 = scalar_lea.vmem [#allocation4], %s266
          %s268 = smul.u32 %s33, 4
          %s269 = ssub.s32 %s268, 1
          %p270 = scmp.gt.s32.totalorder %s269, 0
          %s271 = scalar_select %p270, %s269, 0
          %s272 = smul.u32 2, %s271
          %s274 = ssub.s32 256, 256
          %275 = vsyncadd %s264, %s274
          %s276 = smul.addr %s272, 2
          %s277 = smul.addr %s32, 32
          %s278 = sadd.s32 %s276, %s277
          %s279 = smul.addr %s278, 64
          %s280 = scalar_lea.hbm %s0, %s279
          %s281 = sshll.u32 %s267, 4
          %s282 = int_to_ptr.vmem [resolvable:$true] %s281
          %287 = dma.hbm_to_vmem [thread:$0]  %s280, 256, %s282, %s264, 64, 64, 4
        $region28: #{tpu_custom_call.1} parent=23 // pred_fallthru
          _
        // Predicated region
        $region29: #{tpu_custom_call.1} parent=23 // pred_check
          %p288 = pneg %p95
        $region30: #{tpu_custom_call.1} parent=23 // pred_check_branch
          %290 = sbr.rel (%p288) target = $region32
        $region31: #{tpu_custom_call.1} parent=23 // pred_region
          %s291 = sand.u32 %s25, 1
          %s292 = scalar_lea.sflag [#allocation8], %s291
          %s293 = sand.u32 %s85, 1
          %s294 = smul.addr %s293, 64
          %s295 = scalar_lea.vmem [#allocation7], %s294
          %s296 = smul.u32 8, %s33
          %s298 = ssub.s32 1024, 1024
          %299 = vsyncadd %s292, %s298
          %s300 = smul.addr %s296, 2
          %s301 = smul.addr %s32, 32
          %s302 = sadd.s32 %s300, %s301
          %s303 = smul.addr %s302, 64
          %s304 = scalar_lea.hbm %s1, %s303
          %s305 = sshll.u32 %s295, 4
          %s306 = int_to_ptr.vmem [resolvable:$true] %s305
          %311 = dma.hbm_to_vmem [thread:$0]  %s304, 1024, %s306, %s292, 64, 64, 4
        $region32: #{tpu_custom_call.1} parent=23 // pred_fallthru
          _
        // Predicated region
        $region33: #{tpu_custom_call.1} parent=23 // pred_check
          %p312 = pneg %p131
        $region34: #{tpu_custom_call.1} parent=23 // pred_check_branch
          %314 = sbr.rel (%p312) target = $region36
        $region35: #{tpu_custom_call.1} parent=23 // pred_region
          %s315 = sand.u32 %s25, 1
          %s316 = scalar_lea.sflag [#allocation8], %s315
          %s317 = sand.u32 %s121, 1
          %s318 = smul.addr %s317, 16
          %s319 = scalar_lea.vmem [#allocation9], %s318
          %s320 = sadd.s32 %s33, 1
          %s321 = smul.u32 %s320, 4
          %p322 = scmp.lt.s32.totalorder %s321, 7
          %s323 = scalar_select %p322, %s321, 7
          %s324 = smul.u32 2, %s323
          %s326 = ssub.s32 256, 256
          %327 = vsyncadd %s316, %s326
          %s328 = smul.addr %s324, 2
          %s329 = smul.addr %s32, 32
          %s330 = sadd.s32 %s328, %s329
          %s331 = smul.addr %s330, 64
          %s332 = scalar_lea.hbm %s2, %s331
          %s333 = sshll.u32 %s319, 4
          %s334 = int_to_ptr.vmem [resolvable:$true] %s333
          %339 = dma.hbm_to_vmem [thread:$0]  %s332, 256, %s334, %s316, 64, 64, 4
        $region36: #{tpu_custom_call.1} parent=23 // pred_fallthru
          _
      $region24: #{tpu_custom_call.1} parent=5 // pred_fallthru
        _
      %p340 = scmp.le.s32.totalorder 1, %s25
      %p341 = scmp.lt.s32.totalorder %s25, 5
      %p342 = pnand %p340, %p341
      %p343 = pneg %p342
      // Predicated region
      $region37: #{tpu_custom_call.1} parent=5 // pred_check
        _
      $region38: #{tpu_custom_call.1} parent=5 // pred_check_branch
        %345 = sbr.rel (%p342) target = $region40
      $region39: #{tpu_custom_call.1} parent=5 // pred_region
        %s346 = ssub.s32 %s25, 1
        %s347 = sand.u32 %s60, 1
        %s348 = scalar_lea.sflag [#allocation5], %s347
        %s349 = sand.u32 %s60, 1
        %s350 = smul.addr %s349, 16
        %s351 = scalar_lea.vmem [#allocation4], %s350
        // Predicated region
        $region41: #{tpu_custom_call.1} parent=39 // pred_check
          %p352 = pneg %p73
        $region42: #{tpu_custom_call.1} parent=39 // pred_check_branch
          %354 = sbr.rel (%p352) target = $region44
        $region43: #{tpu_custom_call.1} parent=39 // pred_region
          %355 = dma.done %s348, 256
        $region44: #{tpu_custom_call.1} parent=39 // pred_fallthru
          _
        %s356 = sand.u32 %s30, 1
        %s357 = scalar_lea.sflag [#allocation8], %s356
        %s358 = sand.u32 %s88, 1
        %s359 = smul.addr %s358, 64
        %s360 = scalar_lea.vmem [#allocation7], %s359
        // Predicated region
        $region45: #{tpu_custom_call.1} parent=39 // pred_check
          %p361 = pneg %p101
        $region46: #{tpu_custom_call.1} parent=39 // pred_check_branch
          %363 = sbr.rel (%p361) target = $region48
        $region47: #{tpu_custom_call.1} parent=39 // pred_region
          %364 = dma.done %s357, 1024
        $region48: #{tpu_custom_call.1} parent=39 // pred_fallthru
          _
        %s365 = sand.u32 %s30, 1
        %s366 = scalar_lea.sflag [#allocation8], %s365
        %s367 = sand.u32 %s124, 1
        %s368 = smul.addr %s367, 16
        %s369 = scalar_lea.vmem [#allocation9], %s368
        // Predicated region
        $region49: #{tpu_custom_call.1} parent=39 // pred_check
          %p370 = pneg %p137
        $region50: #{tpu_custom_call.1} parent=39 // pred_check_branch
          %372 = sbr.rel (%p370) target = $region52
        $region51: #{tpu_custom_call.1} parent=39 // pred_region
          %373 = dma.done %s366, 256
        $region52: #{tpu_custom_call.1} parent=39 // pred_fallthru
          _
        %s374 = sand.u32 %s60, 1
        %s375 = scalar_lea.sflag [#allocation5], %s374
        %s376 = sand.u32 %s60, 1
        %s377 = smul.addr %s376, 16
        %s378 = scalar_lea.vmem [#allocation4], %s377
        %p379 = pneg %p73
        %p380 = pneg %p70
        %s381 = sand.u32 %s30, 1
        %s382 = scalar_lea.sflag [#allocation8], %s381
        %s383 = sand.u32 %s88, 1
        %s384 = smul.addr %s383, 64
        %s385 = scalar_lea.vmem [#allocation7], %s384
        %p386 = pneg %p101
        %p387 = pneg %p98
        %s388 = sand.u32 %s30, 1
        %s389 = scalar_lea.sflag [#allocation8], %s388
        %s390 = sand.u32 %s124, 1
        %s391 = smul.addr %s390, 16
        %s392 = scalar_lea.vmem [#allocation9], %s391
        %p393 = pneg %p137
        %p394 = pneg %p134
        %p395 = pneg %p158
        %p396 = pneg %p155
        %p397 = pneg %p179
        %p398 = pneg %p176
        %p399 = pneg %p207
        %p400 = pneg %p204
        %s401 = sand.u32 %s194, 1
        %s402 = scalar_lea.sflag [#allocation6], %s401
        %s403 = sand.u32 %s194, 1
        %s404 = smul.addr %s403, 64
        %s405 = scalar_lea.vmem [#allocation10], %s404
        %p406 = pneg %p235
        %p407 = pneg %p232
        %s408 = sand.u32 %s222, 1
        %s409 = scalar_lea.sflag [#allocation12], %s408
        %s410 = sand.u32 %s222, 1
        %s411 = smul.addr %s410, 2
        %s412 = scalar_lea.vmem [#allocation11], %s411
        %s413 = smul.u32 %s35, 4
        %s414 = ssub.s32 %s413, 1
        %p415 = scmp.gt.s32.totalorder %s414, 0
        %s416 = scalar_select %p415, %s414, 0
        %s417 = smul.u32 2, %s416
        %s418 = smul.u32 8, %s35
        %s419 = sadd.s32 %s35, 1
        %s420 = smul.u32 %s419, 4
        %p421 = scmp.lt.s32.totalorder %s420, 7
        %s422 = scalar_select %p421, %s420, 7
        %s423 = smul.u32 2, %s422
        %s424 = smul.u32 8, %s35
        %v426 = vld [vmem:[%s351] sm:$0xf]
        %v427 = vld [vmem:[%s351 + $0x4] sm:$0xf]
        %v428 = vld [vmem:[%s351 + $0x8] sm:$0xf]
        %v429 = vld [vmem:[%s351 + $0xc] sm:$0xf]
        %vm430 = vcmask 253952
        %vm431 = vsmask.f32 256
        %vm432 = vmand %vm430, %vm431
        %v433 = vld [vmem:[#allocation2] sm:$0x1]
        %v434 = vsel %vm432, 0, %v433
        %435 = vst [vmem:[#allocation2] sm:$0x1] %v434
        %v436 = vld [vmem:[#allocation2 + $0x8] sm:$0x1]
        %v437 = vsel %vm432, 0, %v436
        %438 = vst [vmem:[#allocation2 + $0x8] sm:$0x1] %v437
        %v443 = vunpack.c.l.b16 %v426
        %v444 = vunpack.c.l.b16 %v427
        %v445 = vunpack.c.l.b16 %v428
        %v446 = vunpack.c.l.b16 %v429
        %v447 = vpack.c.b16 %v444, %v443
        %v448 = vpack.c.b16 %v446, %v445
        %v450 = vshrl.u32 %v447, 16
        %v452 = vrot.slane %v450, 7
        %v453 = vshll.u32 %v447, 16
        %v455 = vor.u32 %v452, %v453
        %v457 = vshrl.u32 %v448, 16
        %v459 = vrot.slane %v457, 7
        %v460 = vshll.u32 %v448, 16
        %v462 = vor.u32 %v459, %v460
        %vm465 = vcmask 261120
        %vm466 = vsmask.f32 7938
        %vm467 = vmand %vm465, %vm466
        %v468 = vld [vmem:[#allocation2] sm:$0xff]
        %v469 = vsel %vm467, %v455, %v468
        %470 = vst [vmem:[#allocation2] sm:$0xff] %v469
        %v471 = vld [vmem:[#allocation2 + $0x8] sm:$0xff]
        %v472 = vsel %vm467, %v462, %v471
        %473 = vst [vmem:[#allocation2 + $0x8] sm:$0xff] %v472
        %474 = vrot.lane.b32.xlu0 %v447, 32
        %v475 = vpop.permute.xlu0 %474
        %476 = vrot.lane.b32.xlu0 %v448, 32
        %v477 = vpop.permute.xlu0 %476
        %vm480 = vcmask 523520
        %481 = vst.msk [vmem:[#allocation2] sm:$0xff] %vm480, %v475
        %482 = vst.msk [vmem:[#allocation2 + $0x8] sm:$0xff] %vm480, %v477
        %v483 = vrot.slane %v453, 1
        %v484 = vor.u32 %v450, %v483
        %v485 = vrot.slane %v460, 1
        %v486 = vor.u32 %v457, %v485
        %487 = vrot.lane.b32.xlu0 %v484, 64
        %v488 = vpop.permute.xlu0 %487
        %489 = vrot.lane.b32.xlu0 %v486, 64
        %v490 = vpop.permute.xlu0 %489
        %vm493 = vcmask 785920
        %vm494 = vsmask.f32 7424
        %vm495 = vmand %vm493, %vm494
        %v496 = vld [vmem:[#allocation2] sm:$0xff]
        %v497 = vsel %vm495, %v488, %v496
        %498 = vst [vmem:[#allocation2] sm:$0xff] %v497
        %v499 = vld [vmem:[#allocation2 + $0x8] sm:$0xff]
        %v500 = vsel %vm495, %v490, %v499
        %501 = vst [vmem:[#allocation2 + $0x8] sm:$0xff] %v500
        %vm502 = vcmask 785927
        %vm503 = vsmask.f32 7966
        %vm504 = vmand %vm502, %vm503
        %v505 = vld [vmem:[#allocation2] sm:$0x80]
        %v506 = vsel %vm504, 0, %v505
        %507 = vst [vmem:[#allocation2] sm:$0x80] %v506
        %v508 = vld [vmem:[#allocation2 + $0x8] sm:$0x80]
        %v509 = vsel %vm504, 0, %v508
        %510 = vst [vmem:[#allocation2 + $0x8] sm:$0x80] %v509
        %v511 = vld [vmem:[%s360] sm:$0xf]
        %v512 = vld [vmem:[%s360 + $0x4] sm:$0xf]
        %v513 = vld [vmem:[%s360 + $0x8] sm:$0xf]
        %v514 = vld [vmem:[%s360 + $0xc] sm:$0xf]
        %v515 = vld [vmem:[%s360 + $0x10] sm:$0xf]
        %v516 = vld [vmem:[%s360 + $0x14] sm:$0xf]
        %v517 = vld [vmem:[%s360 + $0x18] sm:$0xf]
        %v518 = vld [vmem:[%s360 + $0x1c] sm:$0xf]
        %v519 = vld [vmem:[%s360 + $0x20] sm:$0xf]
        %v520 = vld [vmem:[%s360 + $0x24] sm:$0xf]
        %v521 = vld [vmem:[%s360 + $0x28] sm:$0xf]
        %v522 = vld [vmem:[%s360 + $0x2c] sm:$0xf]
        %v523 = vld [vmem:[%s360 + $0x30] sm:$0xf]
        %v524 = vld [vmem:[%s360 + $0x34] sm:$0xf]
        %v525 = vld [vmem:[%s360 + $0x38] sm:$0xf]
        %v526 = vld [vmem:[%s360 + $0x3c] sm:$0xf]
        %s527 = scalar_lea.vmem [#allocation2], 16
        %v528 = vld [vmem:[%s527] sm:$0x1]
        %v529 = vsel %vm432, 0, %v528
        %530 = vst [vmem:[%s527] sm:$0x1] %v529
        %v531 = vld [vmem:[%s527 + $0x8] sm:$0x1]
        %v532 = vsel %vm432, 0, %v531
        %533 = vst [vmem:[%s527 + $0x8] sm:$0x1] %v532
        %v534 = vld [vmem:[%s527 + $0x10] sm:$0x1]
        %v535 = vsel %vm432, 0, %v534
        %536 = vst [vmem:[%s527 + $0x10] sm:$0x1] %v535
        %v537 = vld [vmem:[%s527 + $0x18] sm:$0x1]
        %v538 = vsel %vm432, 0, %v537
        %539 = vst [vmem:[%s527 + $0x18] sm:$0x1] %v538
        %v540 = vld [vmem:[%s527 + $0x20] sm:$0x1]
        %v541 = vsel %vm432, 0, %v540
        %542 = vst [vmem:[%s527 + $0x20] sm:$0x1] %v541
        %v543 = vld [vmem:[%s527 + $0x28] sm:$0x1]
        %v544 = vsel %vm432, 0, %v543
        %545 = vst [vmem:[%s527 + $0x28] sm:$0x1] %v544
        %v546 = vld [vmem:[%s527 + $0x30] sm:$0x1]
        %v547 = vsel %vm432, 0, %v546
        %548 = vst [vmem:[%s527 + $0x30] sm:$0x1] %v547
        %v549 = vld [vmem:[%s527 + $0x38] sm:$0x1]
        %v550 = vsel %vm432, 0, %v549
        %551 = vst [vmem:[%s527 + $0x38] sm:$0x1] %v550
        %v568 = vunpack.c.l.b16 %v511
        %v569 = vunpack.c.l.b16 %v512
        %v570 = vunpack.c.l.b16 %v513
        %v571 = vunpack.c.l.b16 %v514
        %v572 = vunpack.c.l.b16 %v515
        %v573 = vunpack.c.l.b16 %v516
        %v574 = vunpack.c.l.b16 %v517
        %v575 = vunpack.c.l.b16 %v518
        %v576 = vunpack.c.l.b16 %v519
        %v577 = vunpack.c.l.b16 %v520
        %v578 = vunpack.c.l.b16 %v521
        %v579 = vunpack.c.l.b16 %v522
        %v580 = vunpack.c.l.b16 %v523
        %v581 = vunpack.c.l.b16 %v524
        %v582 = vunpack.c.l.b16 %v525
        %v583 = vunpack.c.l.b16 %v526
        %v584 = vpack.c.b16 %v569, %v568
        %v585 = vpack.c.b16 %v571, %v570
        %v586 = vpack.c.b16 %v573, %v572
        %v587 = vpack.c.b16 %v575, %v574
        %v588 = vpack.c.b16 %v577, %v576
        %v589 = vpack.c.b16 %v579, %v578
        %v590 = vpack.c.b16 %v581, %v580
        %v591 = vpack.c.b16 %v583, %v582
        %v593 = vshrl.u32 %v584, 16
        %v595 = vrot.slane %v593, 7
        %v596 = vshll.u32 %v584, 16
        %v598 = vor.u32 %v595, %v596
        %v600 = vshrl.u32 %v585, 16
        %v602 = vrot.slane %v600, 7
        %v603 = vshll.u32 %v585, 16
        %v605 = vor.u32 %v602, %v603
        %v607 = vshrl.u32 %v586, 16
        %v609 = vrot.slane %v607, 7
        %v610 = vshll.u32 %v586, 16
        %v612 = vor.u32 %v609, %v610
        %v614 = vshrl.u32 %v587, 16
        %v616 = vrot.slane %v614, 7
        %v617 = vshll.u32 %v587, 16
        %v619 = vor.u32 %v616, %v617
        %v621 = vshrl.u32 %v588, 16
        %v623 = vrot.slane %v621, 7
        %v624 = vshll.u32 %v588, 16
        %v626 = vor.u32 %v623, %v624
        %v628 = vshrl.u32 %v589, 16
        %v630 = vrot.slane %v628, 7
        %v631 = vshll.u32 %v589, 16
        %v633 = vor.u32 %v630, %v631
        %v635 = vshrl.u32 %v590, 16
        %v637 = vrot.slane %v635, 7
        %v638 = vshll.u32 %v590, 16
        %v640 = vor.u32 %v637, %v638
        %v642 = vshrl.u32 %v591, 16
        %v644 = vrot.slane %v642, 7
        %v645 = vshll.u32 %v591, 16
        %v647 = vor.u32 %v644, %v645
        %v656 = vld [vmem:[%s527] sm:$0xff]
        %v657 = vsel %vm467, %v598, %v656
        %658 = vst [vmem:[%s527] sm:$0xff] %v657
        %v659 = vld [vmem:[%s527 + $0x8] sm:$0xff]
        %v660 = vsel %vm467, %v605, %v659
        %661 = vst [vmem:[%s527 + $0x8] sm:$0xff] %v660
        %v662 = vld [vmem:[%s527 + $0x10] sm:$0xff]
        %v663 = vsel %vm467, %v612, %v662
        %664 = vst [vmem:[%s527 + $0x10] sm:$0xff] %v663
        %v665 = vld [vmem:[%s527 + $0x18] sm:$0xff]
        %v666 = vsel %vm467, %v619, %v665
        %667 = vst [vmem:[%s527 + $0x18] sm:$0xff] %v666
        %v668 = vld [vmem:[%s527 + $0x20] sm:$0xff]
        %v669 = vsel %vm467, %v626, %v668
        %670 = vst [vmem:[%s527 + $0x20] sm:$0xff] %v669
        %v671 = vld [vmem:[%s527 + $0x28] sm:$0xff]
        %v672 = vsel %vm467, %v633, %v671
        %673 = vst [vmem:[%s527 + $0x28] sm:$0xff] %v672
        %v674 = vld [vmem:[%s527 + $0x30] sm:$0xff]
        %v675 = vsel %vm467, %v640, %v674
        %676 = vst [vmem:[%s527 + $0x30] sm:$0xff] %v675
        %v677 = vld [vmem:[%s527 + $0x38] sm:$0xff]
        %v678 = vsel %vm467, %v647, %v677
        %679 = vst [vmem:[%s527 + $0x38] sm:$0xff] %v678
        %680 = vrot.lane.b32.xlu0 %v584, 32
        %v681 = vpop.permute.xlu0 %680
        %682 = vrot.lane.b32.xlu0 %v585, 32
        %v683 = vpop.permute.xlu0 %682
        %684 = vrot.lane.b32.xlu0 %v586, 32
        %v685 = vpop.permute.xlu0 %684
        %686 = vrot.lane.b32.xlu0 %v587, 32
        %v687 = vpop.permute.xlu0 %686
        %688 = vrot.lane.b32.xlu0 %v588, 32
        %v689 = vpop.permute.xlu0 %688
        %690 = vrot.lane.b32.xlu0 %v589, 32
        %v691 = vpop.permute.xlu0 %690
        %692 = vrot.lane.b32.xlu0 %v590, 32
        %v693 = vpop.permute.xlu0 %692
        %694 = vrot.lane.b32.xlu0 %v591, 32
        %v695 = vpop.permute.xlu0 %694
        %704 = vst.msk [vmem:[%s527] sm:$0xff] %vm480, %v681
        %705 = vst.msk [vmem:[%s527 + $0x8] sm:$0xff] %vm480, %v683
        %706 = vst.msk [vmem:[%s527 + $0x10] sm:$0xff] %vm480, %v685
        %707 = vst.msk [vmem:[%s527 + $0x18] sm:$0xff] %vm480, %v687
        %708 = vst.msk [vmem:[%s527 + $0x20] sm:$0xff] %vm480, %v689
        %709 = vst.msk [vmem:[%s527 + $0x28] sm:$0xff] %vm480, %v691
        %710 = vst.msk [vmem:[%s527 + $0x30] sm:$0xff] %vm480, %v693
        %711 = vst.msk [vmem:[%s527 + $0x38] sm:$0xff] %vm480, %v695
        %v712 = vrot.slane %v596, 1
        %v713 = vor.u32 %v593, %v712
        %v714 = vrot.slane %v603, 1
        %v715 = vor.u32 %v600, %v714
        %v716 = vrot.slane %v610, 1
        %v717 = vor.u32 %v607, %v716
        %v718 = vrot.slane %v617, 1
        %v719 = vor.u32 %v614, %v718
        %v720 = vrot.slane %v624, 1
        %v721 = vor.u32 %v621, %v720
        %v722 = vrot.slane %v631, 1
        %v723 = vor.u32 %v628, %v722
        %v724 = vrot.slane %v638, 1
        %v725 = vor.u32 %v635, %v724
        %v726 = vrot.slane %v645, 1
        %v727 = vor.u32 %v642, %v726
        %728 = vrot.lane.b32.xlu0 %v713, 64
        %v729 = vpop.permute.xlu0 %728
        %730 = vrot.lane.b32.xlu0 %v715, 64
        %v731 = vpop.permute.xlu0 %730
        %732 = vrot.lane.b32.xlu0 %v717, 64
        %v733 = vpop.permute.xlu0 %732
        %734 = vrot.lane.b32.xlu0 %v719, 64
        %v735 = vpop.permute.xlu0 %734
        %736 = vrot.lane.b32.xlu0 %v721, 64
        %v737 = vpop.permute.xlu0 %736
        %738 = vrot.lane.b32.xlu0 %v723, 64
        %v739 = vpop.permute.xlu0 %738
        %740 = vrot.lane.b32.xlu0 %v725, 64
        %v741 = vpop.permute.xlu0 %740
        %742 = vrot.lane.b32.xlu0 %v727, 64
        %v743 = vpop.permute.xlu0 %742
        %v752 = vld [vmem:[%s527] sm:$0xff]
        %v753 = vsel %vm495, %v729, %v752
        %754 = vst [vmem:[%s527] sm:$0xff] %v753
        %v755 = vld [vmem:[%s527 + $0x8] sm:$0xff]
        %v756 = vsel %vm495, %v731, %v755
        %757 = vst [vmem:[%s527 + $0x8] sm:$0xff] %v756
        %v758 = vld [vmem:[%s527 + $0x10] sm:$0xff]
        %v759 = vsel %vm495, %v733, %v758
        %760 = vst [vmem:[%s527 + $0x10] sm:$0xff] %v759
        %v761 = vld [vmem:[%s527 + $0x18] sm:$0xff]
        %v762 = vsel %vm495, %v735, %v761
        %763 = vst [vmem:[%s527 + $0x18] sm:$0xff] %v762
        %v764 = vld [vmem:[%s527 + $0x20] sm:$0xff]
        %v765 = vsel %vm495, %v737, %v764
        %766 = vst [vmem:[%s527 + $0x20] sm:$0xff] %v765
        %v767 = vld [vmem:[%s527 + $0x28] sm:$0xff]
        %v768 = vsel %vm495, %v739, %v767
        %769 = vst [vmem:[%s527 + $0x28] sm:$0xff] %v768
        %v770 = vld [vmem:[%s527 + $0x30] sm:$0xff]
        %v771 = vsel %vm495, %v741, %v770
        %772 = vst [vmem:[%s527 + $0x30] sm:$0xff] %v771
        %v773 = vld [vmem:[%s527 + $0x38] sm:$0xff]
        %v774 = vsel %vm495, %v743, %v773
        %775 = vst [vmem:[%s527 + $0x38] sm:$0xff] %v774
        %v776 = vld [vmem:[%s527] sm:$0x80]
        %v777 = vsel %vm504, 0, %v776
        %778 = vst [vmem:[%s527] sm:$0x80] %v777
        %v779 = vld [vmem:[%s527 + $0x8] sm:$0x80]
        %v780 = vsel %vm504, 0, %v779
        %781 = vst [vmem:[%s527 + $0x8] sm:$0x80] %v780
        %v782 = vld [vmem:[%s527 + $0x10] sm:$0x80]
        %v783 = vsel %vm504, 0, %v782
        %784 = vst [vmem:[%s527 + $0x10] sm:$0x80] %v783
        %v785 = vld [vmem:[%s527 + $0x18] sm:$0x80]
        %v786 = vsel %vm504, 0, %v785
        %787 = vst [vmem:[%s527 + $0x18] sm:$0x80] %v786
        %v788 = vld [vmem:[%s527 + $0x20] sm:$0x80]
        %v789 = vsel %vm504, 0, %v788
        %790 = vst [vmem:[%s527 + $0x20] sm:$0x80] %v789
        %v791 = vld [vmem:[%s527 + $0x28] sm:$0x80]
        %v792 = vsel %vm504, 0, %v791
        %793 = vst [vmem:[%s527 + $0x28] sm:$0x80] %v792
        %v794 = vld [vmem:[%s527 + $0x30] sm:$0x80]
        %v795 = vsel %vm504, 0, %v794
        %796 = vst [vmem:[%s527 + $0x30] sm:$0x80] %v795
        %v797 = vld [vmem:[%s527 + $0x38] sm:$0x80]
        %v798 = vsel %vm504, 0, %v797
        %799 = vst [vmem:[%s527 + $0x38] sm:$0x80] %v798
        %v800 = vld [vmem:[%s369] sm:$0xf]
        %v801 = vld [vmem:[%s369 + $0x4] sm:$0xf]
        %v802 = vld [vmem:[%s369 + $0x8] sm:$0xf]
        %v803 = vld [vmem:[%s369 + $0xc] sm:$0xf]
        %s804 = scalar_lea.vmem [#allocation2], 80
        %v805 = vld [vmem:[%s804] sm:$0x1]
        %v806 = vsel %vm432, 0, %v805
        %807 = vst [vmem:[%s804] sm:$0x1] %v806
        %v808 = vld [vmem:[%s804 + $0x8] sm:$0x1]
        %v809 = vsel %vm432, 0, %v808
        %810 = vst [vmem:[%s804 + $0x8] sm:$0x1] %v809
        %v815 = vunpack.c.l.b16 %v800
        %v816 = vunpack.c.l.b16 %v801
        %v817 = vunpack.c.l.b16 %v802
        %v818 = vunpack.c.l.b16 %v803
        %v819 = vpack.c.b16 %v816, %v815
        %v820 = vpack.c.b16 %v818, %v817
        %v822 = vshrl.u32 %v819, 16
        %v824 = vrot.slane %v822, 7
        %v825 = vshll.u32 %v819, 16
        %v827 = vor.u32 %v824, %v825
        %v829 = vshrl.u32 %v820, 16
        %v831 = vrot.slane %v829, 7
        %v832 = vshll.u32 %v820, 16
        %v834 = vor.u32 %v831, %v832
        %v837 = vld [vmem:[%s804] sm:$0xff]
        %v838 = vsel %vm467, %v827, %v837
        %839 = vst [vmem:[%s804] sm:$0xff] %v838
        %v840 = vld [vmem:[%s804 + $0x8] sm:$0xff]
        %v841 = vsel %vm467, %v834, %v840
        %842 = vst [vmem:[%s804 + $0x8] sm:$0xff] %v841
        %843 = vrot.lane.b32.xlu0 %v819, 32
        %v844 = vpop.permute.xlu0 %843
        %845 = vrot.lane.b32.xlu0 %v820, 32
        %v846 = vpop.permute.xlu0 %845
        %849 = vst.msk [vmem:[%s804] sm:$0xff] %vm480, %v844
        %850 = vst.msk [vmem:[%s804 + $0x8] sm:$0xff] %vm480, %v846
        %v851 = vrot.slane %v825, 1
        %v852 = vor.u32 %v822, %v851
        %v853 = vrot.slane %v832, 1
        %v854 = vor.u32 %v829, %v853
        %855 = vrot.lane.b32.xlu0 %v852, 64
        %v856 = vpop.permute.xlu0 %855
        %857 = vrot.lane.b32.xlu0 %v854, 64
        %v858 = vpop.permute.xlu0 %857
        %v861 = vld [vmem:[%s804] sm:$0xff]
        %v862 = vsel %vm495, %v856, %v861
        %863 = vst [vmem:[%s804] sm:$0xff] %v862
        %v864 = vld [vmem:[%s804 + $0x8] sm:$0xff]
        %v865 = vsel %vm495, %v858, %v864
        %866 = vst [vmem:[%s804 + $0x8] sm:$0xff] %v865
        %v867 = vld [vmem:[%s804] sm:$0x80]
        %v868 = vsel %vm504, 0, %v867
        %869 = vst [vmem:[%s804] sm:$0x80] %v868
        %v870 = vld [vmem:[%s804 + $0x8] sm:$0x80]
        %v871 = vsel %vm504, 0, %v870
        %872 = vst [vmem:[%s804 + $0x8] sm:$0x80] %v871
        %p873 = scmp.eq.s32.totalorder %s35, 0
        // Predicated region
        $region53: #{tpu_custom_call.1} parent=39 // pred_check
          %p874 = pneg %p873
        $region54: #{tpu_custom_call.1} parent=39 // pred_check_branch
          %876 = sbr.rel (%p874) target = $region56
        $region55: #{tpu_custom_call.1} parent=39 // pred_region
          %vm877 = vcmask 785408
          %878 = vst.msk [vmem:[#allocation2] sm:$0xff] %vm877, 0
          %879 = vst.msk [vmem:[#allocation2 + $0x8] sm:$0xff] %vm877, 0
        $region56: #{tpu_custom_call.1} parent=39 // pred_fallthru
          _
        %p880 = scmp.eq.s32.totalorder %s35, 1
        // Predicated region
        $region57: #{tpu_custom_call.1} parent=39 // pred_check
          %p881 = pneg %p880
        $region58: #{tpu_custom_call.1} parent=39 // pred_check_branch
          %883 = sbr.rel (%p881) target = $region60
        $region59: #{tpu_custom_call.1} parent=39 // pred_region
          %vm884 = vcmask 785408
          %885 = vst.msk [vmem:[%s804] sm:$0xff] %vm884, 0
          %886 = vst.msk [vmem:[%s804 + $0x8] sm:$0xff] %vm884, 0
        $region60: #{tpu_custom_call.1} parent=39 // pred_fallthru
          _
        %v887 = vld [vmem:[%s4] sm:$0x1]
        %v889 = vlaneseq
        %v890 = vshrl.u32 %v889, 7
        %v891 = vsub.s32 0, %v890
        %v892 = vrot.slane %v887, %v891
        %v894 = vld [vmem:[#allocation2] sm:$0xff]
        %v895 = vld [vmem:[#allocation2 + $0x8] sm:$0xff]
        %v896 = vld [vmem:[#allocation2 + $0x10] sm:$0xff]
        %v897 = vld [vmem:[#allocation2 + $0x18] sm:$0xff]
        %v898 = vld [vmem:[#allocation2 + $0x20] sm:$0xff]
        %v899 = vld [vmem:[#allocation2 + $0x28] sm:$0xff]
        %v900 = vld [vmem:[#allocation2 + $0x30] sm:$0xff]
        %v901 = vld [vmem:[#allocation2 + $0x38] sm:$0xff]
        %v902 = vld [vmem:[#allocation2 + $0x40] sm:$0xff]
        %v903 = vld [vmem:[#allocation2 + $0x48] sm:$0xff]
        %v904 = vld [vmem:[%s3] sm:$0xf]
        %v905 = vld [vmem:[%s3 + $0x4] sm:$0xf]
        %v906 = vld [vmem:[%s3 + $0x8] sm:$0xf]
        %v907 = vld [vmem:[%s3 + $0xc] sm:$0xf]
        %v908 = vld [vmem:[%s3 + $0x10] sm:$0xf]
        %v909 = vld [vmem:[%s3 + $0x14] sm:$0xf]
        %v910 = vld [vmem:[%s3 + $0x18] sm:$0xf]
        %v911 = vld [vmem:[%s3 + $0x1c] sm:$0xf]
        %v912 = vld [vmem:[%s3 + $0x20] sm:$0xf]
        %v913 = vld [vmem:[%s3 + $0x24] sm:$0xf]
        %v914 = vld [vmem:[%s3 + $0x28] sm:$0xf]
        %v915 = vld [vmem:[%s3 + $0x2c] sm:$0xf]
        %v928 = vunpack.c.l.b16 %v904
        %v929 = vunpack.c.l.b16 %v905
        %v930 = vunpack.c.l.b16 %v906
        %v931 = vunpack.c.l.b16 %v907
        %v932 = vunpack.c.l.b16 %v908
        %v933 = vunpack.c.l.b16 %v909
        %v934 = vunpack.c.l.b16 %v910
        %v935 = vunpack.c.l.b16 %v911
        %v936 = vunpack.c.l.b16 %v912
        %v937 = vunpack.c.l.b16 %v913
        %v938 = vunpack.c.l.b16 %v914
        %v939 = vunpack.c.l.b16 %v915
        %v940 = vpack.c.b16 %v929, %v928
        %v941 = vpack.c.b16 %v931, %v930
        %v942 = vpack.c.b16 %v933, %v932
        %v943 = vpack.c.b16 %v935, %v934
        %v944 = vpack.c.b16 %v937, %v936
        %v945 = vpack.c.b16 %v939, %v938
        %vm952 = vcmask 785408
        %v954 = vsel %vm952, %v894, 0
        %v957 = vsel %vm952, %v895, 0
        %v960 = vsel %vm952, %v896, 0
        %v963 = vsel %vm952, %v897, 0
        %v966 = vsel %vm952, %v898, 0
        %v969 = vsel %vm952, %v899, 0
        %v972 = vsel %vm952, %v900, 0
        %v975 = vsel %vm952, %v901, 0
        %v978 = vsel %vm952, %v902, 0
        %v981 = vsel %vm952, %v903, 0
        %983 = vmatprep.subr.bf16.mxu0 0
        %984 = vmatpush1.bf16.msra.mxu0 %v940
        %985 = vmatprep.subr.bf16.mxu0 0
        %986 = vmatpush1.bf16.msra.mxu0 %v941
        %987 = vmatprep.subr.bf16.mxu0 0
        %988 = vmatpush1.bf16.msra.mxu0 %v942
        %989 = vmatprep.subr.bf16.mxu0 0
        %990 = vmatpush1.bf16.msra.mxu0 %v943
        %991 = vmatprep.subr.bf16.mxu0 0
        %992 = vmatpush1.bf16.msra.mxu0 %v944
        %993 = vmatprep.subr.bf16.mxu0 0
        %994 = vmatpush1.bf16.msra.mxu0 %v945
        %995 = vmatprep.subr.bf16.mxu0 0
        %996 = vmatpush1.bf16.msra.mxu0 0
        %997 = vmatprep.subr.bf16.mxu0 0
        %998 = vmatpush1.bf16.msra.mxu0 0
        %999 = vmatprep.subr.bf16.mxu0 0
        %1000 = vmatpush1.bf16.msra.mxu0 0
        %1001 = vmatprep.subr.bf16.mxu0 0
        %1002 = vmatpush1.bf16.msra.mxu0 0
        %1003 = vmatprep.subr.bf16.mxu0 0
        %1004 = vmatpush1.bf16.msra.mxu0 0
        %1005 = vmatprep.subr.bf16.mxu0 0
        %1006 = vmatpush1.bf16.msra.mxu0 0
        %1007 = vmatprep.subr.bf16.mxu0 0
        %1008 = vmatpush1.bf16.msra.mxu0 0
        %1009 = vmatprep.subr.bf16.mxu0 0
        %1010 = vmatpush1.bf16.msra.mxu0 0
        %1011 = vmatprep.subr.bf16.mxu0 0
        %1012 = vmatpush1.bf16.msra.mxu0 0
        %1013 = vmatprep.subr.bf16.mxu0 0
        %1014 = vmatpush1.bf16.msra.mxu0 0
        %1015 = vmatprep.mubr.bf16.mxu0 0
        %1016 = vmatmul.mubr.bf16.gmra.mrb[0].mxu0 %v954
        %v1017 = vpop.f32.mrb[0].mxu0
        %v1018 = vadd.f32 0.0, %v1017
        %v1019 = vpop.f32.mrb[0].mxu0
        %v1020 = vpop.f32.mrb[0].mxu0
        %v1021 = vadd.f32 0.0, %v1020
        %v1022 = vpop.f32.mrb[0].mxu0
        %1023 = vmatprep.mubr.bf16.mxu0 0
        %1024 = vmatmul.mubr.bf16.gmra.mrb[0].mxu0 %v957
        %v1025 = vpop.f32.mrb[0].mxu0
        %v1026 = vadd.f32 0.0, %v1025
        %v1027 = vpop.f32.mrb[0].mxu0
        %v1028 = vpop.f32.mrb[0].mxu0
        %v1029 = vadd.f32 0.0, %v1028
        %v1030 = vpop.f32.mrb[0].mxu0
        %1031 = vmatprep.mubr.bf16.mxu0 0
        %1032 = vmatmul.mubr.bf16.gmra.mrb[0].mxu0 %v960
        %v1033 = vpop.f32.mrb[0].mxu0
        %v1034 = vadd.f32 0.0, %v1033
        %v1035 = vpop.f32.mrb[0].mxu0
        %v1036 = vpop.f32.mrb[0].mxu0
        %v1037 = vadd.f32 0.0, %v1036
        %v1038 = vpop.f32.mrb[0].mxu0
        %1039 = vmatprep.mubr.bf16.mxu0 0
        %1040 = vmatmul.mubr.bf16.gmra.mrb[0].mxu0 %v963
        %v1041 = vpop.f32.mrb[0].mxu0
        %v1042 = vadd.f32 0.0, %v1041
        %v1043 = vpop.f32.mrb[0].mxu0
        %v1044 = vpop.f32.mrb[0].mxu0
        %v1045 = vadd.f32 0.0, %v1044
        %v1046 = vpop.f32.mrb[0].mxu0
        %1047 = vmatprep.mubr.bf16.mxu0 0
        %1048 = vmatmul.mubr.bf16.gmra.mrb[0].mxu0 %v966
        %v1049 = vpop.f32.mrb[0].mxu0
        %v1050 = vadd.f32 0.0, %v1049
        %v1051 = vpop.f32.mrb[0].mxu0
        %v1052 = vpop.f32.mrb[0].mxu0
        %v1053 = vadd.f32 0.0, %v1052
        %v1054 = vpop.f32.mrb[0].mxu0
        %1055 = vmatprep.mubr.bf16.mxu0 0
        %1056 = vmatmul.mubr.bf16.gmra.mrb[0].mxu0 %v969
        %v1057 = vpop.f32.mrb[0].mxu0
        %v1058 = vadd.f32 0.0, %v1057
        %v1059 = vpop.f32.mrb[0].mxu0
        %v1060 = vpop.f32.mrb[0].mxu0
        %v1061 = vadd.f32 0.0, %v1060
        %v1062 = vpop.f32.mrb[0].mxu0
        %1063 = vmatprep.mubr.bf16.mxu0 0
        %1064 = vmatmul.mubr.bf16.gmra.mrb[0].mxu0 %v972
        %v1065 = vpop.f32.mrb[0].mxu0
        %v1066 = vadd.f32 0.0, %v1065
        %v1067 = vpop.f32.mrb[0].mxu0
        %v1068 = vpop.f32.mrb[0].mxu0
        %v1069 = vadd.f32 0.0, %v1068
        %v1070 = vpop.f32.mrb[0].mxu0
        %1071 = vmatprep.mubr.bf16.mxu0 0
        %1072 = vmatmul.mubr.bf16.gmra.mrb[0].mxu0 %v975
        %v1073 = vpop.f32.mrb[0].mxu0
        %v1074 = vadd.f32 0.0, %v1073
        %v1075 = vpop.f32.mrb[0].mxu0
        %v1076 = vpop.f32.mrb[0].mxu0
        %v1077 = vadd.f32 0.0, %v1076
        %v1078 = vpop.f32.mrb[0].mxu0
        %1079 = vmatprep.mubr.bf16.mxu0 0
        %1080 = vmatmul.mubr.bf16.gmra.mrb[0].mxu0 %v978
        %v1081 = vpop.f32.mrb[0].mxu0
        %v1082 = vadd.f32 0.0, %v1081
        %v1083 = vpop.f32.mrb[0].mxu0
        %v1084 = vpop.f32.mrb[0].mxu0
        %v1085 = vadd.f32 0.0, %v1084
        %v1086 = vpop.f32.mrb[0].mxu0
        %1087 = vmatprep.mubr.bf16.mxu0 0
        %1088 = vmatmul.mubr.bf16.gmra.mrb[0].mxu0 %v981
        %v1089 = vpop.f32.mrb[0].mxu0
        %v1090 = vadd.f32 0.0, %v1089
        %v1091 = vpop.f32.mrb[0].mxu0
        %v1092 = vpop.f32.mrb[0].mxu0
        %v1093 = vadd.f32 0.0, %v1092
        %v1094 = vpop.f32.mrb[0].mxu0
        %1095 = vdwg.mxu0
        %v1096 = vadd.f32 %v892, %v1018
        %v1097 = vadd.f32 %v892, %v1021
        %v1098 = vadd.f32 %v892, %v1026
        %v1099 = vadd.f32 %v892, %v1029
        %v1100 = vadd.f32 %v892, %v1034
        %v1101 = vadd.f32 %v892, %v1037
        %v1102 = vadd.f32 %v892, %v1042
        %v1103 = vadd.f32 %v892, %v1045
        %v1104 = vadd.f32 %v892, %v1050
        %v1105 = vadd.f32 %v892, %v1053
        %v1106 = vadd.f32 %v892, %v1058
        %v1107 = vadd.f32 %v892, %v1061
        %v1108 = vadd.f32 %v892, %v1066
        %v1109 = vadd.f32 %v892, %v1069
        %v1110 = vadd.f32 %v892, %v1074
        %v1111 = vadd.f32 %v892, %v1077
        %v1112 = vadd.f32 %v892, %v1082
        %v1113 = vadd.f32 %v892, %v1085
        %v1114 = vadd.f32 %v892, %v1090
        %v1115 = vadd.f32 %v892, %v1093
        %s1116 = scalar_lea.vmem [#allocation2], 8
        %v1117 = vld [vmem:[%s1116] sm:$0xff]
        %v1118 = vld [vmem:[%s1116 + $0x8] sm:$0xff]
        %v1119 = vld [vmem:[%s1116 + $0x10] sm:$0xff]
        %v1120 = vld [vmem:[%s1116 + $0x18] sm:$0xff]
        %v1121 = vld [vmem:[%s1116 + $0x20] sm:$0xff]
        %v1122 = vld [vmem:[%s1116 + $0x28] sm:$0xff]
        %v1123 = vld [vmem:[%s1116 + $0x30] sm:$0xff]
        %v1124 = vld [vmem:[%s1116 + $0x38] sm:$0xff]
        %v1125 = vld [vmem:[%s1116 + $0x40] sm:$0xff]
        %v1126 = vld [vmem:[%s1116 + $0x48] sm:$0xff]
        %s1127 = scalar_lea.vmem %s3, 48
        %v1128 = vld [vmem:[%s1127] sm:$0xf]
        %v1129 = vld [vmem:[%s1127 + $0x4] sm:$0xf]
        %v1130 = vld [vmem:[%s1127 + $0x8] sm:$0xf]
        %v1131 = vld [vmem:[%s1127 + $0xc] sm:$0xf]
        %v1132 = vld [vmem:[%s1127 + $0x10] sm:$0xf]
        %v1133 = vld [vmem:[%s1127 + $0x14] sm:$0xf]
        %v1134 = vld [vmem:[%s1127 + $0x18] sm:$0xf]
        %v1135 = vld [vmem:[%s1127 + $0x1c] sm:$0xf]
        %v1136 = vld [vmem:[%s1127 + $0x20] sm:$0xf]
        %v1137 = vld [vmem:[%s1127 + $0x24] sm:$0xf]
        %v1138 = vld [vmem:[%s1127 + $0x28] sm:$0xf]
        %v1139 = vld [vmem:[%s1127 + $0x2c] sm:$0xf]
        %v1152 = vunpack.c.l.b16 %v1128
        %v1153 = vunpack.c.l.b16 %v1129
        %v1154 = vunpack.c.l.b16 %v1130
        %v1155 = vunpack.c.l.b16 %v1131
        %v1156 = vunpack.c.l.b16 %v1132
        %v1157 = vunpack.c.l.b16 %v1133
        %v1158 = vunpack.c.l.b16 %v1134
        %v1159 = vunpack.c.l.b16 %v1135
        %v1160 = vunpack.c.l.b16 %v1136
        %v1161 = vunpack.c.l.b16 %v1137
        %v1162 = vunpack.c.l.b16 %v1138
        %v1163 = vunpack.c.l.b16 %v1139
        %v1164 = vpack.c.b16 %v1153, %v1152
        %v1165 = vpack.c.b16 %v1155, %v1154
        %v1166 = vpack.c.b16 %v1157, %v1156
        %v1167 = vpack.c.b16 %v1159, %v1158
        %v1168 = vpack.c.b16 %v1161, %v1160
        %v1169 = vpack.c.b16 %v1163, %v1162
        %v1177 = vsel %vm952, %v1117, 0
        %v1180 = vsel %vm952, %v1118, 0
        %v1183 = vsel %vm952, %v1119, 0
        %v1186 = vsel %vm952, %v1120, 0
        %v1189 = vsel %vm952, %v1121, 0
        %v1192 = vsel %vm952, %v1122, 0
        %v1195 = vsel %vm952, %v1123, 0
        %v1198 = vsel %vm952, %v1124, 0
        %v1201 = vsel %vm952, %v1125, 0
        %v1204 = vsel %vm952, %v1126, 0
        %1206 = vmatprep.subr.bf16.mxu0 0
        %1207 = vmatpush1.bf16.msra.mxu0 %v1164
        %1208 = vmatprep.subr.bf16.mxu0 0
        %1209 = vmatpush1.bf16.msra.mxu0 %v1165
        %1210 = vmatprep.subr.bf16.mxu0 0
        %1211 = vmatpush1.bf16.msra.mxu0 %v1166
        %1212 = vmatprep.subr.bf16.mxu0 0
        %1213 = vmatpush1.bf16.msra.mxu0 %v1167
        %1214 = vmatprep.subr.bf16.mxu0 0
        %1215 = vmatpush1.bf16.msra.mxu0 %v1168
        %1216 = vmatprep.subr.bf16.mxu0 0
        %1217 = vmatpush1.bf16.msra.mxu0 %v1169
        %1218 = vmatprep.subr.bf16.mxu0 0
        %1219 = vmatpush1.bf16.msra.mxu0 0
        %1220 = vmatprep.subr.bf16.mxu0 0
        %1221 = vmatpush1.bf16.msra.mxu0 0
        %1222 = vmatprep.subr.bf16.mxu0 0
        %1223 = vmatpush1.bf16.msra.mxu0 0
        %1224 = vmatprep.subr.bf16.mxu0 0
        %1225 = vmatpush1.bf16.msra.mxu0 0
        %1226 = vmatprep.subr.bf16.mxu0 0
        %1227 = vmatpush1.bf16.msra.mxu0 0
        %1228 = vmatprep.subr.bf16.mxu0 0
        %1229 = vmatpush1.bf16.msra.mxu0 0
        %1230 = vmatprep.subr.bf16.mxu0 0
        %1231 = vmatpush1.bf16.msra.mxu0 0
        %1232 = vmatprep.subr.bf16.mxu0 0
        %1233 = vmatpush1.bf16.msra.mxu0 0
        %1234 = vmatprep.subr.bf16.mxu0 0
        %1235 = vmatpush1.bf16.msra.mxu0 0
        %1236 = vmatprep.subr.bf16.mxu0 0
        %1237 = vmatpush1.bf16.msra.mxu0 0
        %1238 = vmatprep.mubr.bf16.mxu0 0
        %1239 = vmatmul.mubr.bf16.gmra.mrb[0].mxu0 %v1177
        %v1240 = vpop.f32.mrb[0].mxu0
        %v1241 = vadd.f32 0.0, %v1240
        %v1242 = vpop.f32.mrb[0].mxu0
        %v1243 = vpop.f32.mrb[0].mxu0
        %v1244 = vadd.f32 0.0, %v1243
        %v1245 = vpop.f32.mrb[0].mxu0
        %1246 = vmatprep.mubr.bf16.mxu0 0
        %1247 = vmatmul.mubr.bf16.gmra.mrb[0].mxu0 %v1180
        %v1248 = vpop.f32.mrb[0].mxu0
        %v1249 = vadd.f32 0.0, %v1248
        %v1250 = vpop.f32.mrb[0].mxu0
        %v1251 = vpop.f32.mrb[0].mxu0
        %v1252 = vadd.f32 0.0, %v1251
        %v1253 = vpop.f32.mrb[0].mxu0
        %1254 = vmatprep.mubr.bf16.mxu0 0
        %1255 = vmatmul.mubr.bf16.gmra.mrb[0].mxu0 %v1183
        %v1256 = vpop.f32.mrb[0].mxu0
        %v1257 = vadd.f32 0.0, %v1256
        %v1258 = vpop.f32.mrb[0].mxu0
        %v1259 = vpop.f32.mrb[0].mxu0
        %v1260 = vadd.f32 0.0, %v1259
        %v1261 = vpop.f32.mrb[0].mxu0
        %1262 = vmatprep.mubr.bf16.mxu0 0
        %1263 = vmatmul.mubr.bf16.gmra.mrb[0].mxu0 %v1186
        %v1264 = vpop.f32.mrb[0].mxu0
        %v1265 = vadd.f32 0.0, %v1264
        %v1266 = vpop.f32.mrb[0].mxu0
        %v1267 = vpop.f32.mrb[0].mxu0
        %v1268 = vadd.f32 0.0, %v1267
        %v1269 = vpop.f32.mrb[0].mxu0
        %1270 = vmatprep.mubr.bf16.mxu0 0
        %1271 = vmatmul.mubr.bf16.gmra.mrb[0].mxu0 %v1189
        %v1272 = vpop.f32.mrb[0].mxu0
        %v1273 = vadd.f32 0.0, %v1272
        %v1274 = vpop.f32.mrb[0].mxu0
        %v1275 = vpop.f32.mrb[0].mxu0
        %v1276 = vadd.f32 0.0, %v1275
        %v1277 = vpop.f32.mrb[0].mxu0
        %1278 = vmatprep.mubr.bf16.mxu0 0
        %1279 = vmatmul.mubr.bf16.gmra.mrb[0].mxu0 %v1192
        %v1280 = vpop.f32.mrb[0].mxu0
        %v1281 = vadd.f32 0.0, %v1280
        %v1282 = vpop.f32.mrb[0].mxu0
        %v1283 = vpop.f32.mrb[0].mxu0
        %v1284 = vadd.f32 0.0, %v1283
        %v1285 = vpop.f32.mrb[0].mxu0
        %1286 = vmatprep.mubr.bf16.mxu0 0
        %1287 = vmatmul.mubr.bf16.gmra.mrb[0].mxu0 %v1195
        %v1288 = vpop.f32.mrb[0].mxu0
        %v1289 = vadd.f32 0.0, %v1288
        %v1290 = vpop.f32.mrb[0].mxu0
        %v1291 = vpop.f32.mrb[0].mxu0
        %v1292 = vadd.f32 0.0, %v1291
        %v1293 = vpop.f32.mrb[0].mxu0
        %1294 = vmatprep.mubr.bf16.mxu0 0
        %1295 = vmatmul.mubr.bf16.gmra.mrb[0].mxu0 %v1198
        %v1296 = vpop.f32.mrb[0].mxu0
        %v1297 = vadd.f32 0.0, %v1296
        %v1298 = vpop.f32.mrb[0].mxu0
        %v1299 = vpop.f32.mrb[0].mxu0
        %v1300 = vadd.f32 0.0, %v1299
        %v1301 = vpop.f32.mrb[0].mxu0
        %1302 = vmatprep.mubr.bf16.mxu0 0
        %1303 = vmatmul.mubr.bf16.gmra.mrb[0].mxu0 %v1201
        %v1304 = vpop.f32.mrb[0].mxu0
        %v1305 = vadd.f32 0.0, %v1304
        %v1306 = vpop.f32.mrb[0].mxu0
        %v1307 = vpop.f32.mrb[0].mxu0
        %v1308 = vadd.f32 0.0, %v1307
        %v1309 = vpop.f32.mrb[0].mxu0
        %1310 = vmatprep.mubr.bf16.mxu0 0
        %1311 = vmatmul.mubr.bf16.gmra.mrb[0].mxu0 %v1204
        %v1312 = vpop.f32.mrb[0].mxu0
        %v1313 = vadd.f32 0.0, %v1312
        %v1314 = vpop.f32.mrb[0].mxu0
        %v1315 = vpop.f32.mrb[0].mxu0
        %v1316 = vadd.f32 0.0, %v1315
        %v1317 = vpop.f32.mrb[0].mxu0
        %1318 = vdwg.mxu0
        %v1319 = vadd.f32 %v1096, %v1241
        %v1320 = vadd.f32 %v1097, %v1244
        %v1321 = vadd.f32 %v1098, %v1249
        %v1322 = vadd.f32 %v1099, %v1252
        %v1323 = vadd.f32 %v1100, %v1257
        %v1324 = vadd.f32 %v1101, %v1260
        %v1325 = vadd.f32 %v1102, %v1265
        %v1326 = vadd.f32 %v1103, %v1268
        %v1327 = vadd.f32 %v1104, %v1273
        %v1328 = vadd.f32 %v1105, %v1276
        %v1329 = vadd.f32 %v1106, %v1281
        %v1330 = vadd.f32 %v1107, %v1284
        %v1331 = vadd.f32 %v1108, %v1289
        %v1332 = vadd.f32 %v1109, %v1292
        %v1333 = vadd.f32 %v1110, %v1297
        %v1334 = vadd.f32 %v1111, %v1300
        %v1335 = vadd.f32 %v1112, %v1305
        %v1336 = vadd.f32 %v1113, %v1308
        %v1337 = vadd.f32 %v1114, %v1313
        %v1338 = vadd.f32 %v1115, %v1316
        %v1339 = vld [vmem:[%s527] sm:$0xff]
        %v1340 = vld [vmem:[%s527 + $0x8] sm:$0xff]
        %v1341 = vld [vmem:[%s527 + $0x10] sm:$0xff]
        %v1342 = vld [vmem:[%s527 + $0x18] sm:$0xff]
        %v1343 = vld [vmem:[%s527 + $0x20] sm:$0xff]
        %v1344 = vld [vmem:[%s527 + $0x28] sm:$0xff]
        %v1345 = vld [vmem:[%s527 + $0x30] sm:$0xff]
        %v1346 = vld [vmem:[%s527 + $0x38] sm:$0xff]
        %v1347 = vld [vmem:[%s527 + $0x40] sm:$0xff]
        %v1348 = vld [vmem:[%s527 + $0x48] sm:$0xff]
        %s1349 = scalar_lea.vmem %s3, 96
        %v1350 = vld [vmem:[%s1349] sm:$0xf]
        %v1351 = vld [vmem:[%s1349 + $0x4] sm:$0xf]
        %v1352 = vld [vmem:[%s1349 + $0x8] sm:$0xf]
        %v1353 = vld [vmem:[%s1349 + $0xc] sm:$0xf]
        %v1354 = vld [vmem:[%s1349 + $0x10] sm:$0xf]
        %v1355 = vld [vmem:[%s1349 + $0x14] sm:$0xf]
        %v1356 = vld [vmem:[%s1349 + $0x18] sm:$0xf]
        %v1357 = vld [vmem:[%s1349 + $0x1c] sm:$0xf]
        %v1358 = vld [vmem:[%s1349 + $0x20] sm:$0xf]
        %v1359 = vld [vmem:[%s1349 + $0x24] sm:$0xf]
        %v1360 = vld [vmem:[%s1349 + $0x28] sm:$0xf]
        %v1361 = vld [vmem:[%s1349 + $0x2c] sm:$0xf]
        %v1374 = vunpack.c.l.b16 %v1350
        %v1375 = vunpack.c.l.b16 %v1351
        %v1376 = vunpack.c.l.b16 %v1352
        %v1377 = vunpack.c.l.b16 %v1353
        %v1378 = vunpack.c.l.b16 %v1354
        %v1379 = vunpack.c.l.b16 %v1355
        %v1380 = vunpack.c.l.b16 %v1356
        %v1381 = vunpack.c.l.b16 %v1357
        %v1382 = vunpack.c.l.b16 %v1358
        %v1383 = vunpack.c.l.b16 %v1359
        %v1384 = vunpack.c.l.b16 %v1360
        %v1385 = vunpack.c.l.b16 %v1361
        %v1386 = vpack.c.b16 %v1375, %v1374
        %v1387 = vpack.c.b16 %v1377, %v1376
        %v1388 = vpack.c.b16 %v1379, %v1378
        %v1389 = vpack.c.b16 %v1381, %v1380
        %v1390 = vpack.c.b16 %v1383, %v1382
        %v1391 = vpack.c.b16 %v1385, %v1384
        %v1399 = vsel %vm952, %v1339, 0
        %v1402 = vsel %vm952, %v1340, 0
        %v1405 = vsel %vm952, %v1341, 0
        %v1408 = vsel %vm952, %v1342, 0
        %v1411 = vsel %vm952, %v1343, 0
        %v1414 = vsel %vm952, %v1344, 0
        %v1417 = vsel %vm952, %v1345, 0
        %v1420 = vsel %vm952, %v1346, 0
        %v1423 = vsel %vm952, %v1347, 0
        %v1426 = vsel %vm952, %v1348, 0
        %1428 = vmatprep.subr.bf16.mxu0 0
        %1429 = vmatpush1.bf16.msra.mxu0 %v1386
        %1430 = vmatprep.subr.bf16.mxu0 0
        %1431 = vmatpush1.bf16.msra.mxu0 %v1387
        %1432 = vmatprep.subr.bf16.mxu0 0
        %1433 = vmatpush1.bf16.msra.mxu0 %v1388
        %1434 = vmatprep.subr.bf16.mxu0 0
        %1435 = vmatpush1.bf16.msra.mxu0 %v1389
        %1436 = vmatprep.subr.bf16.mxu0 0
        %1437 = vmatpush1.bf16.msra.mxu0 %v1390
        %1438 = vmatprep.subr.bf16.mxu0 0
        %1439 = vmatpush1.bf16.msra.mxu0 %v1391
        %1440 = vmatprep.subr.bf16.mxu0 0
        %1441 = vmatpush1.bf16.msra.mxu0 0
        %1442 = vmatprep.subr.bf16.mxu0 0
        %1443 = vmatpush1.bf16.msra.mxu0 0
        %1444 = vmatprep.subr.bf16.mxu0 0
        %1445 = vmatpush1.bf16.msra.mxu0 0
        %1446 = vmatprep.subr.bf16.mxu0 0
        %1447 = vmatpush1.bf16.msra.mxu0 0
        %1448 = vmatprep.subr.bf16.mxu0 0
        %1449 = vmatpush1.bf16.msra.mxu0 0
        %1450 = vmatprep.subr.bf16.mxu0 0
        %1451 = vmatpush1.bf16.msra.mxu0 0
        %1452 = vmatprep.subr.bf16.mxu0 0
        %1453 = vmatpush1.bf16.msra.mxu0 0
        %1454 = vmatprep.subr.bf16.mxu0 0
        %1455 = vmatpush1.bf16.msra.mxu0 0
        %1456 = vmatprep.subr.bf16.mxu0 0
        %1457 = vmatpush1.bf16.msra.mxu0 0
        %1458 = vmatprep.subr.bf16.mxu0 0
        %1459 = vmatpush1.bf16.msra.mxu0 0
        %1460 = vmatprep.mubr.bf16.mxu0 0
        %1461 = vmatmul.mubr.bf16.gmra.mrb[0].mxu0 %v1399
        %v1462 = vpop.f32.mrb[0].mxu0
        %v1463 = vadd.f32 0.0, %v1462
        %v1464 = vpop.f32.mrb[0].mxu0
        %v1465 = vpop.f32.mrb[0].mxu0
        %v1466 = vadd.f32 0.0, %v1465
        %v1467 = vpop.f32.mrb[0].mxu0
        %1468 = vmatprep.mubr.bf16.mxu0 0
        %1469 = vmatmul.mubr.bf16.gmra.mrb[0].mxu0 %v1402
        %v1470 = vpop.f32.mrb[0].mxu0
        %v1471 = vadd.f32 0.0, %v1470
        %v1472 = vpop.f32.mrb[0].mxu0
        %v1473 = vpop.f32.mrb[0].mxu0
        %v1474 = vadd.f32 0.0, %v1473
        %v1475 = vpop.f32.mrb[0].mxu0
        %1476 = vmatprep.mubr.bf16.mxu0 0
        %1477 = vmatmul.mubr.bf16.gmra.mrb[0].mxu0 %v1405
        %v1478 = vpop.f32.mrb[0].mxu0
        %v1479 = vadd.f32 0.0, %v1478
        %v1480 = vpop.f32.mrb[0].mxu0
        %v1481 = vpop.f32.mrb[0].mxu0
        %v1482 = vadd.f32 0.0, %v1481
        %v1483 = vpop.f32.mrb[0].mxu0
        %1484 = vmatprep.mubr.bf16.mxu0 0
        %1485 = vmatmul.mubr.bf16.gmra.mrb[0].mxu0 %v1408
        %v1486 = vpop.f32.mrb[0].mxu0
        %v1487 = vadd.f32 0.0, %v1486
        %v1488 = vpop.f32.mrb[0].mxu0
        %v1489 = vpop.f32.mrb[0].mxu0
        %v1490 = vadd.f32 0.0, %v1489
        %v1491 = vpop.f32.mrb[0].mxu0
        %1492 = vmatprep.mubr.bf16.mxu0 0
        %1493 = vmatmul.mubr.bf16.gmra.mrb[0].mxu0 %v1411
        %v1494 = vpop.f32.mrb[0].mxu0
        %v1495 = vadd.f32 0.0, %v1494
        %v1496 = vpop.f32.mrb[0].mxu0
        %v1497 = vpop.f32.mrb[0].mxu0
        %v1498 = vadd.f32 0.0, %v1497
        %v1499 = vpop.f32.mrb[0].mxu0
        %1500 = vmatprep.mubr.bf16.mxu0 0
        %1501 = vmatmul.mubr.bf16.gmra.mrb[0].mxu0 %v1414
        %v1502 = vpop.f32.mrb[0].mxu0
        %v1503 = vadd.f32 0.0, %v1502
        %v1504 = vpop.f32.mrb[0].mxu0
        %v1505 = vpop.f32.mrb[0].mxu0
        %v1506 = vadd.f32 0.0, %v1505
        %v1507 = vpop.f32.mrb[0].mxu0
        %1508 = vmatprep.mubr.bf16.mxu0 0
        %1509 = vmatmul.mubr.bf16.gmra.mrb[0].mxu0 %v1417
        %v1510 = vpop.f32.mrb[0].mxu0
        %v1511 = vadd.f32 0.0, %v1510
        %v1512 = vpop.f32.mrb[0].mxu0
        %v1513 = vpop.f32.mrb[0].mxu0
        %v1514 = vadd.f32 0.0, %v1513
        %v1515 = vpop.f32.mrb[0].mxu0
        %1516 = vmatprep.mubr.bf16.mxu0 0
        %1517 = vmatmul.mubr.bf16.gmra.mrb[0].mxu0 %v1420
        %v1518 = vpop.f32.mrb[0].mxu0
        %v1519 = vadd.f32 0.0, %v1518
        %v1520 = vpop.f32.mrb[0].mxu0
        %v1521 = vpop.f32.mrb[0].mxu0
        %v1522 = vadd.f32 0.0, %v1521
        %v1523 = vpop.f32.mrb[0].mxu0
        %1524 = vmatprep.mubr.bf16.mxu0 0
        %1525 = vmatmul.mubr.bf16.gmra.mrb[0].mxu0 %v1423
        %v1526 = vpop.f32.mrb[0].mxu0
        %v1527 = vadd.f32 0.0, %v1526
        %v1528 = vpop.f32.mrb[0].mxu0
        %v1529 = vpop.f32.mrb[0].mxu0
        %v1530 = vadd.f32 0.0, %v1529
        %v1531 = vpop.f32.mrb[0].mxu0
        %1532 = vmatprep.mubr.bf16.mxu0 0
        %1533 = vmatmul.mubr.bf16.gmra.mrb[0].mxu0 %v1426
        %v1534 = vpop.f32.mrb[0].mxu0
        %v1535 = vadd.f32 0.0, %v1534
        %v1536 = vpop.f32.mrb[0].mxu0
        %v1537 = vpop.f32.mrb[0].mxu0
        %v1538 = vadd.f32 0.0, %v1537
        %v1539 = vpop.f32.mrb[0].mxu0
        %1540 = vdwg.mxu0
        %v1541 = vadd.f32 %v1319, %v1463
        %v1542 = vadd.f32 %v1320, %v1466
        %v1543 = vadd.f32 %v1321, %v1471
        %v1544 = vadd.f32 %v1322, %v1474
        %v1545 = vadd.f32 %v1323, %v1479
        %v1546 = vadd.f32 %v1324, %v1482
        %v1547 = vadd.f32 %v1325, %v1487
        %v1548 = vadd.f32 %v1326, %v1490
        %v1549 = vadd.f32 %v1327, %v1495
        %v1550 = vadd.f32 %v1328, %v1498
        %v1551 = vadd.f32 %v1329, %v1503
        %v1552 = vadd.f32 %v1330, %v1506
        %v1553 = vadd.f32 %v1331, %v1511
        %v1554 = vadd.f32 %v1332, %v1514
        %v1555 = vadd.f32 %v1333, %v1519
        %v1556 = vadd.f32 %v1334, %v1522
        %v1557 = vadd.f32 %v1335, %v1527
        %v1558 = vadd.f32 %v1336, %v1530
        %v1559 = vadd.f32 %v1337, %v1535
        %v1560 = vadd.f32 %v1338, %v1538
        %v1561 = vxor.u32 %v1541, 2147483648
        %v1562 = vxor.u32 %v1542, 2147483648
        %v1563 = vxor.u32 %v1543, 2147483648
        %v1564 = vxor.u32 %v1544, 2147483648
        %v1565 = vxor.u32 %v1545, 2147483648
        %v1566 = vxor.u32 %v1546, 2147483648
        %v1567 = vxor.u32 %v1547, 2147483648
        %v1568 = vxor.u32 %v1548, 2147483648
        %v1569 = vxor.u32 %v1549, 2147483648
        %v1570 = vxor.u32 %v1550, 2147483648
        %v1571 = vxor.u32 %v1551, 2147483648
        %v1572 = vxor.u32 %v1552, 2147483648
        %v1573 = vxor.u32 %v1553, 2147483648
        %v1574 = vxor.u32 %v1554, 2147483648
        %v1575 = vxor.u32 %v1555, 2147483648
        %v1576 = vxor.u32 %v1556, 2147483648
        %v1577 = vxor.u32 %v1557, 2147483648
        %v1578 = vxor.u32 %v1558, 2147483648
        %v1579 = vxor.u32 %v1559, 2147483648
        %v1580 = vxor.u32 %v1560, 2147483648
        %v1581 = vmul.f32 %v1561, 1.442695
        %v1582 = vpow.pop %v1581
        %v1583 = vmul.f32 %v1562, 1.442695
        %v1584 = vpow.pop %v1583
        %v1585 = vmul.f32 %v1563, 1.442695
        %v1586 = vpow.pop %v1585
        %v1587 = vmul.f32 %v1564, 1.442695
        %v1588 = vpow.pop %v1587
        %v1589 = vmul.f32 %v1565, 1.442695
        %v1590 = vpow.pop %v1589
        %v1591 = vmul.f32 %v1566, 1.442695
        %v1592 = vpow.pop %v1591
        %v1593 = vmul.f32 %v1567, 1.442695
        %v1594 = vpow.pop %v1593
        %v1595 = vmul.f32 %v1568, 1.442695
        %v1596 = vpow.pop %v1595
        %v1597 = vmul.f32 %v1569, 1.442695
        %v1598 = vpow.pop %v1597
        %v1599 = vmul.f32 %v1570, 1.442695
        %v1600 = vpow.pop %v1599
        %v1601 = vmul.f32 %v1571, 1.442695
        %v1602 = vpow.pop %v1601
        %v1603 = vmul.f32 %v1572, 1.442695
        %v1604 = vpow.pop %v1603
        %v1605 = vmul.f32 %v1573, 1.442695
        %v1606 = vpow.pop %v1605
        %v1607 = vmul.f32 %v1574, 1.442695
        %v1608 = vpow.pop %v1607
        %v1609 = vmul.f32 %v1575, 1.442695
        %v1610 = vpow.pop %v1609
        %v1611 = vmul.f32 %v1576, 1.442695
        %v1612 = vpow.pop %v1611
        %v1613 = vmul.f32 %v1577, 1.442695
        %v1614 = vpow.pop %v1613
        %v1615 = vmul.f32 %v1578, 1.442695
        %v1616 = vpow.pop %v1615
        %v1617 = vmul.f32 %v1579, 1.442695
        %v1618 = vpow.pop %v1617
        %v1619 = vmul.f32 %v1580, 1.442695
        %v1620 = vpow.pop %v1619
        %v1621 = vadd.f32 %v1582, 1.0
        %v1622 = vadd.f32 %v1584, 1.0
        %v1623 = vadd.f32 %v1586, 1.0
        %v1624 = vadd.f32 %v1588, 1.0
        %v1625 = vadd.f32 %v1590, 1.0
        %v1626 = vadd.f32 %v1592, 1.0
        %v1627 = vadd.f32 %v1594, 1.0
        %v1628 = vadd.f32 %v1596, 1.0
        %v1629 = vadd.f32 %v1598, 1.0
        %v1630 = vadd.f32 %v1600, 1.0
        %v1631 = vadd.f32 %v1602, 1.0
        %v1632 = vadd.f32 %v1604, 1.0
        %v1633 = vadd.f32 %v1606, 1.0
        %v1634 = vadd.f32 %v1608, 1.0
        %v1635 = vadd.f32 %v1610, 1.0
        %v1636 = vadd.f32 %v1612, 1.0
        %v1637 = vadd.f32 %v1614, 1.0
        %v1638 = vadd.f32 %v1616, 1.0
        %v1639 = vadd.f32 %v1618, 1.0
        %v1640 = vadd.f32 %v1620, 1.0
        %v1641 = vrcp.pop %v1621
        %v1642 = vmul.f32 1.0, %v1641
        %v1643 = vrcp.pop %v1622
        %v1644 = vmul.f32 1.0, %v1643
        %v1645 = vrcp.pop %v1623
        %v1646 = vmul.f32 1.0, %v1645
        %v1647 = vrcp.pop %v1624
        %v1648 = vmul.f32 1.0, %v1647
        %v1649 = vrcp.pop %v1625
        %v1650 = vmul.f32 1.0, %v1649
        %v1651 = vrcp.pop %v1626
        %v1652 = vmul.f32 1.0, %v1651
        %v1653 = vrcp.pop %v1627
        %v1654 = vmul.f32 1.0, %v1653
        %v1655 = vrcp.pop %v1628
        %v1656 = vmul.f32 1.0, %v1655
        %v1657 = vrcp.pop %v1629
        %v1658 = vmul.f32 1.0, %v1657
        %v1659 = vrcp.pop %v1630
        %v1660 = vmul.f32 1.0, %v1659
        %v1661 = vrcp.pop %v1631
        %v1662 = vmul.f32 1.0, %v1661
        %v1663 = vrcp.pop %v1632
        %v1664 = vmul.f32 1.0, %v1663
        %v1665 = vrcp.pop %v1633
        %v1666 = vmul.f32 1.0, %v1665
        %v1667 = vrcp.pop %v1634
        %v1668 = vmul.f32 1.0, %v1667
        %v1669 = vrcp.pop %v1635
        %v1670 = vmul.f32 1.0, %v1669
        %v1671 = vrcp.pop %v1636
        %v1672 = vmul.f32 1.0, %v1671
        %v1673 = vrcp.pop %v1637
        %v1674 = vmul.f32 1.0, %v1673
        %v1675 = vrcp.pop %v1638
        %v1676 = vmul.f32 1.0, %v1675
        %v1677 = vrcp.pop %v1639
        %v1678 = vmul.f32 1.0, %v1677
        %v1679 = vrcp.pop %v1640
        %v1680 = vmul.f32 1.0, %v1679
        %v1681 = vmul.f32 %v1541, %v1642
        %v1682 = vmul.f32 %v1542, %v1644
        %v1683 = vmul.f32 %v1543, %v1646
        %v1684 = vmul.f32 %v1544, %v1648
        %v1685 = vmul.f32 %v1545, %v1650
        %v1686 = vmul.f32 %v1546, %v1652
        %v1687 = vmul.f32 %v1547, %v1654
        %v1688 = vmul.f32 %v1548, %v1656
        %v1689 = vmul.f32 %v1549, %v1658
        %v1690 = vmul.f32 %v1550, %v1660
        %v1691 = vmul.f32 %v1551, %v1662
        %v1692 = vmul.f32 %v1552, %v1664
        %v1693 = vmul.f32 %v1553, %v1666
        %v1694 = vmul.f32 %v1554, %v1668
        %v1695 = vmul.f32 %v1555, %v1670
        %v1696 = vmul.f32 %v1556, %v1672
        %v1697 = vmul.f32 %v1557, %v1674
        %v1698 = vmul.f32 %v1558, %v1676
        %v1699 = vmul.f32 %v1559, %v1678
        %v1700 = vmul.f32 %v1560, %v1680
        %v1701 = vpack.c.bf16 %v1682, %v1681
        %v1702 = vpack.c.bf16 %v1684, %v1683
        %v1703 = vpack.c.bf16 %v1686, %v1685
        %v1704 = vpack.c.bf16 %v1688, %v1687
        %v1705 = vpack.c.bf16 %v1690, %v1689
        %v1706 = vpack.c.bf16 %v1692, %v1691
        %v1707 = vpack.c.bf16 %v1694, %v1693
        %v1708 = vpack.c.bf16 %v1696, %v1695
        %v1709 = vpack.c.bf16 %v1698, %v1697
        %v1710 = vpack.c.bf16 %v1700, %v1699
        %v1711 = vld [vmem:[#allocation3] sm:$0x1]
        %v1712 = vsel %vm432, 0, %v1711
        %1713 = vst [vmem:[#allocation3] sm:$0x1] %v1712
        %v1714 = vld [vmem:[#allocation3 + $0x8] sm:$0x1]
        %v1715 = vsel %vm432, 0, %v1714
        %1716 = vst [vmem:[#allocation3 + $0x8] sm:$0x1] %v1715
        %v1717 = vld [vmem:[#allocation3 + $0x10] sm:$0x1]
        %v1718 = vsel %vm432, 0, %v1717
        %1719 = vst [vmem:[#allocation3 + $0x10] sm:$0x1] %v1718
        %v1720 = vld [vmem:[#allocation3 + $0x18] sm:$0x1]
        %v1721 = vsel %vm432, 0, %v1720
        %1722 = vst [vmem:[#allocation3 + $0x18] sm:$0x1] %v1721
        %v1723 = vld [vmem:[#allocation3 + $0x20] sm:$0x1]
        %v1724 = vsel %vm432, 0, %v1723
        %1725 = vst [vmem:[#allocation3 + $0x20] sm:$0x1] %v1724
        %v1726 = vld [vmem:[#allocation3 + $0x28] sm:$0x1]
        %v1727 = vsel %vm432, 0, %v1726
        %1728 = vst [vmem:[#allocation3 + $0x28] sm:$0x1] %v1727
        %v1729 = vld [vmem:[#allocation3 + $0x30] sm:$0x1]
        %v1730 = vsel %vm432, 0, %v1729
        %1731 = vst [vmem:[#allocation3 + $0x30] sm:$0x1] %v1730
        %v1732 = vld [vmem:[#allocation3 + $0x38] sm:$0x1]
        %v1733 = vsel %vm432, 0, %v1732
        %1734 = vst [vmem:[#allocation3 + $0x38] sm:$0x1] %v1733
        %v1735 = vld [vmem:[#allocation3 + $0x40] sm:$0x1]
        %v1736 = vsel %vm432, 0, %v1735
        %1737 = vst [vmem:[#allocation3 + $0x40] sm:$0x1] %v1736
        %v1738 = vld [vmem:[#allocation3 + $0x48] sm:$0x1]
        %v1739 = vsel %vm432, 0, %v1738
        %1740 = vst [vmem:[#allocation3 + $0x48] sm:$0x1] %v1739
        %v1742 = vshrl.u32 %v1701, 16
        %v1744 = vrot.slane %v1742, 7
        %v1745 = vshll.u32 %v1701, 16
        %v1747 = vor.u32 %v1744, %v1745
        %v1749 = vshrl.u32 %v1702, 16
        %v1751 = vrot.slane %v1749, 7
        %v1752 = vshll.u32 %v1702, 16
        %v1754 = vor.u32 %v1751, %v1752
        %v1756 = vshrl.u32 %v1703, 16
        %v1758 = vrot.slane %v1756, 7
        %v1759 = vshll.u32 %v1703, 16
        %v1761 = vor.u32 %v1758, %v1759
        %v1763 = vshrl.u32 %v1704, 16
        %v1765 = vrot.slane %v1763, 7
        %v1766 = vshll.u32 %v1704, 16
        %v1768 = vor.u32 %v1765, %v1766
        %v1770 = vshrl.u32 %v1705, 16
        %v1772 = vrot.slane %v1770, 7
        %v1773 = vshll.u32 %v1705, 16
        %v1775 = vor.u32 %v1772, %v1773
        %v1777 = vshrl.u32 %v1706, 16
        %v1779 = vrot.slane %v1777, 7
        %v1780 = vshll.u32 %v1706, 16
        %v1782 = vor.u32 %v1779, %v1780
        %v1784 = vshrl.u32 %v1707, 16
        %v1786 = vrot.slane %v1784, 7
        %v1787 = vshll.u32 %v1707, 16
        %v1789 = vor.u32 %v1786, %v1787
        %v1791 = vshrl.u32 %v1708, 16
        %v1793 = vrot.slane %v1791, 7
        %v1794 = vshll.u32 %v1708, 16
        %v1796 = vor.u32 %v1793, %v1794
        %v1798 = vshrl.u32 %v1709, 16
        %v1800 = vrot.slane %v1798, 7
        %v1801 = vshll.u32 %v1709, 16
        %v1803 = vor.u32 %v1800, %v1801
        %v1805 = vshrl.u32 %v1710, 16
        %v1807 = vrot.slane %v1805, 7
        %v1808 = vshll.u32 %v1710, 16
        %v1810 = vor.u32 %v1807, %v1808
        %v1821 = vld [vmem:[#allocation3] sm:$0xff]
        %v1822 = vsel %vm467, %v1747, %v1821
        %1823 = vst [vmem:[#allocation3] sm:$0xff] %v1822
        %v1824 = vld [vmem:[#allocation3 + $0x8] sm:$0xff]
        %v1825 = vsel %vm467, %v1754, %v1824
        %1826 = vst [vmem:[#allocation3 + $0x8] sm:$0xff] %v1825
        %v1827 = vld [vmem:[#allocation3 + $0x10] sm:$0xff]
        %v1828 = vsel %vm467, %v1761, %v1827
        %1829 = vst [vmem:[#allocation3 + $0x10] sm:$0xff] %v1828
        %v1830 = vld [vmem:[#allocation3 + $0x18] sm:$0xff]
        %v1831 = vsel %vm467, %v1768, %v1830
        %1832 = vst [vmem:[#allocation3 + $0x18] sm:$0xff] %v1831
        %v1833 = vld [vmem:[#allocation3 + $0x20] sm:$0xff]
        %v1834 = vsel %vm467, %v1775, %v1833
        %1835 = vst [vmem:[#allocation3 + $0x20] sm:$0xff] %v1834
        %v1836 = vld [vmem:[#allocation3 + $0x28] sm:$0xff]
        %v1837 = vsel %vm467, %v1782, %v1836
        %1838 = vst [vmem:[#allocation3 + $0x28] sm:$0xff] %v1837
        %v1839 = vld [vmem:[#allocation3 + $0x30] sm:$0xff]
        %v1840 = vsel %vm467, %v1789, %v1839
        %1841 = vst [vmem:[#allocation3 + $0x30] sm:$0xff] %v1840
        %v1842 = vld [vmem:[#allocation3 + $0x38] sm:$0xff]
        %v1843 = vsel %vm467, %v1796, %v1842
        %1844 = vst [vmem:[#allocation3 + $0x38] sm:$0xff] %v1843
        %v1845 = vld [vmem:[#allocation3 + $0x40] sm:$0xff]
        %v1846 = vsel %vm467, %v1803, %v1845
        %1847 = vst [vmem:[#allocation3 + $0x40] sm:$0xff] %v1846
        %v1848 = vld [vmem:[#allocation3 + $0x48] sm:$0xff]
        %v1849 = vsel %vm467, %v1810, %v1848
        %1850 = vst [vmem:[#allocation3 + $0x48] sm:$0xff] %v1849
        %1861 = vrot.lane.b32.xlu0 %v1701, 32
        %v1862 = vpop.permute.xlu0 %1861
        %1863 = vrot.lane.b32.xlu0 %v1702, 32
        %v1864 = vpop.permute.xlu0 %1863
        %1865 = vrot.lane.b32.xlu0 %v1703, 32
        %v1866 = vpop.permute.xlu0 %1865
        %1867 = vrot.lane.b32.xlu0 %v1704, 32
        %v1868 = vpop.permute.xlu0 %1867
        %1869 = vrot.lane.b32.xlu0 %v1705, 32
        %v1870 = vpop.permute.xlu0 %1869
        %1871 = vrot.lane.b32.xlu0 %v1706, 32
        %v1872 = vpop.permute.xlu0 %1871
        %1873 = vrot.lane.b32.xlu0 %v1707, 32
        %v1874 = vpop.permute.xlu0 %1873
        %1875 = vrot.lane.b32.xlu0 %v1708, 32
        %v1876 = vpop.permute.xlu0 %1875
        %1877 = vrot.lane.b32.xlu0 %v1709, 32
        %v1878 = vpop.permute.xlu0 %1877
        %1879 = vrot.lane.b32.xlu0 %v1710, 32
        %v1880 = vpop.permute.xlu0 %1879
        %1891 = vst.msk [vmem:[#allocation3] sm:$0xff] %vm480, %v1862
        %1892 = vst.msk [vmem:[#allocation3 + $0x8] sm:$0xff] %vm480, %v1864
        %1893 = vst.msk [vmem:[#allocation3 + $0x10] sm:$0xff] %vm480, %v1866
        %1894 = vst.msk [vmem:[#allocation3 + $0x18] sm:$0xff] %vm480, %v1868
        %1895 = vst.msk [vmem:[#allocation3 + $0x20] sm:$0xff] %vm480, %v1870
        %1896 = vst.msk [vmem:[#allocation3 + $0x28] sm:$0xff] %vm480, %v1872
        %1897 = vst.msk [vmem:[#allocation3 + $0x30] sm:$0xff] %vm480, %v1874
        %1898 = vst.msk [vmem:[#allocation3 + $0x38] sm:$0xff] %vm480, %v1876
        %1899 = vst.msk [vmem:[#allocation3 + $0x40] sm:$0xff] %vm480, %v1878
        %1900 = vst.msk [vmem:[#allocation3 + $0x48] sm:$0xff] %vm480, %v1880
        %v1901 = vrot.slane %v1745, 1
        %v1902 = vor.u32 %v1742, %v1901
        %v1903 = vrot.slane %v1752, 1
        %v1904 = vor.u32 %v1749, %v1903
        %v1905 = vrot.slane %v1759, 1
        %v1906 = vor.u32 %v1756, %v1905
        %v1907 = vrot.slane %v1766, 1
        %v1908 = vor.u32 %v1763, %v1907
        %v1909 = vrot.slane %v1773, 1
        %v1910 = vor.u32 %v1770, %v1909
        %v1911 = vrot.slane %v1780, 1
        %v1912 = vor.u32 %v1777, %v1911
        %v1913 = vrot.slane %v1787, 1
        %v1914 = vor.u32 %v1784, %v1913
        %v1915 = vrot.slane %v1794, 1
        %v1916 = vor.u32 %v1791, %v1915
        %v1917 = vrot.slane %v1801, 1
        %v1918 = vor.u32 %v1798, %v1917
        %v1919 = vrot.slane %v1808, 1
        %v1920 = vor.u32 %v1805, %v1919
        %1921 = vrot.lane.b32.xlu0 %v1902, 64
        %v1922 = vpop.permute.xlu0 %1921
        %1923 = vrot.lane.b32.xlu0 %v1904, 64
        %v1924 = vpop.permute.xlu0 %1923
        %1925 = vrot.lane.b32.xlu0 %v1906, 64
        %v1926 = vpop.permute.xlu0 %1925
        %1927 = vrot.lane.b32.xlu0 %v1908, 64
        %v1928 = vpop.permute.xlu0 %1927
        %1929 = vrot.lane.b32.xlu0 %v1910, 64
        %v1930 = vpop.permute.xlu0 %1929
        %1931 = vrot.lane.b32.xlu0 %v1912, 64
        %v1932 = vpop.permute.xlu0 %1931
        %1933 = vrot.lane.b32.xlu0 %v1914, 64
        %v1934 = vpop.permute.xlu0 %1933
        %1935 = vrot.lane.b32.xlu0 %v1916, 64
        %v1936 = vpop.permute.xlu0 %1935
        %1937 = vrot.lane.b32.xlu0 %v1918, 64
        %v1938 = vpop.permute.xlu0 %1937
        %1939 = vrot.lane.b32.xlu0 %v1920, 64
        %v1940 = vpop.permute.xlu0 %1939
        %v1951 = vld [vmem:[#allocation3] sm:$0xff]
        %v1952 = vsel %vm495, %v1922, %v1951
        %1953 = vst [vmem:[#allocation3] sm:$0xff] %v1952
        %v1954 = vld [vmem:[#allocation3 + $0x8] sm:$0xff]
        %v1955 = vsel %vm495, %v1924, %v1954
        %1956 = vst [vmem:[#allocation3 + $0x8] sm:$0xff] %v1955
        %v1957 = vld [vmem:[#allocation3 + $0x10] sm:$0xff]
        %v1958 = vsel %vm495, %v1926, %v1957
        %1959 = vst [vmem:[#allocation3 + $0x10] sm:$0xff] %v1958
        %v1960 = vld [vmem:[#allocation3 + $0x18] sm:$0xff]
        %v1961 = vsel %vm495, %v1928, %v1960
        %1962 = vst [vmem:[#allocation3 + $0x18] sm:$0xff] %v1961
        %v1963 = vld [vmem:[#allocation3 + $0x20] sm:$0xff]
        %v1964 = vsel %vm495, %v1930, %v1963
        %1965 = vst [vmem:[#allocation3 + $0x20] sm:$0xff] %v1964
        %v1966 = vld [vmem:[#allocation3 + $0x28] sm:$0xff]
        %v1967 = vsel %vm495, %v1932, %v1966
        %1968 = vst [vmem:[#allocation3 + $0x28] sm:$0xff] %v1967
        %v1969 = vld [vmem:[#allocation3 + $0x30] sm:$0xff]
        %v1970 = vsel %vm495, %v1934, %v1969
        %1971 = vst [vmem:[#allocation3 + $0x30] sm:$0xff] %v1970
        %v1972 = vld [vmem:[#allocation3 + $0x38] sm:$0xff]
        %v1973 = vsel %vm495, %v1936, %v1972
        %1974 = vst [vmem:[#allocation3 + $0x38] sm:$0xff] %v1973
        %v1975 = vld [vmem:[#allocation3 + $0x40] sm:$0xff]
        %v1976 = vsel %vm495, %v1938, %v1975
        %1977 = vst [vmem:[#allocation3 + $0x40] sm:$0xff] %v1976
        %v1978 = vld [vmem:[#allocation3 + $0x48] sm:$0xff]
        %v1979 = vsel %vm495, %v1940, %v1978
        %1980 = vst [vmem:[#allocation3 + $0x48] sm:$0xff] %v1979
        %v1981 = vld [vmem:[#allocation3] sm:$0x80]
        %v1982 = vsel %vm504, 0, %v1981
        %1983 = vst [vmem:[#allocation3] sm:$0x80] %v1982
        %v1984 = vld [vmem:[#allocation3 + $0x8] sm:$0x80]
        %v1985 = vsel %vm504, 0, %v1984
        %1986 = vst [vmem:[#allocation3 + $0x8] sm:$0x80] %v1985
        %v1987 = vld [vmem:[#allocation3 + $0x10] sm:$0x80]
        %v1988 = vsel %vm504, 0, %v1987
        %1989 = vst [vmem:[#allocation3 + $0x10] sm:$0x80] %v1988
        %v1990 = vld [vmem:[#allocation3 + $0x18] sm:$0x80]
        %v1991 = vsel %vm504, 0, %v1990
        %1992 = vst [vmem:[#allocation3 + $0x18] sm:$0x80] %v1991
        %v1993 = vld [vmem:[#allocation3 + $0x20] sm:$0x80]
        %v1994 = vsel %vm504, 0, %v1993
        %1995 = vst [vmem:[#allocation3 + $0x20] sm:$0x80] %v1994
        %v1996 = vld [vmem:[#allocation3 + $0x28] sm:$0x80]
        %v1997 = vsel %vm504, 0, %v1996
        %1998 = vst [vmem:[#allocation3 + $0x28] sm:$0x80] %v1997
        %v1999 = vld [vmem:[#allocation3 + $0x30] sm:$0x80]
        %v2000 = vsel %vm504, 0, %v1999
        %2001 = vst [vmem:[#allocation3 + $0x30] sm:$0x80] %v2000
        %v2002 = vld [vmem:[#allocation3 + $0x38] sm:$0x80]
        %v2003 = vsel %vm504, 0, %v2002
        %2004 = vst [vmem:[#allocation3 + $0x38] sm:$0x80] %v2003
        %v2005 = vld [vmem:[#allocation3 + $0x40] sm:$0x80]
        %v2006 = vsel %vm504, 0, %v2005
        %2007 = vst [vmem:[#allocation3 + $0x40] sm:$0x80] %v2006
        %v2008 = vld [vmem:[#allocation3 + $0x48] sm:$0x80]
        %v2009 = vsel %vm504, 0, %v2008
        %2010 = vst [vmem:[#allocation3 + $0x48] sm:$0x80] %v2009
        // Predicated region
        $region61: #{tpu_custom_call.1} parent=39 // pred_check
          %p2011 = pneg %p873
        $region62: #{tpu_custom_call.1} parent=39 // pred_check_branch
          %2013 = sbr.rel (%p2011) target = $region64
        $region63: #{tpu_custom_call.1} parent=39 // pred_region
          %2014 = vst.msk [vmem:[#allocation3] sm:$0xff] %vm952, 0
        $region64: #{tpu_custom_call.1} parent=39 // pred_fallthru
          _
        // Predicated region
        $region65: #{tpu_custom_call.1} parent=39 // pred_check
          %p2015 = pneg %p880
        $region66: #{tpu_custom_call.1} parent=39 // pred_check_branch
          %2017 = sbr.rel (%p2015) target = $region68
        $region67: #{tpu_custom_call.1} parent=39 // pred_region
          %s2018 = scalar_lea.vmem [#allocation3], 72
          %2019 = vst.msk [vmem:[%s2018] sm:$0xff] %vm952, 0
        $region68: #{tpu_custom_call.1} parent=39 // pred_fallthru
          _
        %v2020 = vld [vmem:[%s4] sm:$0x1]
        %v2022 = vlaneseq
        %v2023 = vshrl.u32 %v2022, 7
        %v2024 = vsub.s32 0, %v2023
        %v2025 = vrot.slane %v2020, %v2024
        %v2027 = vld [vmem:[#allocation3] sm:$0xff]
        %v2028 = vld [vmem:[#allocation3 + $0x8] sm:$0xff]
        %v2029 = vld [vmem:[#allocation3 + $0x10] sm:$0xff]
        %v2030 = vld [vmem:[#allocation3 + $0x18] sm:$0xff]
        %v2031 = vld [vmem:[#allocation3 + $0x20] sm:$0xff]
        %v2032 = vld [vmem:[#allocation3 + $0x28] sm:$0xff]
        %v2033 = vld [vmem:[#allocation3 + $0x30] sm:$0xff]
        %v2034 = vld [vmem:[#allocation3 + $0x38] sm:$0xff]
        %v2035 = vld [vmem:[%s3] sm:$0xf]
        %v2036 = vld [vmem:[%s3 + $0x4] sm:$0xf]
        %v2037 = vld [vmem:[%s3 + $0x8] sm:$0xf]
        %v2038 = vld [vmem:[%s3 + $0xc] sm:$0xf]
        %v2039 = vld [vmem:[%s3 + $0x10] sm:$0xf]
        %v2040 = vld [vmem:[%s3 + $0x14] sm:$0xf]
        %v2041 = vld [vmem:[%s3 + $0x18] sm:$0xf]
        %v2042 = vld [vmem:[%s3 + $0x1c] sm:$0xf]
        %v2043 = vld [vmem:[%s3 + $0x20] sm:$0xf]
        %v2044 = vld [vmem:[%s3 + $0x24] sm:$0xf]
        %v2045 = vld [vmem:[%s3 + $0x28] sm:$0xf]
        %v2046 = vld [vmem:[%s3 + $0x2c] sm:$0xf]
        %v2059 = vunpack.c.l.b16 %v2035
        %v2060 = vunpack.c.l.b16 %v2036
        %v2061 = vunpack.c.l.b16 %v2037
        %v2062 = vunpack.c.l.b16 %v2038
        %v2063 = vunpack.c.l.b16 %v2039
        %v2064 = vunpack.c.l.b16 %v2040
        %v2065 = vunpack.c.l.b16 %v2041
        %v2066 = vunpack.c.l.b16 %v2042
        %v2067 = vunpack.c.l.b16 %v2043
        %v2068 = vunpack.c.l.b16 %v2044
        %v2069 = vunpack.c.l.b16 %v2045
        %v2070 = vunpack.c.l.b16 %v2046
        %v2071 = vpack.c.b16 %v2060, %v2059
        %v2072 = vpack.c.b16 %v2062, %v2061
        %v2073 = vpack.c.b16 %v2064, %v2063
        %v2074 = vpack.c.b16 %v2066, %v2065
        %v2075 = vpack.c.b16 %v2068, %v2067
        %v2076 = vpack.c.b16 %v2070, %v2069
        %v2084 = vsel %vm952, %v2027, 0
        %v2087 = vsel %vm952, %v2028, 0
        %v2090 = vsel %vm952, %v2029, 0
        %v2093 = vsel %vm952, %v2030, 0
        %v2096 = vsel %vm952, %v2031, 0
        %v2099 = vsel %vm952, %v2032, 0
        %v2102 = vsel %vm952, %v2033, 0
        %v2105 = vsel %vm952, %v2034, 0
        %2107 = vmatprep.subr.bf16.mxu0 0
        %2108 = vmatpush1.bf16.msra.mxu0 %v2071
        %2109 = vmatprep.subr.bf16.mxu0 0
        %2110 = vmatpush1.bf16.msra.mxu0 %v2072
        %2111 = vmatprep.subr.bf16.mxu0 0
        %2112 = vmatpush1.bf16.msra.mxu0 %v2073
        %2113 = vmatprep.subr.bf16.mxu0 0
        %2114 = vmatpush1.bf16.msra.mxu0 %v2074
        %2115 = vmatprep.subr.bf16.mxu0 0
        %2116 = vmatpush1.bf16.msra.mxu0 %v2075
        %2117 = vmatprep.subr.bf16.mxu0 0
        %2118 = vmatpush1.bf16.msra.mxu0 %v2076
        %2119 = vmatprep.subr.bf16.mxu0 0
        %2120 = vmatpush1.bf16.msra.mxu0 0
        %2121 = vmatprep.subr.bf16.mxu0 0
        %2122 = vmatpush1.bf16.msra.mxu0 0
        %2123 = vmatprep.subr.bf16.mxu0 0
        %2124 = vmatpush1.bf16.msra.mxu0 0
        %2125 = vmatprep.subr.bf16.mxu0 0
        %2126 = vmatpush1.bf16.msra.mxu0 0
        %2127 = vmatprep.subr.bf16.mxu0 0
        %2128 = vmatpush1.bf16.msra.mxu0 0
        %2129 = vmatprep.subr.bf16.mxu0 0
        %2130 = vmatpush1.bf16.msra.mxu0 0
        %2131 = vmatprep.subr.bf16.mxu0 0
        %2132 = vmatpush1.bf16.msra.mxu0 0
        %2133 = vmatprep.subr.bf16.mxu0 0
        %2134 = vmatpush1.bf16.msra.mxu0 0
        %2135 = vmatprep.subr.bf16.mxu0 0
        %2136 = vmatpush1.bf16.msra.mxu0 0
        %2137 = vmatprep.subr.bf16.mxu0 0
        %2138 = vmatpush1.bf16.msra.mxu0 0
        %2139 = vmatprep.mubr.bf16.mxu0 0
        %2140 = vmatmul.mubr.bf16.gmra.mrb[0].mxu0 %v2084
        %v2141 = vpop.f32.mrb[0].mxu0
        %v2142 = vadd.f32 0.0, %v2141
        %v2143 = vpop.f32.mrb[0].mxu0
        %v2144 = vpop.f32.mrb[0].mxu0
        %v2145 = vadd.f32 0.0, %v2144
        %v2146 = vpop.f32.mrb[0].mxu0
        %2147 = vmatprep.mubr.bf16.mxu0 0
        %2148 = vmatmul.mubr.bf16.gmra.mrb[0].mxu0 %v2087
        %v2149 = vpop.f32.mrb[0].mxu0
        %v2150 = vadd.f32 0.0, %v2149
        %v2151 = vpop.f32.mrb[0].mxu0
        %v2152 = vpop.f32.mrb[0].mxu0
        %v2153 = vadd.f32 0.0, %v2152
        %v2154 = vpop.f32.mrb[0].mxu0
        %2155 = vmatprep.mubr.bf16.mxu0 0
        %2156 = vmatmul.mubr.bf16.gmra.mrb[0].mxu0 %v2090
        %v2157 = vpop.f32.mrb[0].mxu0
        %v2158 = vadd.f32 0.0, %v2157
        %v2159 = vpop.f32.mrb[0].mxu0
        %v2160 = vpop.f32.mrb[0].mxu0
        %v2161 = vadd.f32 0.0, %v2160
        %v2162 = vpop.f32.mrb[0].mxu0
        %2163 = vmatprep.mubr.bf16.mxu0 0
        %2164 = vmatmul.mubr.bf16.gmra.mrb[0].mxu0 %v2093
        %v2165 = vpop.f32.mrb[0].mxu0
        %v2166 = vadd.f32 0.0, %v2165
        %v2167 = vpop.f32.mrb[0].mxu0
        %v2168 = vpop.f32.mrb[0].mxu0
        %v2169 = vadd.f32 0.0, %v2168
        %v2170 = vpop.f32.mrb[0].mxu0
        %2171 = vmatprep.mubr.bf16.mxu0 0
        %2172 = vmatmul.mubr.bf16.gmra.mrb[0].mxu0 %v2096
        %v2173 = vpop.f32.mrb[0].mxu0
        %v2174 = vadd.f32 0.0, %v2173
        %v2175 = vpop.f32.mrb[0].mxu0
        %v2176 = vpop.f32.mrb[0].mxu0
        %v2177 = vadd.f32 0.0, %v2176
        %v2178 = vpop.f32.mrb[0].mxu0
        %2179 = vmatprep.mubr.bf16.mxu0 0
        %2180 = vmatmul.mubr.bf16.gmra.mrb[0].mxu0 %v2099
        %v2181 = vpop.f32.mrb[0].mxu0
        %v2182 = vadd.f32 0.0, %v2181
        %v2183 = vpop.f32.mrb[0].mxu0
        %v2184 = vpop.f32.mrb[0].mxu0
        %v2185 = vadd.f32 0.0, %v2184
        %v2186 = vpop.f32.mrb[0].mxu0
        %2187 = vmatprep.mubr.bf16.mxu0 0
        %2188 = vmatmul.mubr.bf16.gmra.mrb[0].mxu0 %v2102
        %v2189 = vpop.f32.mrb[0].mxu0
        %v2190 = vadd.f32 0.0, %v2189
        %v2191 = vpop.f32.mrb[0].mxu0
        %v2192 = vpop.f32.mrb[0].mxu0
        %v2193 = vadd.f32 0.0, %v2192
        %v2194 = vpop.f32.mrb[0].mxu0
        %2195 = vmatprep.mubr.bf16.mxu0 0
        %2196 = vmatmul.mubr.bf16.gmra.mrb[0].mxu0 %v2105
        %v2197 = vpop.f32.mrb[0].mxu0
        %v2198 = vadd.f32 0.0, %v2197
        %v2199 = vpop.f32.mrb[0].mxu0
        %v2200 = vpop.f32.mrb[0].mxu0
        %v2201 = vadd.f32 0.0, %v2200
        %v2202 = vpop.f32.mrb[0].mxu0
        %2203 = vdwg.mxu0
        %v2204 = vadd.f32 %v2025, %v2142
        %v2205 = vadd.f32 %v2025, %v2145
        %v2206 = vadd.f32 %v2025, %v2150
        %v2207 = vadd.f32 %v2025, %v2153
        %v2208 = vadd.f32 %v2025, %v2158
        %v2209 = vadd.f32 %v2025, %v2161
        %v2210 = vadd.f32 %v2025, %v2166
        %v2211 = vadd.f32 %v2025, %v2169
        %v2212 = vadd.f32 %v2025, %v2174
        %v2213 = vadd.f32 %v2025, %v2177
        %v2214 = vadd.f32 %v2025, %v2182
        %v2215 = vadd.f32 %v2025, %v2185
        %v2216 = vadd.f32 %v2025, %v2190
        %v2217 = vadd.f32 %v2025, %v2193
        %v2218 = vadd.f32 %v2025, %v2198
        %v2219 = vadd.f32 %v2025, %v2201
        %s2220 = scalar_lea.vmem [#allocation3], 8
        %v2221 = vld [vmem:[%s2220] sm:$0xff]
        %v2222 = vld [vmem:[%s2220 + $0x8] sm:$0xff]
        %v2223 = vld [vmem:[%s2220 + $0x10] sm:$0xff]
        %v2224 = vld [vmem:[%s2220 + $0x18] sm:$0xff]
        %v2225 = vld [vmem:[%s2220 + $0x20] sm:$0xff]
        %v2226 = vld [vmem:[%s2220 + $0x28] sm:$0xff]
        %v2227 = vld [vmem:[%s2220 + $0x30] sm:$0xff]
        %v2228 = vld [vmem:[%s2220 + $0x38] sm:$0xff]
        %v2229 = vld [vmem:[%s1127] sm:$0xf]
        %v2230 = vld [vmem:[%s1127 + $0x4] sm:$0xf]
        %v2231 = vld [vmem:[%s1127 + $0x8] sm:$0xf]
        %v2232 = vld [vmem:[%s1127 + $0xc] sm:$0xf]
        %v2233 = vld [vmem:[%s1127 + $0x10] sm:$0xf]
        %v2234 = vld [vmem:[%s1127 + $0x14] sm:$0xf]
        %v2235 = vld [vmem:[%s1127 + $0x18] sm:$0xf]
        %v2236 = vld [vmem:[%s1127 + $0x1c] sm:$0xf]
        %v2237 = vld [vmem:[%s1127 + $0x20] sm:$0xf]
        %v2238 = vld [vmem:[%s1127 + $0x24] sm:$0xf]
        %v2239 = vld [vmem:[%s1127 + $0x28] sm:$0xf]
        %v2240 = vld [vmem:[%s1127 + $0x2c] sm:$0xf]
        %v2253 = vunpack.c.l.b16 %v2229
        %v2254 = vunpack.c.l.b16 %v2230
        %v2255 = vunpack.c.l.b16 %v2231
        %v2256 = vunpack.c.l.b16 %v2232
        %v2257 = vunpack.c.l.b16 %v2233
        %v2258 = vunpack.c.l.b16 %v2234
        %v2259 = vunpack.c.l.b16 %v2235
        %v2260 = vunpack.c.l.b16 %v2236
        %v2261 = vunpack.c.l.b16 %v2237
        %v2262 = vunpack.c.l.b16 %v2238
        %v2263 = vunpack.c.l.b16 %v2239
        %v2264 = vunpack.c.l.b16 %v2240
        %v2265 = vpack.c.b16 %v2254, %v2253
        %v2266 = vpack.c.b16 %v2256, %v2255
        %v2267 = vpack.c.b16 %v2258, %v2257
        %v2268 = vpack.c.b16 %v2260, %v2259
        %v2269 = vpack.c.b16 %v2262, %v2261
        %v2270 = vpack.c.b16 %v2264, %v2263
        %v2278 = vsel %vm952, %v2221, 0
        %v2281 = vsel %vm952, %v2222, 0
        %v2284 = vsel %vm952, %v2223, 0
        %v2287 = vsel %vm952, %v2224, 0
        %v2290 = vsel %vm952, %v2225, 0
        %v2293 = vsel %vm952, %v2226, 0
        %v2296 = vsel %vm952, %v2227, 0
        %v2299 = vsel %vm952, %v2228, 0
        %2301 = vmatprep.subr.bf16.mxu0 0
        %2302 = vmatpush1.bf16.msra.mxu0 %v2265
        %2303 = vmatprep.subr.bf16.mxu0 0
        %2304 = vmatpush1.bf16.msra.mxu0 %v2266
        %2305 = vmatprep.subr.bf16.mxu0 0
        %2306 = vmatpush1.bf16.msra.mxu0 %v2267
        %2307 = vmatprep.subr.bf16.mxu0 0
        %2308 = vmatpush1.bf16.msra.mxu0 %v2268
        %2309 = vmatprep.subr.bf16.mxu0 0
        %2310 = vmatpush1.bf16.msra.mxu0 %v2269
        %2311 = vmatprep.subr.bf16.mxu0 0
        %2312 = vmatpush1.bf16.msra.mxu0 %v2270
        %2313 = vmatprep.subr.bf16.mxu0 0
        %2314 = vmatpush1.bf16.msra.mxu0 0
        %2315 = vmatprep.subr.bf16.mxu0 0
        %2316 = vmatpush1.bf16.msra.mxu0 0
        %2317 = vmatprep.subr.bf16.mxu0 0
        %2318 = vmatpush1.bf16.msra.mxu0 0
        %2319 = vmatprep.subr.bf16.mxu0 0
        %2320 = vmatpush1.bf16.msra.mxu0 0
        %2321 = vmatprep.subr.bf16.mxu0 0
        %2322 = vmatpush1.bf16.msra.mxu0 0
        %2323 = vmatprep.subr.bf16.mxu0 0
        %2324 = vmatpush1.bf16.msra.mxu0 0
        %2325 = vmatprep.subr.bf16.mxu0 0
        %2326 = vmatpush1.bf16.msra.mxu0 0
        %2327 = vmatprep.subr.bf16.mxu0 0
        %2328 = vmatpush1.bf16.msra.mxu0 0
        %2329 = vmatprep.subr.bf16.mxu0 0
        %2330 = vmatpush1.bf16.msra.mxu0 0
        %2331 = vmatprep.subr.bf16.mxu0 0
        %2332 = vmatpush1.bf16.msra.mxu0 0
        %2333 = vmatprep.mubr.bf16.mxu0 0
        %2334 = vmatmul.mubr.bf16.gmra.mrb[0].mxu0 %v2278
        %v2335 = vpop.f32.mrb[0].mxu0
        %v2336 = vadd.f32 0.0, %v2335
        %v2337 = vpop.f32.mrb[0].mxu0
        %v2338 = vpop.f32.mrb[0].mxu0
        %v2339 = vadd.f32 0.0, %v2338
        %v2340 = vpop.f32.mrb[0].mxu0
        %2341 = vmatprep.mubr.bf16.mxu0 0
        %2342 = vmatmul.mubr.bf16.gmra.mrb[0].mxu0 %v2281
        %v2343 = vpop.f32.mrb[0].mxu0
        %v2344 = vadd.f32 0.0, %v2343
        %v2345 = vpop.f32.mrb[0].mxu0
        %v2346 = vpop.f32.mrb[0].mxu0
        %v2347 = vadd.f32 0.0, %v2346
        %v2348 = vpop.f32.mrb[0].mxu0
        %2349 = vmatprep.mubr.bf16.mxu0 0
        %2350 = vmatmul.mubr.bf16.gmra.mrb[0].mxu0 %v2284
        %v2351 = vpop.f32.mrb[0].mxu0
        %v2352 = vadd.f32 0.0, %v2351
        %v2353 = vpop.f32.mrb[0].mxu0
        %v2354 = vpop.f32.mrb[0].mxu0
        %v2355 = vadd.f32 0.0, %v2354
        %v2356 = vpop.f32.mrb[0].mxu0
        %2357 = vmatprep.mubr.bf16.mxu0 0
        %2358 = vmatmul.mubr.bf16.gmra.mrb[0].mxu0 %v2287
        %v2359 = vpop.f32.mrb[0].mxu0
        %v2360 = vadd.f32 0.0, %v2359
        %v2361 = vpop.f32.mrb[0].mxu0
        %v2362 = vpop.f32.mrb[0].mxu0
        %v2363 = vadd.f32 0.0, %v2362
        %v2364 = vpop.f32.mrb[0].mxu0
        %2365 = vmatprep.mubr.bf16.mxu0 0
        %2366 = vmatmul.mubr.bf16.gmra.mrb[0].mxu0 %v2290
        %v2367 = vpop.f32.mrb[0].mxu0
        %v2368 = vadd.f32 0.0, %v2367
        %v2369 = vpop.f32.mrb[0].mxu0
        %v2370 = vpop.f32.mrb[0].mxu0
        %v2371 = vadd.f32 0.0, %v2370
        %v2372 = vpop.f32.mrb[0].mxu0
        %2373 = vmatprep.mubr.bf16.mxu0 0
        %2374 = vmatmul.mubr.bf16.gmra.mrb[0].mxu0 %v2293
        %v2375 = vpop.f32.mrb[0].mxu0
        %v2376 = vadd.f32 0.0, %v2375
        %v2377 = vpop.f32.mrb[0].mxu0
        %v2378 = vpop.f32.mrb[0].mxu0
        %v2379 = vadd.f32 0.0, %v2378
        %v2380 = vpop.f32.mrb[0].mxu0
        %2381 = vmatprep.mubr.bf16.mxu0 0
        %2382 = vmatmul.mubr.bf16.gmra.mrb[0].mxu0 %v2296
        %v2383 = vpop.f32.mrb[0].mxu0
        %v2384 = vadd.f32 0.0, %v2383
        %v2385 = vpop.f32.mrb[0].mxu0
        %v2386 = vpop.f32.mrb[0].mxu0
        %v2387 = vadd.f32 0.0, %v2386
        %v2388 = vpop.f32.mrb[0].mxu0
        %2389 = vmatprep.mubr.bf16.mxu0 0
        %2390 = vmatmul.mubr.bf16.gmra.mrb[0].mxu0 %v2299
        %v2391 = vpop.f32.mrb[0].mxu0
        %v2392 = vadd.f32 0.0, %v2391
        %v2393 = vpop.f32.mrb[0].mxu0
        %v2394 = vpop.f32.mrb[0].mxu0
        %v2395 = vadd.f32 0.0, %v2394
        %v2396 = vpop.f32.mrb[0].mxu0
        %2397 = vdwg.mxu0
        %v2398 = vadd.f32 %v2204, %v2336
        %v2399 = vadd.f32 %v2205, %v2339
        %v2400 = vadd.f32 %v2206, %v2344
        %v2401 = vadd.f32 %v2207, %v2347
        %v2402 = vadd.f32 %v2208, %v2352
        %v2403 = vadd.f32 %v2209, %v2355
        %v2404 = vadd.f32 %v2210, %v2360
        %v2405 = vadd.f32 %v2211, %v2363
        %v2406 = vadd.f32 %v2212, %v2368
        %v2407 = vadd.f32 %v2213, %v2371
        %v2408 = vadd.f32 %v2214, %v2376
        %v2409 = vadd.f32 %v2215, %v2379
        %v2410 = vadd.f32 %v2216, %v2384
        %v2411 = vadd.f32 %v2217, %v2387
        %v2412 = vadd.f32 %v2218, %v2392
        %v2413 = vadd.f32 %v2219, %v2395
        %s2414 = scalar_lea.vmem [#allocation3], 16
        %v2415 = vld [vmem:[%s2414] sm:$0xff]
        %v2416 = vld [vmem:[%s2414 + $0x8] sm:$0xff]
        %v2417 = vld [vmem:[%s2414 + $0x10] sm:$0xff]
        %v2418 = vld [vmem:[%s2414 + $0x18] sm:$0xff]
        %v2419 = vld [vmem:[%s2414 + $0x20] sm:$0xff]
        %v2420 = vld [vmem:[%s2414 + $0x28] sm:$0xff]
        %v2421 = vld [vmem:[%s2414 + $0x30] sm:$0xff]
        %v2422 = vld [vmem:[%s2414 + $0x38] sm:$0xff]
        %v2423 = vld [vmem:[%s1349] sm:$0xf]
        %v2424 = vld [vmem:[%s1349 + $0x4] sm:$0xf]
        %v2425 = vld [vmem:[%s1349 + $0x8] sm:$0xf]
        %v2426 = vld [vmem:[%s1349 + $0xc] sm:$0xf]
        %v2427 = vld [vmem:[%s1349 + $0x10] sm:$0xf]
        %v2428 = vld [vmem:[%s1349 + $0x14] sm:$0xf]
        %v2429 = vld [vmem:[%s1349 + $0x18] sm:$0xf]
        %v2430 = vld [vmem:[%s1349 + $0x1c] sm:$0xf]
        %v2431 = vld [vmem:[%s1349 + $0x20] sm:$0xf]
        %v2432 = vld [vmem:[%s1349 + $0x24] sm:$0xf]
        %v2433 = vld [vmem:[%s1349 + $0x28] sm:$0xf]
        %v2434 = vld [vmem:[%s1349 + $0x2c] sm:$0xf]
        %v2447 = vunpack.c.l.b16 %v2423
        %v2448 = vunpack.c.l.b16 %v2424
        %v2449 = vunpack.c.l.b16 %v2425
        %v2450 = vunpack.c.l.b16 %v2426
        %v2451 = vunpack.c.l.b16 %v2427
        %v2452 = vunpack.c.l.b16 %v2428
        %v2453 = vunpack.c.l.b16 %v2429
        %v2454 = vunpack.c.l.b16 %v2430
        %v2455 = vunpack.c.l.b16 %v2431
        %v2456 = vunpack.c.l.b16 %v2432
        %v2457 = vunpack.c.l.b16 %v2433
        %v2458 = vunpack.c.l.b16 %v2434
        %v2459 = vpack.c.b16 %v2448, %v2447
        %v2460 = vpack.c.b16 %v2450, %v2449
        %v2461 = vpack.c.b16 %v2452, %v2451
        %v2462 = vpack.c.b16 %v2454, %v2453
        %v2463 = vpack.c.b16 %v2456, %v2455
        %v2464 = vpack.c.b16 %v2458, %v2457
        %v2472 = vsel %vm952, %v2415, 0
        %v2475 = vsel %vm952, %v2416, 0
        %v2478 = vsel %vm952, %v2417, 0
        %v2481 = vsel %vm952, %v2418, 0
        %v2484 = vsel %vm952, %v2419, 0
        %v2487 = vsel %vm952, %v2420, 0
        %v2490 = vsel %vm952, %v2421, 0
        %v2493 = vsel %vm952, %v2422, 0
        %2495 = vmatprep.subr.bf16.mxu0 0
        %2496 = vmatpush1.bf16.msra.mxu0 %v2459
        %2497 = vmatprep.subr.bf16.mxu0 0
        %2498 = vmatpush1.bf16.msra.mxu0 %v2460
        %2499 = vmatprep.subr.bf16.mxu0 0
        %2500 = vmatpush1.bf16.msra.mxu0 %v2461
        %2501 = vmatprep.subr.bf16.mxu0 0
        %2502 = vmatpush1.bf16.msra.mxu0 %v2462
        %2503 = vmatprep.subr.bf16.mxu0 0
        %2504 = vmatpush1.bf16.msra.mxu0 %v2463
        %2505 = vmatprep.subr.bf16.mxu0 0
        %2506 = vmatpush1.bf16.msra.mxu0 %v2464
        %2507 = vmatprep.subr.bf16.mxu0 0
        %2508 = vmatpush1.bf16.msra.mxu0 0
        %2509 = vmatprep.subr.bf16.mxu0 0
        %2510 = vmatpush1.bf16.msra.mxu0 0
        %2511 = vmatprep.subr.bf16.mxu0 0
        %2512 = vmatpush1.bf16.msra.mxu0 0
        %2513 = vmatprep.subr.bf16.mxu0 0
        %2514 = vmatpush1.bf16.msra.mxu0 0
        %2515 = vmatprep.subr.bf16.mxu0 0
        %2516 = vmatpush1.bf16.msra.mxu0 0
        %2517 = vmatprep.subr.bf16.mxu0 0
        %2518 = vmatpush1.bf16.msra.mxu0 0
        %2519 = vmatprep.subr.bf16.mxu0 0
        %2520 = vmatpush1.bf16.msra.mxu0 0
        %2521 = vmatprep.subr.bf16.mxu0 0
        %2522 = vmatpush1.bf16.msra.mxu0 0
        %2523 = vmatprep.subr.bf16.mxu0 0
        %2524 = vmatpush1.bf16.msra.mxu0 0
        %2525 = vmatprep.subr.bf16.mxu0 0
        %2526 = vmatpush1.bf16.msra.mxu0 0
        %2527 = vmatprep.mubr.bf16.mxu0 0
        %2528 = vmatmul.mubr.bf16.gmra.mrb[0].mxu0 %v2472
        %v2529 = vpop.f32.mrb[0].mxu0
        %v2530 = vadd.f32 0.0, %v2529
        %v2531 = vpop.f32.mrb[0].mxu0
        %v2532 = vpop.f32.mrb[0].mxu0
        %v2533 = vadd.f32 0.0, %v2532
        %v2534 = vpop.f32.mrb[0].mxu0
        %2535 = vmatprep.mubr.bf16.mxu0 0
        %2536 = vmatmul.mubr.bf16.gmra.mrb[0].mxu0 %v2475
        %v2537 = vpop.f32.mrb[0].mxu0
        %v2538 = vadd.f32 0.0, %v2537
        %v2539 = vpop.f32.mrb[0].mxu0
        %v2540 = vpop.f32.mrb[0].mxu0
        %v2541 = vadd.f32 0.0, %v2540
        %v2542 = vpop.f32.mrb[0].mxu0
        %2543 = vmatprep.mubr.bf16.mxu0 0
        %2544 = vmatmul.mubr.bf16.gmra.mrb[0].mxu0 %v2478
        %v2545 = vpop.f32.mrb[0].mxu0
        %v2546 = vadd.f32 0.0, %v2545
        %v2547 = vpop.f32.mrb[0].mxu0
        %v2548 = vpop.f32.mrb[0].mxu0
        %v2549 = vadd.f32 0.0, %v2548
        %v2550 = vpop.f32.mrb[0].mxu0
        %2551 = vmatprep.mubr.bf16.mxu0 0
        %2552 = vmatmul.mubr.bf16.gmra.mrb[0].mxu0 %v2481
        %v2553 = vpop.f32.mrb[0].mxu0
        %v2554 = vadd.f32 0.0, %v2553
        %v2555 = vpop.f32.mrb[0].mxu0
        %v2556 = vpop.f32.mrb[0].mxu0
        %v2557 = vadd.f32 0.0, %v2556
        %v2558 = vpop.f32.mrb[0].mxu0
        %2559 = vmatprep.mubr.bf16.mxu0 0
        %2560 = vmatmul.mubr.bf16.gmra.mrb[0].mxu0 %v2484
        %v2561 = vpop.f32.mrb[0].mxu0
        %v2562 = vadd.f32 0.0, %v2561
        %v2563 = vpop.f32.mrb[0].mxu0
        %v2564 = vpop.f32.mrb[0].mxu0
        %v2565 = vadd.f32 0.0, %v2564
        %v2566 = vpop.f32.mrb[0].mxu0
        %2567 = vmatprep.mubr.bf16.mxu0 0
        %2568 = vmatmul.mubr.bf16.gmra.mrb[0].mxu0 %v2487
        %v2569 = vpop.f32.mrb[0].mxu0
        %v2570 = vadd.f32 0.0, %v2569
        %v2571 = vpop.f32.mrb[0].mxu0
        %v2572 = vpop.f32.mrb[0].mxu0
        %v2573 = vadd.f32 0.0, %v2572
        %v2574 = vpop.f32.mrb[0].mxu0
        %2575 = vmatprep.mubr.bf16.mxu0 0
        %2576 = vmatmul.mubr.bf16.gmra.mrb[0].mxu0 %v2490
        %v2577 = vpop.f32.mrb[0].mxu0
        %v2578 = vadd.f32 0.0, %v2577
        %v2579 = vpop.f32.mrb[0].mxu0
        %v2580 = vpop.f32.mrb[0].mxu0
        %v2581 = vadd.f32 0.0, %v2580
        %v2582 = vpop.f32.mrb[0].mxu0
        %2583 = vmatprep.mubr.bf16.mxu0 0
        %2584 = vmatmul.mubr.bf16.gmra.mrb[0].mxu0 %v2493
        %v2585 = vpop.f32.mrb[0].mxu0
        %v2586 = vadd.f32 0.0, %v2585
        %v2587 = vpop.f32.mrb[0].mxu0
        %v2588 = vpop.f32.mrb[0].mxu0
        %v2589 = vadd.f32 0.0, %v2588
        %v2590 = vpop.f32.mrb[0].mxu0
        %2591 = vdwg.mxu0
        %v2592 = vadd.f32 %v2398, %v2530
        %v2593 = vadd.f32 %v2399, %v2533
        %v2594 = vadd.f32 %v2400, %v2538
        %v2595 = vadd.f32 %v2401, %v2541
        %v2596 = vadd.f32 %v2402, %v2546
        %v2597 = vadd.f32 %v2403, %v2549
        %v2598 = vadd.f32 %v2404, %v2554
        %v2599 = vadd.f32 %v2405, %v2557
        %v2600 = vadd.f32 %v2406, %v2562
        %v2601 = vadd.f32 %v2407, %v2565
        %v2602 = vadd.f32 %v2408, %v2570
        %v2603 = vadd.f32 %v2409, %v2573
        %v2604 = vadd.f32 %v2410, %v2578
        %v2605 = vadd.f32 %v2411, %v2581
        %v2606 = vadd.f32 %v2412, %v2586
        %v2607 = vadd.f32 %v2413, %v2589
        %v2608 = vpack.c.bf16 %v2593, %v2592
        %v2609 = vpack.c.bf16 %v2595, %v2594
        %v2610 = vpack.c.bf16 %v2597, %v2596
        %v2611 = vpack.c.bf16 %v2599, %v2598
        %v2612 = vpack.c.bf16 %v2601, %v2600
        %v2613 = vpack.c.bf16 %v2603, %v2602
        %v2614 = vpack.c.bf16 %v2605, %v2604
        %v2615 = vpack.c.bf16 %v2607, %v2606
        %v2624 = vunpack.c.l.b16 %v2608
        %v2625 = vunpack.c.h.b16 %v2608
        %v2626 = vunpack.c.l.b16 %v2609
        %v2627 = vunpack.c.h.b16 %v2609
        %v2628 = vunpack.c.l.b16 %v2610
        %v2629 = vunpack.c.h.b16 %v2610
        %v2630 = vunpack.c.l.b16 %v2611
        %v2631 = vunpack.c.h.b16 %v2611
        %v2632 = vunpack.c.l.b16 %v2612
        %v2633 = vunpack.c.h.b16 %v2612
        %v2634 = vunpack.c.l.b16 %v2613
        %v2635 = vunpack.c.h.b16 %v2613
        %v2636 = vunpack.c.l.b16 %v2614
        %v2637 = vunpack.c.h.b16 %v2614
        %v2638 = vunpack.c.l.b16 %v2615
        %v2639 = vunpack.c.h.b16 %v2615
        %v2640 = vpack.c.b16 %v2624, %v2624
        %v2641 = vpack.c.b16 %v2625, %v2625
        %v2642 = vpack.c.b16 %v2626, %v2626
        %v2643 = vpack.c.b16 %v2627, %v2627
        %v2644 = vpack.c.b16 %v2628, %v2628
        %v2645 = vpack.c.b16 %v2629, %v2629
        %v2646 = vpack.c.b16 %v2630, %v2630
        %v2647 = vpack.c.b16 %v2631, %v2631
        %v2648 = vpack.c.b16 %v2632, %v2632
        %v2649 = vpack.c.b16 %v2633, %v2633
        %v2650 = vpack.c.b16 %v2634, %v2634
        %v2651 = vpack.c.b16 %v2635, %v2635
        %v2652 = vpack.c.b16 %v2636, %v2636
        %v2653 = vpack.c.b16 %v2637, %v2637
        %v2654 = vpack.c.b16 %v2638, %v2638
        %v2655 = vpack.c.b16 %v2639, %v2639
        %vm2672 = vcmask 257024
        %2673 = vst.msk [vmem:[%s405] sm:$0xf] %vm2672, %v2640
        %2674 = vst.msk [vmem:[%s405 + $0x4] sm:$0xf] %vm2672, %v2641
        %2675 = vst.msk [vmem:[%s405 + $0x8] sm:$0xf] %vm2672, %v2642
        %2676 = vst.msk [vmem:[%s405 + $0xc] sm:$0xf] %vm2672, %v2643
        %2677 = vst.msk [vmem:[%s405 + $0x10] sm:$0xf] %vm2672, %v2644
        %2678 = vst.msk [vmem:[%s405 + $0x14] sm:$0xf] %vm2672, %v2645
        %2679 = vst.msk [vmem:[%s405 + $0x18] sm:$0xf] %vm2672, %v2646
        %2680 = vst.msk [vmem:[%s405 + $0x1c] sm:$0xf] %vm2672, %v2647
        %2681 = vst.msk [vmem:[%s405 + $0x20] sm:$0xf] %vm2672, %v2648
        %2682 = vst.msk [vmem:[%s405 + $0x24] sm:$0xf] %vm2672, %v2649
        %2683 = vst.msk [vmem:[%s405 + $0x28] sm:$0xf] %vm2672, %v2650
        %2684 = vst.msk [vmem:[%s405 + $0x2c] sm:$0xf] %vm2672, %v2651
        %2685 = vst.msk [vmem:[%s405 + $0x30] sm:$0xf] %vm2672, %v2652
        %2686 = vst.msk [vmem:[%s405 + $0x34] sm:$0xf] %vm2672, %v2653
        %2687 = vst.msk [vmem:[%s405 + $0x38] sm:$0xf] %vm2672, %v2654
        %2688 = vst.msk [vmem:[%s405 + $0x3c] sm:$0xf] %vm2672, %v2655
        %v2689 = vunpack.c.l.bf16 %v2608
        %v2690 = vunpack.c.h.bf16 %v2608
        %v2691 = vunpack.c.l.bf16 %v2609
        %v2692 = vunpack.c.h.bf16 %v2609
        %v2693 = vunpack.c.l.bf16 %v2610
        %v2694 = vunpack.c.h.bf16 %v2610
        %v2695 = vunpack.c.l.bf16 %v2611
        %v2696 = vunpack.c.h.bf16 %v2611
        %v2697 = vunpack.c.l.bf16 %v2612
        %v2698 = vunpack.c.h.bf16 %v2612
        %v2699 = vunpack.c.l.bf16 %v2613
        %v2700 = vunpack.c.h.bf16 %v2613
        %v2701 = vunpack.c.l.bf16 %v2614
        %v2702 = vunpack.c.h.bf16 %v2614
        %v2703 = vunpack.c.l.bf16 %v2615
        %v2704 = vunpack.c.h.bf16 %v2615
        %vm2705 = vcmask 261120
        %v2706 = vsel %vm2705, %v2689, 0.0
        %v2707 = vsel %vm2705, %v2690, 0.0
        %v2708 = vadd.f32 %v2706, %v2707
        %v2709 = vsel %vm2705, %v2691, 0.0
        %v2710 = vadd.f32 %v2708, %v2709
        %v2711 = vsel %vm2705, %v2692, 0.0
        %v2712 = vadd.f32 %v2710, %v2711
        %v2713 = vsel %vm2705, %v2693, 0.0
        %v2714 = vadd.f32 %v2712, %v2713
        %v2715 = vsel %vm2705, %v2694, 0.0
        %v2716 = vadd.f32 %v2714, %v2715
        %v2717 = vsel %vm2705, %v2695, 0.0
        %v2718 = vadd.f32 %v2716, %v2717
        %v2719 = vsel %vm2705, %v2696, 0.0
        %v2720 = vadd.f32 %v2718, %v2719
        %v2721 = vsel %vm2705, %v2697, 0.0
        %v2722 = vadd.f32 %v2720, %v2721
        %v2723 = vsel %vm2705, %v2698, 0.0
        %v2724 = vadd.f32 %v2722, %v2723
        %v2725 = vsel %vm2705, %v2699, 0.0
        %v2726 = vadd.f32 %v2724, %v2725
        %v2727 = vsel %vm2705, %v2700, 0.0
        %v2728 = vadd.f32 %v2726, %v2727
        %v2729 = vsel %vm2705, %v2701, 0.0
        %v2730 = vadd.f32 %v2728, %v2729
        %v2731 = vsel %vm2705, %v2702, 0.0
        %v2732 = vadd.f32 %v2730, %v2731
        %v2733 = vsel %vm2705, %v2703, 0.0
        %v2734 = vadd.f32 %v2732, %v2733
        %v2735 = vsel %vm2705, %v2704, 0.0
        %v2736 = vadd.f32 %v2734, %v2735
        %v2737 = vrot.slane %v2736, 4
        %v2738 = vadd.f32 %v2736, %v2737
        %v2739 = vrot.slane %v2738, 2
        %v2740 = vadd.f32 %v2738, %v2739
        %v2741 = vrot.slane %v2740, 1
        %v2742 = vadd.f32 %v2740, %v2741
        %v2743 = vmul.f32 %v2689, %v2689
        %v2744 = vmul.f32 %v2690, %v2690
        %v2745 = vmul.f32 %v2691, %v2691
        %v2746 = vmul.f32 %v2692, %v2692
        %v2747 = vmul.f32 %v2693, %v2693
        %v2748 = vmul.f32 %v2694, %v2694
        %v2749 = vmul.f32 %v2695, %v2695
        %v2750 = vmul.f32 %v2696, %v2696
        %v2751 = vmul.f32 %v2697, %v2697
        %v2752 = vmul.f32 %v2698, %v2698
        %v2753 = vmul.f32 %v2699, %v2699
        %v2754 = vmul.f32 %v2700, %v2700
        %v2755 = vmul.f32 %v2701, %v2701
        %v2756 = vmul.f32 %v2702, %v2702
        %v2757 = vmul.f32 %v2703, %v2703
        %v2758 = vmul.f32 %v2704, %v2704
        %v2759 = vsel %vm2705, %v2743, 0.0
        %v2760 = vsel %vm2705, %v2744, 0.0
        %v2761 = vadd.f32 %v2759, %v2760
        %v2762 = vsel %vm2705, %v2745, 0.0
        %v2763 = vadd.f32 %v2761, %v2762
        %v2764 = vsel %vm2705, %v2746, 0.0
        %v2765 = vadd.f32 %v2763, %v2764
        %v2766 = vsel %vm2705, %v2747, 0.0
        %v2767 = vadd.f32 %v2765, %v2766
        %v2768 = vsel %vm2705, %v2748, 0.0
        %v2769 = vadd.f32 %v2767, %v2768
        %v2770 = vsel %vm2705, %v2749, 0.0
        %v2771 = vadd.f32 %v2769, %v2770
        %v2772 = vsel %vm2705, %v2750, 0.0
        %v2773 = vadd.f32 %v2771, %v2772
        %v2774 = vsel %vm2705, %v2751, 0.0
        %v2775 = vadd.f32 %v2773, %v2774
        %v2776 = vsel %vm2705, %v2752, 0.0
        %v2777 = vadd.f32 %v2775, %v2776
        %v2778 = vsel %vm2705, %v2753, 0.0
        %v2779 = vadd.f32 %v2777, %v2778
        %v2780 = vsel %vm2705, %v2754, 0.0
        %v2781 = vadd.f32 %v2779, %v2780
        %v2782 = vsel %vm2705, %v2755, 0.0
        %v2783 = vadd.f32 %v2781, %v2782
        %v2784 = vsel %vm2705, %v2756, 0.0
        %v2785 = vadd.f32 %v2783, %v2784
        %v2786 = vsel %vm2705, %v2757, 0.0
        %v2787 = vadd.f32 %v2785, %v2786
        %v2788 = vsel %vm2705, %v2758, 0.0
        %v2789 = vadd.f32 %v2787, %v2788
        %v2790 = vrot.slane %v2789, 4
        %v2791 = vadd.f32 %v2789, %v2790
        %v2792 = vrot.slane %v2791, 2
        %v2793 = vadd.f32 %v2791, %v2792
        %v2794 = vrot.slane %v2793, 1
        %v2795 = vadd.f32 %v2793, %v2794
        %vm2796 = vcmask 1040384
        %v2797 = vsel %vm2796, %v2742, %v2795
        %vm2798 = vcmask 254976
        %2799 = vst.msk [vmem:[%s412] sm:$0x3] %vm2798, %v2797
        %s2800 = sand.u32 %s194, 1
        %s2801 = scalar_lea.sflag [#allocation6], %s2800
        %s2802 = sand.u32 %s194, 1
        %s2803 = smul.addr %s2802, 64
        %s2804 = scalar_lea.vmem [#allocation10], %s2803
        %s2805 = sand.u32 %s222, 1
        %s2806 = scalar_lea.sflag [#allocation12], %s2805
        %s2807 = sand.u32 %s222, 1
        %s2808 = smul.addr %s2807, 2
        %s2809 = scalar_lea.vmem [#allocation11], %s2808
        // Predicated region
        $region69: #{tpu_custom_call.1} parent=39 // pred_check
          %p2810 = pneg %p204
        $region70: #{tpu_custom_call.1} parent=39 // pred_check_branch
          %2812 = sbr.rel (%p2810) target = $region72
        $region71: #{tpu_custom_call.1} parent=39 // pred_region
          %s2813 = smul.u32 8, %s35
          %s2815 = ssub.s32 1024, 1024
          %2816 = vsyncadd %s2801, %s2815
          %s2817 = smul.addr %s2813, 2
          %s2818 = smul.addr %s34, 32
          %s2819 = sadd.s32 %s2817, %s2818
          %s2820 = smul.addr %s2819, 64
          %s2821 = scalar_lea.hbm %s5, %s2820
          %s2822 = sshll.u32 %s2804, 4
          %s2823 = int_to_ptr.vmem [resolvable:$true] %s2822
          %2828 = dma.vmem_to_hbm [thread:$0]  %s2823, 1024, %s2821, %s2801, 64, 64, 4
        $region72: #{tpu_custom_call.1} parent=39 // pred_fallthru
          _
        // Predicated region
        $region73: #{tpu_custom_call.1} parent=39 // pred_check
          %p2829 = pneg %p232
        $region74: #{tpu_custom_call.1} parent=39 // pred_check_branch
          %2831 = sbr.rel (%p2829) target = $region76
        $region75: #{tpu_custom_call.1} parent=39 // pred_region
          %s2833 = ssub.s32 32, 32
          %2834 = vsyncadd %s2806, %s2833
          %s2835 = smul.addr %s34, 2
          %s2836 = sadd.s32 %s35, %s2835
          %s2837 = smul.addr %s2836, 32
          %s2838 = scalar_lea.hbm %s6, %s2837
          %s2840 = sshll.u32 %s2809, 4
          %s2841 = int_to_ptr.vmem [resolvable:$true] %s2840
          %2843 = dma.vmem_to_hbm [thread:$0]  %s2841, 32, %s2838, %s2806
        $region76: #{tpu_custom_call.1} parent=39 // pred_fallthru
          _
      $region40: #{tpu_custom_call.1} parent=5 // pred_fallthru
        _
      %p2844 = scmp.le.s32.totalorder 2, %s25
      // Predicated region
      $region77: #{tpu_custom_call.1} parent=5 // pred_check
        %p2845 = pneg %p2844
      $region78: #{tpu_custom_call.1} parent=5 // pred_check_branch
        %2847 = sbr.rel (%p2845) target = $region80
      $region79: #{tpu_custom_call.1} parent=5 // pred_region
        %s2848 = ssub.s32 %s25, 2
        // Predicated region
        $region81: #{tpu_custom_call.1} parent=79 // pred_check
          %p2849 = pneg %p210
        $region82: #{tpu_custom_call.1} parent=79 // pred_check_branch
          %2851 = sbr.rel (%p2849) target = $region84
        $region83: #{tpu_custom_call.1} parent=79 // pred_region
          %s2852 = sand.u32 %s195, 1
          %s2853 = scalar_lea.sflag [#allocation6], %s2852
          %s2854 = sand.u32 %s195, 1
          %s2855 = smul.addr %s2854, 64
          %s2856 = scalar_lea.vmem [#allocation10], %s2855
          %2857 = dma.done %s2853, 1024
        $region84: #{tpu_custom_call.1} parent=79 // pred_fallthru
          _
        // Predicated region
        $region85: #{tpu_custom_call.1} parent=79 // pred_check
          %p2858 = pneg %p238
        $region86: #{tpu_custom_call.1} parent=79 // pred_check_branch
          %2860 = sbr.rel (%p2858) target = $region88
        $region87: #{tpu_custom_call.1} parent=79 // pred_region
          %s2861 = sand.u32 %s223, 1
          %s2862 = scalar_lea.sflag [#allocation12], %s2861
          %s2863 = sand.u32 %s223, 1
          %s2864 = smul.addr %s2863, 2
          %s2865 = scalar_lea.vmem [#allocation11], %s2864
          %2866 = dma.done %s2862, 32
        $region88: #{tpu_custom_call.1} parent=79 // pred_fallthru
          _
      $region80: #{tpu_custom_call.1} parent=5 // pred_fallthru
        _
    $region6: #{tpu_custom_call.1} parent=1 // loop_footer
      %s29 = sadd.s32 1, %s25
    $region7: #{tpu_custom_call.1} parent=1 // loop_footer_branch
      %24 = sbr.rel target = $region3
    $region8: #{tpu_custom_call.1} parent=1 // loop_exit
      _
    %2867 = vsyncpa [#allocation5], 1
    %s2868 = scalar_lea.sflag [#allocation5], 1
    %2869 = vsyncpa %s2868, 1
    %2870 = vsyncpa [#allocation8], 1
    %s2871 = scalar_lea.sflag [#allocation8], 1
    %2872 = vsyncpa %s2871, 1
    %2873 = vsyncpa [#allocation6], 1
    %s2874 = scalar_lea.sflag [#allocation6], 1
    %2875 = vsyncpa %s2874, 1
    %2876 = vsyncpa [#allocation12], 1
    %s2877 = scalar_lea.sflag [#allocation12], 1
    %2878 = vsyncpa %s2877, 1

</llo_original>
